<compile_context>
chip_gen: v5e
topology: v5e:2x2
jax: 0.10.0
libtpu: 0.0.40
codegen_flags: <defaults>
</compile_context>

<pallas_src>
import functools

import numpy as np
import jax
import jax.numpy as jnp
from jax.experimental import pallas as pl
from jax.experimental.pallas import tpu as pltpu


# ---------------------------------------------------------------------------
# Topology helpers (verbatim semantics of the PyTorch module's helpers)
# ---------------------------------------------------------------------------
def get_channels_list(channels):
    n_channels = channels
    joint_num = n_channels // 6
    base_channel = 128
    n_layers = 4
    channels_list = [n_channels]
    for i in range(n_layers - 1):
        channels_list.append(base_channel * 2 ** ((i + 1) // 2))
    channels_list += [n_channels]
    channels_list = [((n - 1) // joint_num + 1) * joint_num for n in channels_list]
    return channels_list


def dfs(parents, x, vis, dist):
    fa = parents
    vis[x] = 1
    for y in range(len(fa)):
        if (fa[y] == x or fa[x] == y) and vis[y] == 0:
            dist[y] = dist[x] + 1
            dfs(parents, y, vis, dist)


def get_neighbor(parents, contact_ids, threshold=2.0, enforce_contact=True):
    fa = parents
    neighbor_list = []
    for x in range(0, len(fa)):
        vis = [0 for _ in range(len(fa))]
        dist = [0 for _ in range(len(fa))]
        dfs(parents, x, vis, dist)
        neighbor = []
        for j in range(0, len(fa)):
            if dist[j] <= threshold:
                neighbor.append(j)
        neighbor_list.append(neighbor)
    contact_list = []
    for i, p_id in enumerate(contact_ids):
        v_id = len(neighbor_list)
        neighbor_list[p_id].append(v_id)
        neighbor_list.append(neighbor_list[p_id])
        contact_list.append(v_id)
    root_neighbor = neighbor_list[0]
    id_root = len(neighbor_list)
    if enforce_contact:
        root_neighbor = root_neighbor + contact_list
        for j in contact_list:
            neighbor_list[j] = list(set(neighbor_list[j]))
    root_neighbor = list(set(root_neighbor))
    for j in root_neighbor:
        neighbor_list[j].append(id_root)
    root_neighbor.append(id_root)
    neighbor_list.append(root_neighbor)
    return neighbor_list


def _round_up(n, m):
    return ((n + m - 1) // m) * m


# ---------------------------------------------------------------------------
# Fused Pallas kernel: whole 2-stage Generator forward per batch sample
# ---------------------------------------------------------------------------
def _fused_generator_kernel(*refs, K, T0, T1, n_layers, negative_slope):
    # refs = (g, n0, n1, interp, [w,b]*(2*n_layers), out0, out1, xpad_scratch)
    n_wb = 4 * n_layers                       # 2 stages x n_layers x (w, b)
    g_ref, n0_ref, n1_ref, interp_ref = refs[:4]
    wb = refs[4:4 + n_wb]
    out0_ref, out1_ref = refs[4 + n_wb:4 + n_wb + 2]
    xpad_ref = refs[4 + n_wb + 2]

    pad = (K - 1) // 2

    def conv(x, w_ref, b_ref, act):
        t, c_in = x.shape
        # --- reflect padding along time, staged through the VMEM scratch ---
        xpad_ref[pad:pad + t, :c_in] = x
        for j in range(pad):
            # top halo row j  <- x[pad - j]    (reflect)
            xpad_ref[j:j + 1, :c_in] = x[pad - j:pad - j + 1, :]
            # bottom halo row pad+t+j <- x[t - 2 - j]   (reflect)
            xpad_ref[pad + t + j:pad + t + j + 1, :c_in] = x[t - 2 - j:t - 1 - j, :]
        # --- im2col: lane-aligned concat -> ONE MXU matmul per layer ---
        x_col = jnp.concatenate(
            [xpad_ref[k:k + t, :c_in] for k in range(K)], axis=-1)   # (t, K*c_in)
        acc = jnp.dot(x_col.astype(jnp.bfloat16), w_ref[...],
                      preferred_element_type=jnp.float32)            # f32 accumulate
        acc = acc + b_ref[...]                                        # f32 epilogue
        if act:
            acc = jnp.where(acc >= 0, acc, acc * negative_slope)
        return acc

    def run_stage(x, stage_idx):
        for l in range(n_layers):
            idx = 2 * (stage_idx * n_layers + l)
            x = conv(x, wb[idx], wb[idx + 1], act=(l < n_layers - 1))
        return x

    # ---- stage 0 ----
    g = g_ref[...]                                        # (T0, Cp) f32
    g0 = run_stage(g + n0_ref[...], 0) + g
    out0_ref[...] = g0.astype(out0_ref.dtype)

    # ---- linear upsample (align_corners=False) as a cheap VPU lerp ----
    # interp_ref has shape (T0, T1, 1) with interp_ref[s, t, 0] = W[t, s]
    c_p = g0.shape[-1]
    g_up = jnp.zeros((T1, c_p), jnp.float32)
    for s in range(T0):
        g_up = g_up + interp_ref[s] * g0[s:s + 1, :]      # (T1,1)*(1,Cp)

    # ---- stage 1 ----  (.detach() is a no-op in the forward pass)
    g1 = run_stage(g_up + n1_ref[...], 1) + g_up
    out1_ref[...] = g1.astype(out1_ref.dtype)


def _fused_generator_call(g, n0, n1, interp_mat, params, *, K, negative_slope):
    """g, n0: (N, T0, Cp); n1: (N, T1, Cp) NTC, channel-padded to 128 lanes.
       params[stage][layer] = (w bf16 (K*Cin_p, Cout_p), b f32 (1, Cout_p))."""
    assert len(params) == 2, "Generator forward is defined for stages=2"
    N, T0, Cp = g.shape
    T1 = n1.shape[1]
    n_layers = len(params[0])
    pad = (K - 1) // 2

    # interpolation weights reshaped so the kernel can index whole (T1,1) cols
    interp_k = jnp.transpose(interp_mat.astype(jnp.float32), (1, 0))[:, :, None]

    flat_wb, wb_specs = [], []
    for stage in params:
        for (w, b) in stage:
            flat_wb += [w, b]
            wb_specs.append(pl.BlockSpec(w.shape, lambda n: (0, 0)))
            wb_specs.append(pl.BlockSpec(b.shape, lambda n: (0, 0)))

    in_specs = [
        pl.BlockSpec((pl.Squeezed(), T0, Cp), lambda n: (n, 0, 0)),   # g
        pl.BlockSpec((pl.Squeezed(), T0, Cp), lambda n: (n, 0, 0)),   # noise0
        pl.BlockSpec((pl.Squeezed(), T1, Cp), lambda n: (n, 0, 0)),   # noise1
        pl.BlockSpec((T0, T1, 1), lambda n: (0, 0, 0)),               # interp
    ] + wb_specs

    out_shape = (jax.ShapeDtypeStruct((N, T0, Cp), jnp.float32),
                 jax.ShapeDtypeStruct((N, T1, Cp), jnp.float32))
    out_specs = (pl.BlockSpec((pl.Squeezed(), T0, Cp), lambda n: (n, 0, 0)),
                 pl.BlockSpec((pl.Squeezed(), T1, Cp), lambda n: (n, 0, 0)))

    c_in_max = max(w.shape[0] // K for stage in params for (w, _b) in stage)
    t_max = max(T0, T1)

    kernel = functools.partial(
        _fused_generator_kernel, K=K, T0=T0, T1=T1,
        n_layers=n_layers, negative_slope=negative_slope)

    return pl.pallas_call(
        kernel,
        out_shape=out_shape,
        grid=(N,),
        in_specs=in_specs,
        out_specs=out_specs,
        scratch_shapes=[pltpu.VMEM((t_max + 2 * pad, c_in_max), jnp.float32)],
        compiler_params=pltpu.CompilerParams(
            dimension_semantics=("parallel",)),   # batch -> megacore on v7x
    )(g, n0, n1, interp_k, *flat_wb)


# ---------------------------------------------------------------------------
# Parameter / constant construction (deterministic, synthetic weights)
# ---------------------------------------------------------------------------
def build_skeleton_mask(neighbors, c_in, c_out, K):
    J = len(neighbors)
    cpi, cpo = c_in // J, c_out // J
    mask = np.zeros((K, c_in, c_out), dtype=np.float32)
    for oj, nb in enumerate(neighbors):
        for ij in nb:
            mask[:, ij * cpi:(ij + 1) * cpi, oj * cpo:(oj + 1) * cpo] = 1.0
    return jnp.asarray(mask)


def init_generator_params(key, neighbors, channels, kernel_size, stages):
    # Each SkeletonBlock = 4 masked conv layers with io = zip(channels[:-1], channels[1:])
    layer_io = list(zip(channels[:-1], channels[1:]))
    padded = [_round_up(c, 128) for c in channels]
    padded_io = list(zip(padded[:-1], padded[1:]))
    params = []
    for _ in range(stages):
        stage_params = []
        for (cin, cout), (cin_p, cout_p) in zip(layer_io, padded_io):
            key, kw, kb = jax.random.split(key, 3)
            fan_in = cin * kernel_size
            w = jax.random.normal(kw, (kernel_size, cin, cout),
                                  jnp.float32) / np.sqrt(fan_in)
            b = jax.random.normal(kb, (1, cout), jnp.float32) * 0.01
            w = w * build_skeleton_mask(neighbors, cin, cout, kernel_size)
            # zero-pad to lane-dense channel counts, flatten taps for im2col,
            # store the MXU operand in bf16 (accumulation stays in f32)
            w_p = jnp.zeros((kernel_size, cin_p, cout_p), jnp.float32)
            w_p = w_p.at[:, :cin, :cout].set(w)
            w_p = w_p.reshape(kernel_size * cin_p, cout_p).astype(jnp.bfloat16)
            b_p = jnp.zeros((1, cout_p), jnp.float32).at[:, :cout].set(b)
            stage_params.append((w_p, b_p))
        params.append(stage_params)
    return params


def make_interp_matrix(t_in, t_out):
    """torch.nn.functional.interpolate(mode='linear', align_corners=False) as a
    (t_out, t_in) matrix."""
    m = np.zeros((t_out, t_in), np.float32)
    if t_in == t_out:
        np.fill_diagonal(m, 1.0)
        return jnp.asarray(m)
    scale = t_in / t_out
    coords = (np.arange(t_out, dtype=np.float64) + 0.5) * scale - 0.5
    coords = np.clip(coords, 0.0, t_in - 1)
    lo = np.floor(coords).astype(np.int64)
    hi = np.minimum(lo + 1, t_in - 1)
    w = coords - lo
    for t in range(t_out):
        m[t, lo[t]] += 1.0 - w[t]
        m[t, hi[t]] += w[t]
    return jnp.asarray(m)


# ---------------------------------------------------------------------------
# Forward pass (wrapper: NCW <-> lane-dense NTC; hot path is one pallas_call)
# ---------------------------------------------------------------------------
@functools.partial(jax.jit, static_argnames=("K", "C", "negative_slope"))
def generator_forward(params, interp_mat, noise0, generated, noise1, *,
                      K, C, negative_slope=0.2):
    cp = params[0][0][0].shape[0] // K            # padded channel count (128)

    def to_ntc(x):
        x = jnp.transpose(x, (0, 2, 1)).astype(jnp.float32)
        return jnp.pad(x, ((0, 0), (0, 0), (0, cp - C)))

    g, n0, n1 = to_ntc(generated), to_ntc(noise0), to_ntc(noise1)
    o0, o1 = _fused_generator_call(g, n0, n1, interp_mat, params,
                                   K=K, negative_slope=negative_slope)
    return {"stage0": jnp.transpose(o0[:, :, :C], (0, 2, 1)),
            "stage1": jnp.transpose(o1[:, :, :C], (0, 2, 1))}


# ---------------------------------------------------------------------------
# Pure-JAX reference (same numerics: bf16 MXU operands, f32 accumulate)
# ---------------------------------------------------------------------------
def reference_forward(params, interp_mat, noise0, generated, noise1, *,
                      K, C, negative_slope=0.2):
    cp = params[0][0][0].shape[0] // K
    pad = (K - 1) // 2

    def to_ntc(x):
        x = jnp.transpose(x, (0, 2, 1)).astype(jnp.float32)
        return jnp.pad(x, ((0, 0), (0, 0), (0, cp - C)))

    def conv(x, w, b, act):
        N, T, _ = x.shape
        xp = jnp.pad(x, ((0, 0), (pad, pad), (0, 0)), mode="reflect")
        col = jnp.concatenate([xp[:, k:k + T, :] for k in range(K)], axis=-1)
        acc = jnp.einsum("ntc,cd->ntd", col.astype(jnp.bfloat16), w,
                         preferred_element_type=jnp.float32)
        acc = acc + b[None]
        return jnp.where(acc >= 0, acc, acc * negative_slope) if act else acc

    def stage(x, sp):
        for i, (w, b) in enumerate(sp):
            x = conv(x, w, b, i < len(sp) - 1)
        return x

    g, n0, n1 = to_ntc(generated), to_ntc(noise0), to_ntc(noise1)
    g0 = stage(g + n0, params[0]) + g
    gu = jnp.einsum("ts,nsc->ntc", interp_mat, g0)
    g1 = stage(gu + n1, params[1]) + gu
    return {"stage0": jnp.transpose(g0[:, :, :C], (0, 2, 1)),
            "stage1": jnp.transpose(g1[:, :, :C], (0, 2, 1))}


# ---------------------------------------------------------------------------
if __name__ == "__main__":
    # Small synthetic skeleton: 5-joint chain, 2 contact joints.
    parents = [-1, 0, 1, 2, 3]
    contacts = [3, 4]
    kernel_size = 3
    stages = 2

    neighbors = get_neighbor(parents, contacts, threshold=2, enforce_contact=True)
    num_features = (len(parents) + len(contacts) + 1) * 6      # 48 channels
    channels = get_channels_list(num_features)                 # [48,128,256,256,48]

    key = jax.random.PRNGKey(0)
    key, kp = jax.random.split(key)
    params = init_generator_params(kp, neighbors, channels, kernel_size, stages)

    N, C, T0, T1 = 2, num_features, 8, 16
    k1, k2, k3 = jax.random.split(key, 3)
    generated = jax.random.normal(k1, (N, C, T0), jnp.float32)   # NCW like PyTorch
    noise0 = jax.random.normal(k2, (N, C, T0), jnp.float32) * 0.1
    noise1 = jax.random.normal(k3, (N, C, T1), jnp.float32) * 0.1

    interp_mat = make_interp_matrix(T0, T1)

    out = generator_forward(params, interp_mat, noise0, generated, noise1,
                            K=kernel_size, C=C)
    jax.block_until_ready(out)

    assert out["stage0"].shape == (N, C, T0)
    assert out["stage1"].shape == (N, C, T1)
    assert bool(jnp.all(jnp.isfinite(out["stage0"])))
    assert bool(jnp.all(jnp.isfinite(out["stage1"])))

    ref = reference_forward(params, interp_mat, noise0, generated, noise1,
                            K=kernel_size, C=C)
    np.testing.assert_allclose(np.asarray(out["stage0"]), np.asarray(ref["stage0"]),
                               rtol=1e-2, atol=1e-2)
    np.testing.assert_allclose(np.asarray(out["stage1"]), np.asarray(ref["stage1"]),
                               rtol=1e-2, atol=1e-2)
    print("KERNEL_OK")
</pallas_src>

<mosaic_0001>
module attributes {stable_mosaic.version = 11 : i64} {
  func.func @_fused_generator_kernel(%arg0: i32, %arg1: memref<1x8x128xf32, #tpu.memory_space<vmem>>, %arg2: memref<1x8x128xf32, #tpu.memory_space<vmem>>, %arg3: memref<1x16x128xf32, #tpu.memory_space<vmem>>, %arg4: memref<8x16x1xf32, #tpu.memory_space<vmem>>, %arg5: memref<384x128xbf16, #tpu.memory_space<vmem>>, %arg6: memref<1x128xf32, #tpu.memory_space<vmem>>, %arg7: memref<384x256xbf16, #tpu.memory_space<vmem>>, %arg8: memref<1x256xf32, #tpu.memory_space<vmem>>, %arg9: memref<768x256xbf16, #tpu.memory_space<vmem>>, %arg10: memref<1x256xf32, #tpu.memory_space<vmem>>, %arg11: memref<768x128xbf16, #tpu.memory_space<vmem>>, %arg12: memref<1x128xf32, #tpu.memory_space<vmem>>, %arg13: memref<384x128xbf16, #tpu.memory_space<vmem>>, %arg14: memref<1x128xf32, #tpu.memory_space<vmem>>, %arg15: memref<384x256xbf16, #tpu.memory_space<vmem>>, %arg16: memref<1x256xf32, #tpu.memory_space<vmem>>, %arg17: memref<768x256xbf16, #tpu.memory_space<vmem>>, %arg18: memref<1x256xf32, #tpu.memory_space<vmem>>, %arg19: memref<768x128xbf16, #tpu.memory_space<vmem>>, %arg20: memref<1x128xf32, #tpu.memory_space<vmem>>, %arg21: memref<1x8x128xf32, #tpu.memory_space<vmem>>, %arg22: memref<1x16x128xf32, #tpu.memory_space<vmem>>, %arg23: memref<18x256xf32, #tpu.memory_space<vmem>>) attributes {dimension_semantics = [#tpu.dimension_semantics<parallel>], iteration_bounds = array<i64: 2>, scalar_prefetch = 0 : i64, scratch_operands = 1 : i64, tpu.core_type = #tpu.core_type<tc>, window_params = [{transform_indices = @transform_0, window_bounds = array<i64: 1, 8, 128>}, {transform_indices = @transform_1, window_bounds = array<i64: 1, 8, 128>}, {transform_indices = @transform_2, window_bounds = array<i64: 1, 16, 128>}, {pipeline_mode = #tpu.pipeline_mode<synchronous>, transform_indices = @transform_3, window_bounds = array<i64: 8, 16, 1>}, {pipeline_mode = #tpu.pipeline_mode<synchronous>, transform_indices = @transform_4, window_bounds = array<i64: 384, 128>}, {pipeline_mode = #tpu.pipeline_mode<synchronous>, transform_indices = @transform_5, window_bounds = array<i64: 1, 128>}, {pipeline_mode = #tpu.pipeline_mode<synchronous>, transform_indices = @transform_6, window_bounds = array<i64: 384, 256>}, {pipeline_mode = #tpu.pipeline_mode<synchronous>, transform_indices = @transform_7, window_bounds = array<i64: 1, 256>}, {pipeline_mode = #tpu.pipeline_mode<synchronous>, transform_indices = @transform_8, window_bounds = array<i64: 768, 256>}, {pipeline_mode = #tpu.pipeline_mode<synchronous>, transform_indices = @transform_9, window_bounds = array<i64: 1, 256>}, {pipeline_mode = #tpu.pipeline_mode<synchronous>, transform_indices = @transform_10, window_bounds = array<i64: 768, 128>}, {pipeline_mode = #tpu.pipeline_mode<synchronous>, transform_indices = @transform_11, window_bounds = array<i64: 1, 128>}, {pipeline_mode = #tpu.pipeline_mode<synchronous>, transform_indices = @transform_12, window_bounds = array<i64: 384, 128>}, {pipeline_mode = #tpu.pipeline_mode<synchronous>, transform_indices = @transform_13, window_bounds = array<i64: 1, 128>}, {pipeline_mode = #tpu.pipeline_mode<synchronous>, transform_indices = @transform_14, window_bounds = array<i64: 384, 256>}, {pipeline_mode = #tpu.pipeline_mode<synchronous>, transform_indices = @transform_15, window_bounds = array<i64: 1, 256>}, {pipeline_mode = #tpu.pipeline_mode<synchronous>, transform_indices = @transform_16, window_bounds = array<i64: 768, 256>}, {pipeline_mode = #tpu.pipeline_mode<synchronous>, transform_indices = @transform_17, window_bounds = array<i64: 1, 256>}, {pipeline_mode = #tpu.pipeline_mode<synchronous>, transform_indices = @transform_18, window_bounds = array<i64: 768, 128>}, {pipeline_mode = #tpu.pipeline_mode<synchronous>, transform_indices = @transform_19, window_bounds = array<i64: 1, 128>}, {transform_indices = @transform_20, window_bounds = array<i64: 1, 8, 128>}, {transform_indices = @transform_21, window_bounds = array<i64: 1, 16, 128>}]} {
    %c0 = arith.constant 0 : index
    %c0_0 = arith.constant 0 : index
    %c0_1 = arith.constant 0 : index
    %0 = vector.load %arg1[%c0, %c0_0, %c0_1] : memref<1x8x128xf32, #tpu.memory_space<vmem>>, vector<1x8x128xf32>
    %1 = vector.shape_cast %0 : vector<1x8x128xf32> to vector<8x128xf32>
    %c0_2 = arith.constant 0 : index
    %c0_3 = arith.constant 0 : index
    %c0_4 = arith.constant 0 : index
    %2 = vector.load %arg2[%c0_2, %c0_3, %c0_4] : memref<1x8x128xf32, #tpu.memory_space<vmem>>, vector<1x8x128xf32>
    %3 = vector.shape_cast %2 : vector<1x8x128xf32> to vector<8x128xf32>
    %4 = arith.addf %1, %3 : vector<8x128xf32>
    %c1 = arith.constant 1 : index
    %c0_5 = arith.constant 0 : index
    %5 = vector.load %arg23[%c1, %c0_5] : memref<18x256xf32, #tpu.memory_space<vmem>>, vector<8x128xf32>
    tpu.vector_store %arg23[%c1, %c0_5], %4 {strides = array<i32>} : memref<18x256xf32, #tpu.memory_space<vmem>>, vector<8x128xf32>,
    %6 = vector.extract_strided_slice %4 {offsets = [1, 0], sizes = [1, 128], strides = [1, 1]} : vector<8x128xf32> to vector<1x128xf32>
    %c0_6 = arith.constant 0 : index
    %c0_7 = arith.constant 0 : index
    %7 = vector.load %arg23[%c0_6, %c0_7] : memref<18x256xf32, #tpu.memory_space<vmem>>, vector<1x128xf32>
    tpu.vector_store %arg23[%c0_6, %c0_7], %6 {strides = array<i32>} : memref<18x256xf32, #tpu.memory_space<vmem>>, vector<1x128xf32>,
    %8 = vector.extract_strided_slice %4 {offsets = [6, 0], sizes = [1, 128], strides = [1, 1]} : vector<8x128xf32> to vector<1x128xf32>
    %c9 = arith.constant 9 : index
    %c0_8 = arith.constant 0 : index
    %9 = vector.load %arg23[%c9, %c0_8] : memref<18x256xf32, #tpu.memory_space<vmem>>, vector<1x128xf32>
    tpu.vector_store %arg23[%c9, %c0_8], %8 {strides = array<i32>} : memref<18x256xf32, #tpu.memory_space<vmem>>, vector<1x128xf32>,
    %c0_9 = arith.constant 0 : index
    %c0_10 = arith.constant 0 : index
    %10 = vector.load %arg23[%c0_9, %c0_10] : memref<18x256xf32, #tpu.memory_space<vmem>>, vector<8x128xf32>
    %c1_11 = arith.constant 1 : index
    %c0_12 = arith.constant 0 : index
    %11 = vector.load %arg23[%c1_11, %c0_12] : memref<18x256xf32, #tpu.memory_space<vmem>>, vector<8x128xf32>
    %c2 = arith.constant 2 : index
    %c0_13 = arith.constant 0 : index
    %12 = vector.load %arg23[%c2, %c0_13] : memref<18x256xf32, #tpu.memory_space<vmem>>, vector<8x128xf32>
    %13 = tpu.concatenate %10, %11, %12 in 1 : vector<8x128xf32>, vector<8x128xf32>, vector<8x128xf32> -> vector<8x384xf32>
    %14 = arith.truncf %13 : vector<8x384xf32> to vector<8x384xbf16>
    %c0_14 = arith.constant 0 : index
    %c0_15 = arith.constant 0 : index
    %15 = vector.load %arg5[%c0_14, %c0_15] : memref<384x128xbf16, #tpu.memory_space<vmem>>, vector<384x128xbf16>
    %cst = arith.constant dense<0.000000e+00> : vector<8x128xf32>
    %16 = tpu.matmul %14, %15, %cst {dimension_numbers = #tpu.dot_dimension_numbers<[1], [0], [0], [1], [0, 0, 1, 1], [], []>} : vector<8x384xbf16>, vector<384x128xbf16>, vector<8x128xf32> -> vector<8x128xf32>
    %c0_16 = arith.constant 0 : index
    %c0_17 = arith.constant 0 : index
    %17 = vector.load %arg6[%c0_16, %c0_17] : memref<1x128xf32, #tpu.memory_space<vmem>>, vector<1x128xf32>
    %18 = vector.broadcast %17 : vector<1x128xf32> to vector<8x128xf32>
    %19 = arith.addf %16, %18 : vector<8x128xf32>
    %cst_18 = arith.constant 0.000000e+00 : f32
    %20 = vector.broadcast %cst_18 : f32 to vector<8x128xf32>
    %21 = arith.cmpf oge, %19, %20 : vector<8x128xf32>
    %cst_19 = arith.constant 2.000000e-01 : f32
    %22 = vector.broadcast %cst_19 : f32 to vector<8x128xf32>
    %23 = arith.mulf %19, %22 : vector<8x128xf32>
    %24 = arith.select %21, %19, %23 : vector<8x128xi1>, vector<8x128xf32>
    %c1_20 = arith.constant 1 : index
    %c0_21 = arith.constant 0 : index
    %25 = vector.load %arg23[%c1_20, %c0_21] : memref<18x256xf32, #tpu.memory_space<vmem>>, vector<8x128xf32>
    tpu.vector_store %arg23[%c1_20, %c0_21], %24 {strides = array<i32>} : memref<18x256xf32, #tpu.memory_space<vmem>>, vector<8x128xf32>,
    %26 = vector.extract_strided_slice %24 {offsets = [1, 0], sizes = [1, 128], strides = [1, 1]} : vector<8x128xf32> to vector<1x128xf32>
    %c0_22 = arith.constant 0 : index
    %c0_23 = arith.constant 0 : index
    %27 = vector.load %arg23[%c0_22, %c0_23] : memref<18x256xf32, #tpu.memory_space<vmem>>, vector<1x128xf32>
    tpu.vector_store %arg23[%c0_22, %c0_23], %26 {strides = array<i32>} : memref<18x256xf32, #tpu.memory_space<vmem>>, vector<1x128xf32>,
    %28 = vector.extract_strided_slice %24 {offsets = [6, 0], sizes = [1, 128], strides = [1, 1]} : vector<8x128xf32> to vector<1x128xf32>
    %c9_24 = arith.constant 9 : index
    %c0_25 = arith.constant 0 : index
    %29 = vector.load %arg23[%c9_24, %c0_25] : memref<18x256xf32, #tpu.memory_space<vmem>>, vector<1x128xf32>
    tpu.vector_store %arg23[%c9_24, %c0_25], %28 {strides = array<i32>} : memref<18x256xf32, #tpu.memory_space<vmem>>, vector<1x128xf32>,
    %c0_26 = arith.constant 0 : index
    %c0_27 = arith.constant 0 : index
    %30 = vector.load %arg23[%c0_26, %c0_27] : memref<18x256xf32, #tpu.memory_space<vmem>>, vector<8x128xf32>
    %c1_28 = arith.constant 1 : index
    %c0_29 = arith.constant 0 : index
    %31 = vector.load %arg23[%c1_28, %c0_29] : memref<18x256xf32, #tpu.memory_space<vmem>>, vector<8x128xf32>
    %c2_30 = arith.constant 2 : index
    %c0_31 = arith.constant 0 : index
    %32 = vector.load %arg23[%c2_30, %c0_31] : memref<18x256xf32, #tpu.memory_space<vmem>>, vector<8x128xf32>
    %33 = tpu.concatenate %30, %31, %32 in 1 : vector<8x128xf32>, vector<8x128xf32>, vector<8x128xf32> -> vector<8x384xf32>
    %34 = arith.truncf %33 : vector<8x384xf32> to vector<8x384xbf16>
    %c0_32 = arith.constant 0 : index
    %c0_33 = arith.constant 0 : index
    %35 = vector.load %arg7[%c0_32, %c0_33] : memref<384x256xbf16, #tpu.memory_space<vmem>>, vector<384x256xbf16>
    %cst_34 = arith.constant dense<0.000000e+00> : vector<8x256xf32>
    %36 = tpu.matmul %34, %35, %cst_34 {dimension_numbers = #tpu.dot_dimension_numbers<[1], [0], [0], [1], [0, 0, 1, 1], [], []>} : vector<8x384xbf16>, vector<384x256xbf16>, vector<8x256xf32> -> vector<8x256xf32>
    %c0_35 = arith.constant 0 : index
    %c0_36 = arith.constant 0 : index
    %37 = vector.load %arg8[%c0_35, %c0_36] : memref<1x256xf32, #tpu.memory_space<vmem>>, vector<1x256xf32>
    %38 = vector.broadcast %37 : vector<1x256xf32> to vector<8x256xf32>
    %39 = arith.addf %36, %38 : vector<8x256xf32>
    %cst_37 = arith.constant 0.000000e+00 : f32
    %40 = vector.broadcast %cst_37 : f32 to vector<8x256xf32>
    %41 = arith.cmpf oge, %39, %40 : vector<8x256xf32>
    %cst_38 = arith.constant 2.000000e-01 : f32
    %42 = vector.broadcast %cst_38 : f32 to vector<8x256xf32>
    %43 = arith.mulf %39, %42 : vector<8x256xf32>
    %44 = arith.select %41, %39, %43 : vector<8x256xi1>, vector<8x256xf32>
    %c1_39 = arith.constant 1 : index
    %c0_40 = arith.constant 0 : index
    %45 = vector.load %arg23[%c1_39, %c0_40] : memref<18x256xf32, #tpu.memory_space<vmem>>, vector<8x256xf32>
    tpu.vector_store %arg23[%c1_39, %c0_40], %44 {strides = array<i32>} : memref<18x256xf32, #tpu.memory_space<vmem>>, vector<8x256xf32>,
    %46 = vector.extract_strided_slice %44 {offsets = [1, 0], sizes = [1, 256], strides = [1, 1]} : vector<8x256xf32> to vector<1x256xf32>
    %c0_41 = arith.constant 0 : index
    %c0_42 = arith.constant 0 : index
    %47 = vector.load %arg23[%c0_41, %c0_42] : memref<18x256xf32, #tpu.memory_space<vmem>>, vector<1x256xf32>
    tpu.vector_store %arg23[%c0_41, %c0_42], %46 {strides = array<i32>} : memref<18x256xf32, #tpu.memory_space<vmem>>, vector<1x256xf32>,
    %48 = vector.extract_strided_slice %44 {offsets = [6, 0], sizes = [1, 256], strides = [1, 1]} : vector<8x256xf32> to vector<1x256xf32>
    %c9_43 = arith.constant 9 : index
    %c0_44 = arith.constant 0 : index
    %49 = vector.load %arg23[%c9_43, %c0_44] : memref<18x256xf32, #tpu.memory_space<vmem>>, vector<1x256xf32>
    tpu.vector_store %arg23[%c9_43, %c0_44], %48 {strides = array<i32>} : memref<18x256xf32, #tpu.memory_space<vmem>>, vector<1x256xf32>,
    %c0_45 = arith.constant 0 : index
    %c0_46 = arith.constant 0 : index
    %50 = vector.load %arg23[%c0_45, %c0_46] : memref<18x256xf32, #tpu.memory_space<vmem>>, vector<8x256xf32>
    %c1_47 = arith.constant 1 : index
    %c0_48 = arith.constant 0 : index
    %51 = vector.load %arg23[%c1_47, %c0_48] : memref<18x256xf32, #tpu.memory_space<vmem>>, vector<8x256xf32>
    %c2_49 = arith.constant 2 : index
    %c0_50 = arith.constant 0 : index
    %52 = vector.load %arg23[%c2_49, %c0_50] : memref<18x256xf32, #tpu.memory_space<vmem>>, vector<8x256xf32>
    %53 = tpu.concatenate %50, %51, %52 in 1 : vector<8x256xf32>, vector<8x256xf32>, vector<8x256xf32> -> vector<8x768xf32>
    %54 = arith.truncf %53 : vector<8x768xf32> to vector<8x768xbf16>
    %c0_51 = arith.constant 0 : index
    %c0_52 = arith.constant 0 : index
    %55 = vector.load %arg9[%c0_51, %c0_52] : memref<768x256xbf16, #tpu.memory_space<vmem>>, vector<768x256xbf16>
    %cst_53 = arith.constant dense<0.000000e+00> : vector<8x256xf32>
    %56 = tpu.matmul %54, %55, %cst_53 {dimension_numbers = #tpu.dot_dimension_numbers<[1], [0], [0], [1], [0, 0, 1, 1], [], []>} : vector<8x768xbf16>, vector<768x256xbf16>, vector<8x256xf32> -> vector<8x256xf32>
    %c0_54 = arith.constant 0 : index
    %c0_55 = arith.constant 0 : index
    %57 = vector.load %arg10[%c0_54, %c0_55] : memref<1x256xf32, #tpu.memory_space<vmem>>, vector<1x256xf32>
    %58 = vector.broadcast %57 : vector<1x256xf32> to vector<8x256xf32>
    %59 = arith.addf %56, %58 : vector<8x256xf32>
    %cst_56 = arith.constant 0.000000e+00 : f32
    %60 = vector.broadcast %cst_56 : f32 to vector<8x256xf32>
    %61 = arith.cmpf oge, %59, %60 : vector<8x256xf32>
    %cst_57 = arith.constant 2.000000e-01 : f32
    %62 = vector.broadcast %cst_57 : f32 to vector<8x256xf32>
    %63 = arith.mulf %59, %62 : vector<8x256xf32>
    %64 = arith.select %61, %59, %63 : vector<8x256xi1>, vector<8x256xf32>
    %c1_58 = arith.constant 1 : index
    %c0_59 = arith.constant 0 : index
    %65 = vector.load %arg23[%c1_58, %c0_59] : memref<18x256xf32, #tpu.memory_space<vmem>>, vector<8x256xf32>
    tpu.vector_store %arg23[%c1_58, %c0_59], %64 {strides = array<i32>} : memref<18x256xf32, #tpu.memory_space<vmem>>, vector<8x256xf32>,
    %66 = vector.extract_strided_slice %64 {offsets = [1, 0], sizes = [1, 256], strides = [1, 1]} : vector<8x256xf32> to vector<1x256xf32>
    %c0_60 = arith.constant 0 : index
    %c0_61 = arith.constant 0 : index
    %67 = vector.load %arg23[%c0_60, %c0_61] : memref<18x256xf32, #tpu.memory_space<vmem>>, vector<1x256xf32>
    tpu.vector_store %arg23[%c0_60, %c0_61], %66 {strides = array<i32>} : memref<18x256xf32, #tpu.memory_space<vmem>>, vector<1x256xf32>,
    %68 = vector.extract_strided_slice %64 {offsets = [6, 0], sizes = [1, 256], strides = [1, 1]} : vector<8x256xf32> to vector<1x256xf32>
    %c9_62 = arith.constant 9 : index
    %c0_63 = arith.constant 0 : index
    %69 = vector.load %arg23[%c9_62, %c0_63] : memref<18x256xf32, #tpu.memory_space<vmem>>, vector<1x256xf32>
    tpu.vector_store %arg23[%c9_62, %c0_63], %68 {strides = array<i32>} : memref<18x256xf32, #tpu.memory_space<vmem>>, vector<1x256xf32>,
    %c0_64 = arith.constant 0 : index
    %c0_65 = arith.constant 0 : index
    %70 = vector.load %arg23[%c0_64, %c0_65] : memref<18x256xf32, #tpu.memory_space<vmem>>, vector<8x256xf32>
    %c1_66 = arith.constant 1 : index
    %c0_67 = arith.constant 0 : index
    %71 = vector.load %arg23[%c1_66, %c0_67] : memref<18x256xf32, #tpu.memory_space<vmem>>, vector<8x256xf32>
    %c2_68 = arith.constant 2 : index
    %c0_69 = arith.constant 0 : index
    %72 = vector.load %arg23[%c2_68, %c0_69] : memref<18x256xf32, #tpu.memory_space<vmem>>, vector<8x256xf32>
    %73 = tpu.concatenate %70, %71, %72 in 1 : vector<8x256xf32>, vector<8x256xf32>, vector<8x256xf32> -> vector<8x768xf32>
    %74 = arith.truncf %73 : vector<8x768xf32> to vector<8x768xbf16>
    %c0_70 = arith.constant 0 : index
    %c0_71 = arith.constant 0 : index
    %75 = vector.load %arg11[%c0_70, %c0_71] : memref<768x128xbf16, #tpu.memory_space<vmem>>, vector<768x128xbf16>
    %cst_72 = arith.constant dense<0.000000e+00> : vector<8x128xf32>
    %76 = tpu.matmul %74, %75, %cst_72 {dimension_numbers = #tpu.dot_dimension_numbers<[1], [0], [0], [1], [0, 0, 1, 1], [], []>} : vector<8x768xbf16>, vector<768x128xbf16>, vector<8x128xf32> -> vector<8x128xf32>
    %c0_73 = arith.constant 0 : index
    %c0_74 = arith.constant 0 : index
    %77 = vector.load %arg12[%c0_73, %c0_74] : memref<1x128xf32, #tpu.memory_space<vmem>>, vector<1x128xf32>
    %78 = vector.broadcast %77 : vector<1x128xf32> to vector<8x128xf32>
    %79 = arith.addf %76, %78 : vector<8x128xf32>
    %80 = arith.addf %79, %1 : vector<8x128xf32>
    %c0_75 = arith.constant 0 : index
    %c0_76 = arith.constant 0 : index
    %c0_77 = arith.constant 0 : index
    %81 = vector.load %arg21[%c0_75, %c0_76, %c0_77] : memref<1x8x128xf32, #tpu.memory_space<vmem>>, vector<1x8x128xf32>
    %82 = vector.shape_cast %81 : vector<1x8x128xf32> to vector<8x128xf32>
    %83 = vector.shape_cast %80 : vector<8x128xf32> to vector<1x8x128xf32>
    tpu.vector_store %arg21[%c0_75, %c0_76, %c0_77], %83 {strides = array<i32>} : memref<1x8x128xf32, #tpu.memory_space<vmem>>, vector<1x8x128xf32>,
    %cst_78 = arith.constant 0.000000e+00 : f32
    %84 = vector.broadcast %cst_78 : f32 to vector<16x128xf32>
    %c0_79 = arith.constant 0 : index
    %c0_80 = arith.constant 0 : index
    %c0_81 = arith.constant 0 : index
    %85 = vector.load %arg4[%c0_79, %c0_80, %c0_81] : memref<8x16x1xf32, #tpu.memory_space<vmem>>, vector<1x16x1xf32>
    %86 = vector.shape_cast %85 : vector<1x16x1xf32> to vector<16x1xf32>
    %87 = vector.extract_strided_slice %80 {offsets = [0, 0], sizes = [1, 128], strides = [1, 1]} : vector<8x128xf32> to vector<1x128xf32>
    %88 = vector.broadcast %86 : vector<16x1xf32> to vector<16x128xf32>
    %89 = vector.broadcast %87 : vector<1x128xf32> to vector<16x128xf32>
    %90 = arith.mulf %88, %89 : vector<16x128xf32>
    %91 = arith.addf %84, %90 : vector<16x128xf32>
    %c1_82 = arith.constant 1 : index
    %c0_83 = arith.constant 0 : index
    %c0_84 = arith.constant 0 : index
    %92 = vector.load %arg4[%c1_82, %c0_83, %c0_84] : memref<8x16x1xf32, #tpu.memory_space<vmem>>, vector<1x16x1xf32>
    %93 = vector.shape_cast %92 : vector<1x16x1xf32> to vector<16x1xf32>
    %94 = vector.extract_strided_slice %80 {offsets = [1, 0], sizes = [1, 128], strides = [1, 1]} : vector<8x128xf32> to vector<1x128xf32>
    %95 = vector.broadcast %93 : vector<16x1xf32> to vector<16x128xf32>
    %96 = vector.broadcast %94 : vector<1x128xf32> to vector<16x128xf32>
    %97 = arith.mulf %95, %96 : vector<16x128xf32>
    %98 = arith.addf %91, %97 : vector<16x128xf32>
    %c2_85 = arith.constant 2 : index
    %c0_86 = arith.constant 0 : index
    %c0_87 = arith.constant 0 : index
    %99 = vector.load %arg4[%c2_85, %c0_86, %c0_87] : memref<8x16x1xf32, #tpu.memory_space<vmem>>, vector<1x16x1xf32>
    %100 = vector.shape_cast %99 : vector<1x16x1xf32> to vector<16x1xf32>
    %101 = vector.extract_strided_slice %80 {offsets = [2, 0], sizes = [1, 128], strides = [1, 1]} : vector<8x128xf32> to vector<1x128xf32>
    %102 = vector.broadcast %100 : vector<16x1xf32> to vector<16x128xf32>
    %103 = vector.broadcast %101 : vector<1x128xf32> to vector<16x128xf32>
    %104 = arith.mulf %102, %103 : vector<16x128xf32>
    %105 = arith.addf %98, %104 : vector<16x128xf32>
    %c3 = arith.constant 3 : index
    %c0_88 = arith.constant 0 : index
    %c0_89 = arith.constant 0 : index
    %106 = vector.load %arg4[%c3, %c0_88, %c0_89] : memref<8x16x1xf32, #tpu.memory_space<vmem>>, vector<1x16x1xf32>
    %107 = vector.shape_cast %106 : vector<1x16x1xf32> to vector<16x1xf32>
    %108 = vector.extract_strided_slice %80 {offsets = [3, 0], sizes = [1, 128], strides = [1, 1]} : vector<8x128xf32> to vector<1x128xf32>
    %109 = vector.broadcast %107 : vector<16x1xf32> to vector<16x128xf32>
    %110 = vector.broadcast %108 : vector<1x128xf32> to vector<16x128xf32>
    %111 = arith.mulf %109, %110 : vector<16x128xf32>
    %112 = arith.addf %105, %111 : vector<16x128xf32>
    %c4 = arith.constant 4 : index
    %c0_90 = arith.constant 0 : index
    %c0_91 = arith.constant 0 : index
    %113 = vector.load %arg4[%c4, %c0_90, %c0_91] : memref<8x16x1xf32, #tpu.memory_space<vmem>>, vector<1x16x1xf32>
    %114 = vector.shape_cast %113 : vector<1x16x1xf32> to vector<16x1xf32>
    %115 = vector.extract_strided_slice %80 {offsets = [4, 0], sizes = [1, 128], strides = [1, 1]} : vector<8x128xf32> to vector<1x128xf32>
    %116 = vector.broadcast %114 : vector<16x1xf32> to vector<16x128xf32>
    %117 = vector.broadcast %115 : vector<1x128xf32> to vector<16x128xf32>
    %118 = arith.mulf %116, %117 : vector<16x128xf32>
    %119 = arith.addf %112, %118 : vector<16x128xf32>
    %c5 = arith.constant 5 : index
    %c0_92 = arith.constant 0 : index
    %c0_93 = arith.constant 0 : index
    %120 = vector.load %arg4[%c5, %c0_92, %c0_93] : memref<8x16x1xf32, #tpu.memory_space<vmem>>, vector<1x16x1xf32>
    %121 = vector.shape_cast %120 : vector<1x16x1xf32> to vector<16x1xf32>
    %122 = vector.extract_strided_slice %80 {offsets = [5, 0], sizes = [1, 128], strides = [1, 1]} : vector<8x128xf32> to vector<1x128xf32>
    %123 = vector.broadcast %121 : vector<16x1xf32> to vector<16x128xf32>
    %124 = vector.broadcast %122 : vector<1x128xf32> to vector<16x128xf32>
    %125 = arith.mulf %123, %124 : vector<16x128xf32>
    %126 = arith.addf %119, %125 : vector<16x128xf32>
    %c6 = arith.constant 6 : index
    %c0_94 = arith.constant 0 : index
    %c0_95 = arith.constant 0 : index
    %127 = vector.load %arg4[%c6, %c0_94, %c0_95] : memref<8x16x1xf32, #tpu.memory_space<vmem>>, vector<1x16x1xf32>
    %128 = vector.shape_cast %127 : vector<1x16x1xf32> to vector<16x1xf32>
    %129 = vector.extract_strided_slice %80 {offsets = [6, 0], sizes = [1, 128], strides = [1, 1]} : vector<8x128xf32> to vector<1x128xf32>
    %130 = vector.broadcast %128 : vector<16x1xf32> to vector<16x128xf32>
    %131 = vector.broadcast %129 : vector<1x128xf32> to vector<16x128xf32>
    %132 = arith.mulf %130, %131 : vector<16x128xf32>
    %133 = arith.addf %126, %132 : vector<16x128xf32>
    %c7 = arith.constant 7 : index
    %c0_96 = arith.constant 0 : index
    %c0_97 = arith.constant 0 : index
    %134 = vector.load %arg4[%c7, %c0_96, %c0_97] : memref<8x16x1xf32, #tpu.memory_space<vmem>>, vector<1x16x1xf32>
    %135 = vector.shape_cast %134 : vector<1x16x1xf32> to vector<16x1xf32>
    %136 = vector.extract_strided_slice %80 {offsets = [7, 0], sizes = [1, 128], strides = [1, 1]} : vector<8x128xf32> to vector<1x128xf32>
    %137 = vector.broadcast %135 : vector<16x1xf32> to vector<16x128xf32>
    %138 = vector.broadcast %136 : vector<1x128xf32> to vector<16x128xf32>
    %139 = arith.mulf %137, %138 : vector<16x128xf32>
    %140 = arith.addf %133, %139 : vector<16x128xf32>
    %c0_98 = arith.constant 0 : index
    %c0_99 = arith.constant 0 : index
    %c0_100 = arith.constant 0 : index
    %141 = vector.load %arg3[%c0_98, %c0_99, %c0_100] : memref<1x16x128xf32, #tpu.memory_space<vmem>>, vector<1x16x128xf32>
    %142 = vector.shape_cast %141 : vector<1x16x128xf32> to vector<16x128xf32>
    %143 = arith.addf %140, %142 : vector<16x128xf32>
    %c1_101 = arith.constant 1 : index
    %c0_102 = arith.constant 0 : index
    %144 = vector.load %arg23[%c1_101, %c0_102] : memref<18x256xf32, #tpu.memory_space<vmem>>, vector<16x128xf32>
    tpu.vector_store %arg23[%c1_101, %c0_102], %143 {strides = array<i32>} : memref<18x256xf32, #tpu.memory_space<vmem>>, vector<16x128xf32>,
    %145 = vector.extract_strided_slice %143 {offsets = [1, 0], sizes = [1, 128], strides = [1, 1]} : vector<16x128xf32> to vector<1x128xf32>
    %c0_103 = arith.constant 0 : index
    %c0_104 = arith.constant 0 : index
    %146 = vector.load %arg23[%c0_103, %c0_104] : memref<18x256xf32, #tpu.memory_space<vmem>>, vector<1x128xf32>
    tpu.vector_store %arg23[%c0_103, %c0_104], %145 {strides = array<i32>} : memref<18x256xf32, #tpu.memory_space<vmem>>, vector<1x128xf32>,
    %147 = vector.extract_strided_slice %143 {offsets = [14, 0], sizes = [1, 128], strides = [1, 1]} : vector<16x128xf32> to vector<1x128xf32>
    %c17 = arith.constant 17 : index
    %c0_105 = arith.constant 0 : index
    %148 = vector.load %arg23[%c17, %c0_105] : memref<18x256xf32, #tpu.memory_space<vmem>>, vector<1x128xf32>
    tpu.vector_store %arg23[%c17, %c0_105], %147 {strides = array<i32>} : memref<18x256xf32, #tpu.memory_space<vmem>>, vector<1x128xf32>,
    %c0_106 = arith.constant 0 : index
    %c0_107 = arith.constant 0 : index
    %149 = vector.load %arg23[%c0_106, %c0_107] : memref<18x256xf32, #tpu.memory_space<vmem>>, vector<16x128xf32>
    %c1_108 = arith.constant 1 : index
    %c0_109 = arith.constant 0 : index
    %150 = vector.load %arg23[%c1_108, %c0_109] : memref<18x256xf32, #tpu.memory_space<vmem>>, vector<16x128xf32>
    %c2_110 = arith.constant 2 : index
    %c0_111 = arith.constant 0 : index
    %151 = vector.load %arg23[%c2_110, %c0_111] : memref<18x256xf32, #tpu.memory_space<vmem>>, vector<16x128xf32>
    %152 = tpu.concatenate %149, %150, %151 in 1 : vector<16x128xf32>, vector<16x128xf32>, vector<16x128xf32> -> vector<16x384xf32>
    %153 = arith.truncf %152 : vector<16x384xf32> to vector<16x384xbf16>
    %c0_112 = arith.constant 0 : index
    %c0_113 = arith.constant 0 : index
    %154 = vector.load %arg13[%c0_112, %c0_113] : memref<384x128xbf16, #tpu.memory_space<vmem>>, vector<384x128xbf16>
    %cst_114 = arith.constant dense<0.000000e+00> : vector<16x128xf32>
    %155 = tpu.matmul %153, %154, %cst_114 {dimension_numbers = #tpu.dot_dimension_numbers<[1], [0], [0], [1], [0, 0, 1, 1], [], []>} : vector<16x384xbf16>, vector<384x128xbf16>, vector<16x128xf32> -> vector<16x128xf32>
    %c0_115 = arith.constant 0 : index
    %c0_116 = arith.constant 0 : index
    %156 = vector.load %arg14[%c0_115, %c0_116] : memref<1x128xf32, #tpu.memory_space<vmem>>, vector<1x128xf32>
    %157 = vector.broadcast %156 : vector<1x128xf32> to vector<16x128xf32>
    %158 = arith.addf %155, %157 : vector<16x128xf32>
    %cst_117 = arith.constant 0.000000e+00 : f32
    %159 = vector.broadcast %cst_117 : f32 to vector<16x128xf32>
    %160 = arith.cmpf oge, %158, %159 : vector<16x128xf32>
    %cst_118 = arith.constant 2.000000e-01 : f32
    %161 = vector.broadcast %cst_118 : f32 to vector<16x128xf32>
    %162 = arith.mulf %158, %161 : vector<16x128xf32>
    %163 = arith.select %160, %158, %162 : vector<16x128xi1>, vector<16x128xf32>
    %c1_119 = arith.constant 1 : index
    %c0_120 = arith.constant 0 : index
    %164 = vector.load %arg23[%c1_119, %c0_120] : memref<18x256xf32, #tpu.memory_space<vmem>>, vector<16x128xf32>
    tpu.vector_store %arg23[%c1_119, %c0_120], %163 {strides = array<i32>} : memref<18x256xf32, #tpu.memory_space<vmem>>, vector<16x128xf32>,
    %165 = vector.extract_strided_slice %163 {offsets = [1, 0], sizes = [1, 128], strides = [1, 1]} : vector<16x128xf32> to vector<1x128xf32>
    %c0_121 = arith.constant 0 : index
    %c0_122 = arith.constant 0 : index
    %166 = vector.load %arg23[%c0_121, %c0_122] : memref<18x256xf32, #tpu.memory_space<vmem>>, vector<1x128xf32>
    tpu.vector_store %arg23[%c0_121, %c0_122], %165 {strides = array<i32>} : memref<18x256xf32, #tpu.memory_space<vmem>>, vector<1x128xf32>,
    %167 = vector.extract_strided_slice %163 {offsets = [14, 0], sizes = [1, 128], strides = [1, 1]} : vector<16x128xf32> to vector<1x128xf32>
    %c17_123 = arith.constant 17 : index
    %c0_124 = arith.constant 0 : index
    %168 = vector.load %arg23[%c17_123, %c0_124] : memref<18x256xf32, #tpu.memory_space<vmem>>, vector<1x128xf32>
    tpu.vector_store %arg23[%c17_123, %c0_124], %167 {strides = array<i32>} : memref<18x256xf32, #tpu.memory_space<vmem>>, vector<1x128xf32>,
    %c0_125 = arith.constant 0 : index
    %c0_126 = arith.constant 0 : index
    %169 = vector.load %arg23[%c0_125, %c0_126] : memref<18x256xf32, #tpu.memory_space<vmem>>, vector<16x128xf32>
    %c1_127 = arith.constant 1 : index
    %c0_128 = arith.constant 0 : index
    %170 = vector.load %arg23[%c1_127, %c0_128] : memref<18x256xf32, #tpu.memory_space<vmem>>, vector<16x128xf32>
    %c2_129 = arith.constant 2 : index
    %c0_130 = arith.constant 0 : index
    %171 = vector.load %arg23[%c2_129, %c0_130] : memref<18x256xf32, #tpu.memory_space<vmem>>, vector<16x128xf32>
    %172 = tpu.concatenate %169, %170, %171 in 1 : vector<16x128xf32>, vector<16x128xf32>, vector<16x128xf32> -> vector<16x384xf32>
    %173 = arith.truncf %172 : vector<16x384xf32> to vector<16x384xbf16>
    %c0_131 = arith.constant 0 : index
    %c0_132 = arith.constant 0 : index
    %174 = vector.load %arg15[%c0_131, %c0_132] : memref<384x256xbf16, #tpu.memory_space<vmem>>, vector<384x256xbf16>
    %cst_133 = arith.constant dense<0.000000e+00> : vector<16x256xf32>
    %175 = tpu.matmul %173, %174, %cst_133 {dimension_numbers = #tpu.dot_dimension_numbers<[1], [0], [0], [1], [0, 0, 1, 1], [], []>} : vector<16x384xbf16>, vector<384x256xbf16>, vector<16x256xf32> -> vector<16x256xf32>
    %c0_134 = arith.constant 0 : index
    %c0_135 = arith.constant 0 : index
    %176 = vector.load %arg16[%c0_134, %c0_135] : memref<1x256xf32, #tpu.memory_space<vmem>>, vector<1x256xf32>
    %177 = vector.broadcast %176 : vector<1x256xf32> to vector<16x256xf32>
    %178 = arith.addf %175, %177 : vector<16x256xf32>
    %cst_136 = arith.constant 0.000000e+00 : f32
    %179 = vector.broadcast %cst_136 : f32 to vector<16x256xf32>
    %180 = arith.cmpf oge, %178, %179 : vector<16x256xf32>
    %cst_137 = arith.constant 2.000000e-01 : f32
    %181 = vector.broadcast %cst_137 : f32 to vector<16x256xf32>
    %182 = arith.mulf %178, %181 : vector<16x256xf32>
    %183 = arith.select %180, %178, %182 : vector<16x256xi1>, vector<16x256xf32>
    %c1_138 = arith.constant 1 : index
    %c0_139 = arith.constant 0 : index
    %184 = vector.load %arg23[%c1_138, %c0_139] : memref<18x256xf32, #tpu.memory_space<vmem>>, vector<16x256xf32>
    tpu.vector_store %arg23[%c1_138, %c0_139], %183 {strides = array<i32>} : memref<18x256xf32, #tpu.memory_space<vmem>>, vector<16x256xf32>,
    %185 = vector.extract_strided_slice %183 {offsets = [1, 0], sizes = [1, 256], strides = [1, 1]} : vector<16x256xf32> to vector<1x256xf32>
    %c0_140 = arith.constant 0 : index
    %c0_141 = arith.constant 0 : index
    %186 = vector.load %arg23[%c0_140, %c0_141] : memref<18x256xf32, #tpu.memory_space<vmem>>, vector<1x256xf32>
    tpu.vector_store %arg23[%c0_140, %c0_141], %185 {strides = array<i32>} : memref<18x256xf32, #tpu.memory_space<vmem>>, vector<1x256xf32>,
    %187 = vector.extract_strided_slice %183 {offsets = [14, 0], sizes = [1, 256], strides = [1, 1]} : vector<16x256xf32> to vector<1x256xf32>
    %c17_142 = arith.constant 17 : index
    %c0_143 = arith.constant 0 : index
    %188 = vector.load %arg23[%c17_142, %c0_143] : memref<18x256xf32, #tpu.memory_space<vmem>>, vector<1x256xf32>
    tpu.vector_store %arg23[%c17_142, %c0_143], %187 {strides = array<i32>} : memref<18x256xf32, #tpu.memory_space<vmem>>, vector<1x256xf32>,
    %c0_144 = arith.constant 0 : index
    %c0_145 = arith.constant 0 : index
    %189 = vector.load %arg23[%c0_144, %c0_145] : memref<18x256xf32, #tpu.memory_space<vmem>>, vector<16x256xf32>
    %c1_146 = arith.constant 1 : index
    %c0_147 = arith.constant 0 : index
    %190 = vector.load %arg23[%c1_146, %c0_147] : memref<18x256xf32, #tpu.memory_space<vmem>>, vector<16x256xf32>
    %c2_148 = arith.constant 2 : index
    %c0_149 = arith.constant 0 : index
    %191 = vector.load %arg23[%c2_148, %c0_149] : memref<18x256xf32, #tpu.memory_space<vmem>>, vector<16x256xf32>
    %192 = tpu.concatenate %189, %190, %191 in 1 : vector<16x256xf32>, vector<16x256xf32>, vector<16x256xf32> -> vector<16x768xf32>
    %193 = arith.truncf %192 : vector<16x768xf32> to vector<16x768xbf16>
    %c0_150 = arith.constant 0 : index
    %c0_151 = arith.constant 0 : index
    %194 = vector.load %arg17[%c0_150, %c0_151] : memref<768x256xbf16, #tpu.memory_space<vmem>>, vector<768x256xbf16>
    %cst_152 = arith.constant dense<0.000000e+00> : vector<16x256xf32>
    %195 = tpu.matmul %193, %194, %cst_152 {dimension_numbers = #tpu.dot_dimension_numbers<[1], [0], [0], [1], [0, 0, 1, 1], [], []>} : vector<16x768xbf16>, vector<768x256xbf16>, vector<16x256xf32> -> vector<16x256xf32>
    %c0_153 = arith.constant 0 : index
    %c0_154 = arith.constant 0 : index
    %196 = vector.load %arg18[%c0_153, %c0_154] : memref<1x256xf32, #tpu.memory_space<vmem>>, vector<1x256xf32>
    %197 = vector.broadcast %196 : vector<1x256xf32> to vector<16x256xf32>
    %198 = arith.addf %195, %197 : vector<16x256xf32>
    %cst_155 = arith.constant 0.000000e+00 : f32
    %199 = vector.broadcast %cst_155 : f32 to vector<16x256xf32>
    %200 = arith.cmpf oge, %198, %199 : vector<16x256xf32>
    %cst_156 = arith.constant 2.000000e-01 : f32
    %201 = vector.broadcast %cst_156 : f32 to vector<16x256xf32>
    %202 = arith.mulf %198, %201 : vector<16x256xf32>
    %203 = arith.select %200, %198, %202 : vector<16x256xi1>, vector<16x256xf32>
    %c1_157 = arith.constant 1 : index
    %c0_158 = arith.constant 0 : index
    %204 = vector.load %arg23[%c1_157, %c0_158] : memref<18x256xf32, #tpu.memory_space<vmem>>, vector<16x256xf32>
    tpu.vector_store %arg23[%c1_157, %c0_158], %203 {strides = array<i32>} : memref<18x256xf32, #tpu.memory_space<vmem>>, vector<16x256xf32>,
    %205 = vector.extract_strided_slice %203 {offsets = [1, 0], sizes = [1, 256], strides = [1, 1]} : vector<16x256xf32> to vector<1x256xf32>
    %c0_159 = arith.constant 0 : index
    %c0_160 = arith.constant 0 : index
    %206 = vector.load %arg23[%c0_159, %c0_160] : memref<18x256xf32, #tpu.memory_space<vmem>>, vector<1x256xf32>
    tpu.vector_store %arg23[%c0_159, %c0_160], %205 {strides = array<i32>} : memref<18x256xf32, #tpu.memory_space<vmem>>, vector<1x256xf32>,
    %207 = vector.extract_strided_slice %203 {offsets = [14, 0], sizes = [1, 256], strides = [1, 1]} : vector<16x256xf32> to vector<1x256xf32>
    %c17_161 = arith.constant 17 : index
    %c0_162 = arith.constant 0 : index
    %208 = vector.load %arg23[%c17_161, %c0_162] : memref<18x256xf32, #tpu.memory_space<vmem>>, vector<1x256xf32>
    tpu.vector_store %arg23[%c17_161, %c0_162], %207 {strides = array<i32>} : memref<18x256xf32, #tpu.memory_space<vmem>>, vector<1x256xf32>,
    %c0_163 = arith.constant 0 : index
    %c0_164 = arith.constant 0 : index
    %209 = vector.load %arg23[%c0_163, %c0_164] : memref<18x256xf32, #tpu.memory_space<vmem>>, vector<16x256xf32>
    %c1_165 = arith.constant 1 : index
    %c0_166 = arith.constant 0 : index
    %210 = vector.load %arg23[%c1_165, %c0_166] : memref<18x256xf32, #tpu.memory_space<vmem>>, vector<16x256xf32>
    %c2_167 = arith.constant 2 : index
    %c0_168 = arith.constant 0 : index
    %211 = vector.load %arg23[%c2_167, %c0_168] : memref<18x256xf32, #tpu.memory_space<vmem>>, vector<16x256xf32>
    %212 = tpu.concatenate %209, %210, %211 in 1 : vector<16x256xf32>, vector<16x256xf32>, vector<16x256xf32> -> vector<16x768xf32>
    %213 = arith.truncf %212 : vector<16x768xf32> to vector<16x768xbf16>
    %c0_169 = arith.constant 0 : index
    %c0_170 = arith.constant 0 : index
    %214 = vector.load %arg19[%c0_169, %c0_170] : memref<768x128xbf16, #tpu.memory_space<vmem>>, vector<768x128xbf16>
    %cst_171 = arith.constant dense<0.000000e+00> : vector<16x128xf32>
    %215 = tpu.matmul %213, %214, %cst_171 {dimension_numbers = #tpu.dot_dimension_numbers<[1], [0], [0], [1], [0, 0, 1, 1], [], []>} : vector<16x768xbf16>, vector<768x128xbf16>, vector<16x128xf32> -> vector<16x128xf32>
    %c0_172 = arith.constant 0 : index
    %c0_173 = arith.constant 0 : index
    %216 = vector.load %arg20[%c0_172, %c0_173] : memref<1x128xf32, #tpu.memory_space<vmem>>, vector<1x128xf32>
    %217 = vector.broadcast %216 : vector<1x128xf32> to vector<16x128xf32>
    %218 = arith.addf %215, %217 : vector<16x128xf32>
    %219 = arith.addf %218, %140 : vector<16x128xf32>
    %c0_174 = arith.constant 0 : index
    %c0_175 = arith.constant 0 : index
    %c0_176 = arith.constant 0 : index
    %220 = vector.load %arg22[%c0_174, %c0_175, %c0_176] : memref<1x16x128xf32, #tpu.memory_space<vmem>>, vector<1x16x128xf32>
    %221 = vector.shape_cast %220 : vector<1x16x128xf32> to vector<16x128xf32>
    %222 = vector.shape_cast %219 : vector<16x128xf32> to vector<1x16x128xf32>
    tpu.vector_store %arg22[%c0_174, %c0_175, %c0_176], %222 {strides = array<i32>} : memref<1x16x128xf32, #tpu.memory_space<vmem>>, vector<1x16x128xf32>,
    return
  }
  func.func @transform_0(%arg0: i32) -> (i32, i32, i32) {
    %c0_i32 = arith.constant 0 : i32
    %c0_i32_0 = arith.constant 0 : i32
    %c0_i32_1 = arith.constant 0 : i32
    return %arg0, %c0_i32, %c0_i32_0 : i32, i32, i32
  }
  func.func @transform_1(%arg0: i32) -> (i32, i32, i32) {
    %c0_i32 = arith.constant 0 : i32
    %c0_i32_0 = arith.constant 0 : i32
    %c0_i32_1 = arith.constant 0 : i32
    return %arg0, %c0_i32, %c0_i32_0 : i32, i32, i32
  }
  func.func @transform_2(%arg0: i32) -> (i32, i32, i32) {
    %c0_i32 = arith.constant 0 : i32
    %c0_i32_0 = arith.constant 0 : i32
    %c0_i32_1 = arith.constant 0 : i32
    return %arg0, %c0_i32, %c0_i32_0 : i32, i32, i32
  }
  func.func @transform_3(%arg0: i32) -> (i32, i32, i32) {
    %c0_i32 = arith.constant 0 : i32
    %c0_i32_0 = arith.constant 0 : i32
    %c0_i32_1 = arith.constant 0 : i32
    %c0_i32_2 = arith.constant 0 : i32
    return %c0_i32, %c0_i32_0, %c0_i32_1 : i32, i32, i32
  }
  func.func @transform_4(%arg0: i32) -> (i32, i32) {
    %c0_i32 = arith.constant 0 : i32
    %c0_i32_0 = arith.constant 0 : i32
    %c0_i32_1 = arith.constant 0 : i32
    return %c0_i32, %c0_i32_0 : i32, i32
  }
  func.func @transform_5(%arg0: i32) -> (i32, i32) {
    %c0_i32 = arith.constant 0 : i32
    %c0_i32_0 = arith.constant 0 : i32
    %c0_i32_1 = arith.constant 0 : i32
    return %c0_i32, %c0_i32_0 : i32, i32
  }
  func.func @transform_6(%arg0: i32) -> (i32, i32) {
    %c0_i32 = arith.constant 0 : i32
    %c0_i32_0 = arith.constant 0 : i32
    %c0_i32_1 = arith.constant 0 : i32
    return %c0_i32, %c0_i32_0 : i32, i32
  }
  func.func @transform_7(%arg0: i32) -> (i32, i32) {
    %c0_i32 = arith.constant 0 : i32
    %c0_i32_0 = arith.constant 0 : i32
    %c0_i32_1 = arith.constant 0 : i32
    return %c0_i32, %c0_i32_0 : i32, i32
  }
  func.func @transform_8(%arg0: i32) -> (i32, i32) {
    %c0_i32 = arith.constant 0 : i32
    %c0_i32_0 = arith.constant 0 : i32
    %c0_i32_1 = arith.constant 0 : i32
    return %c0_i32, %c0_i32_0 : i32, i32
  }
  func.func @transform_9(%arg0: i32) -> (i32, i32) {
    %c0_i32 = arith.constant 0 : i32
    %c0_i32_0 = arith.constant 0 : i32
    %c0_i32_1 = arith.constant 0 : i32
    return %c0_i32, %c0_i32_0 : i32, i32
  }
  func.func @transform_10(%arg0: i32) -> (i32, i32) {
    %c0_i32 = arith.constant 0 : i32
    %c0_i32_0 = arith.constant 0 : i32
    %c0_i32_1 = arith.constant 0 : i32
    return %c0_i32, %c0_i32_0 : i32, i32
  }
  func.func @transform_11(%arg0: i32) -> (i32, i32) {
    %c0_i32 = arith.constant 0 : i32
    %c0_i32_0 = arith.constant 0 : i32
    %c0_i32_1 = arith.constant 0 : i32
    return %c0_i32, %c0_i32_0 : i32, i32
  }
  func.func @transform_12(%arg0: i32) -> (i32, i32) {
    %c0_i32 = arith.constant 0 : i32
    %c0_i32_0 = arith.constant 0 : i32
    %c0_i32_1 = arith.constant 0 : i32
    return %c0_i32, %c0_i32_0 : i32, i32
  }
  func.func @transform_13(%arg0: i32) -> (i32, i32) {
    %c0_i32 = arith.constant 0 : i32
    %c0_i32_0 = arith.constant 0 : i32
    %c0_i32_1 = arith.constant 0 : i32
    return %c0_i32, %c0_i32_0 : i32, i32
  }
  func.func @transform_14(%arg0: i32) -> (i32, i32) {
    %c0_i32 = arith.constant 0 : i32
    %c0_i32_0 = arith.constant 0 : i32
    %c0_i32_1 = arith.constant 0 : i32
    return %c0_i32, %c0_i32_0 : i32, i32
  }
  func.func @transform_15(%arg0: i32) -> (i32, i32) {
    %c0_i32 = arith.constant 0 : i32
    %c0_i32_0 = arith.constant 0 : i32
    %c0_i32_1 = arith.constant 0 : i32
    return %c0_i32, %c0_i32_0 : i32, i32
  }
  func.func @transform_16(%arg0: i32) -> (i32, i32) {
    %c0_i32 = arith.constant 0 : i32
    %c0_i32_0 = arith.constant 0 : i32
    %c0_i32_1 = arith.constant 0 : i32
    return %c0_i32, %c0_i32_0 : i32, i32
  }
  func.func @transform_17(%arg0: i32) -> (i32, i32) {
    %c0_i32 = arith.constant 0 : i32
    %c0_i32_0 = arith.constant 0 : i32
    %c0_i32_1 = arith.constant 0 : i32
    return %c0_i32, %c0_i32_0 : i32, i32
  }
  func.func @transform_18(%arg0: i32) -> (i32, i32) {
    %c0_i32 = arith.constant 0 : i32
    %c0_i32_0 = arith.constant 0 : i32
    %c0_i32_1 = arith.constant 0 : i32
    return %c0_i32, %c0_i32_0 : i32, i32
  }
  func.func @transform_19(%arg0: i32) -> (i32, i32) {
    %c0_i32 = arith.constant 0 : i32
    %c0_i32_0 = arith.constant 0 : i32
    %c0_i32_1 = arith.constant 0 : i32
    return %c0_i32, %c0_i32_0 : i32, i32
  }
  func.func @transform_20(%arg0: i32) -> (i32, i32, i32) {
    %c0_i32 = arith.constant 0 : i32
    %c0_i32_0 = arith.constant 0 : i32
    %c0_i32_1 = arith.constant 0 : i32
    return %arg0, %c0_i32, %c0_i32_0 : i32, i32, i32
  }
  func.func @transform_21(%arg0: i32) -> (i32, i32, i32) {
    %c0_i32 = arith.constant 0 : i32
    %c0_i32_0 = arith.constant 0 : i32
    %c0_i32_1 = arith.constant 0 : i32
    return %arg0, %c0_i32, %c0_i32_0 : i32, i32, i32
  }
}

</mosaic_0001>

<llo_original>
// kernel: generator_forward.1
$region0: #{generator_forward.1}
  #allocation0 [shape = 'u32[]', space=smem, size = 0x4, offset = 0x4, fixed_abs, tag = 'smem constant byte address 0x4 - core index']
  #allocation1 [shape = 'u32[72,128]{1,0:T(1,128)}', space=vmem, size = 0x9000, scoped, tag = 'internal scratch']
  #allocation2 [shape = 'f32[18,256]{1,0:T(8,128)}', space=vmem, size = 0x6000, scoped, tag = 'scratch operand']
  %s0 = inlined_call_operand.vmem [shape: f32[2,8,128], index: 0, kind: input, shape index: {}]
  %s1 = inlined_call_operand.vmem [shape: f32[2,8,128], index: 1, kind: input, shape index: {}]
  %s2 = inlined_call_operand.vmem [shape: f32[2,16,128], index: 2, kind: input, shape index: {}]
  %s3 = inlined_call_operand.vmem [shape: f32[8,16,1], index: 3, kind: input, shape index: {}]
  %s4 = inlined_call_operand.vmem [shape: bf16[384,128], index: 4, kind: input, shape index: {}]
  %s5 = inlined_call_operand.vmem [shape: f32[1,128], index: 5, kind: input, shape index: {}]
  %s6 = inlined_call_operand.hbm [shape: bf16[384,256], index: 6, kind: input, shape index: {}]
  %s7 = inlined_call_operand.vmem [shape: f32[1,256], index: 7, kind: input, shape index: {}]
  %s8 = inlined_call_operand.hbm [shape: bf16[768,256], index: 8, kind: input, shape index: {}]
  %s9 = inlined_call_operand.vmem [shape: f32[1,256], index: 9, kind: input, shape index: {}]
  %s10 = inlined_call_operand.hbm [shape: bf16[768,128], index: 10, kind: input, shape index: {}]
  %s11 = inlined_call_operand.vmem [shape: f32[1,128], index: 11, kind: input, shape index: {}]
  %s12 = inlined_call_operand.hbm [shape: bf16[384,128], index: 12, kind: input, shape index: {}]
  %s13 = inlined_call_operand.vmem [shape: f32[1,128], index: 13, kind: input, shape index: {}]
  %s14 = inlined_call_operand.hbm [shape: bf16[384,256], index: 14, kind: input, shape index: {}]
  %s15 = inlined_call_operand.vmem [shape: f32[1,256], index: 15, kind: input, shape index: {}]
  %s16 = inlined_call_operand.hbm [shape: bf16[768,256], index: 16, kind: input, shape index: {}]
  %s17 = inlined_call_operand.vmem [shape: f32[1,256], index: 17, kind: input, shape index: {}]
  %s18 = inlined_call_operand.hbm [shape: bf16[768,128], index: 18, kind: input, shape index: {}]
  %s19 = inlined_call_operand.vmem [shape: f32[1,128], index: 19, kind: input, shape index: {}]
  %s20 = inlined_call_operand.vmem [shape: f32[2,8,128], index: 20, kind: output, shape index: {0}]
  %s21 = inlined_call_operand.vmem [shape: f32[2,16,128], index: 21, kind: output, shape index: {1}]
  %22 = xla_tuple %s20, %s21
  %s23 = sld [smem:[#allocation0]]
  $region149: #{generator_forward.1} parent=0
    _
  %s25 = ssub.s32 1, %s23
  %s26 = scalar_select 0, %s25, %s23
  $region1: #{generator_forward.1} parent=0
    #allocation3 [shape = 'u8[196608]{0}', space=vmem, size = 0x30000, scoped, tag = 'input window, operand 6, single buffered']
    #allocation4 [shape = 's32[2]{0}', space=sflag, size = 0x8, scoped, tag = 'scoped memory for generator_forward.1']
    #allocation5 [shape = 'u8[393216]{0}', space=vmem, size = 0x60000, scoped, tag = 'input window, operand 8, single buffered']
    #allocation6 [shape = 's32[1]{0}', space=sflag, size = 0x4, scoped, tag = 'scoped memory for generator_forward.1']
    #allocation7 [shape = 'u8[196608]{0}', space=vmem, size = 0x30000, scoped, tag = 'input window, operand 10, single buffered']
    #allocation8 [shape = 'u8[98304]{0}', space=vmem, size = 0x18000, scoped, tag = 'input window, operand 12, single buffered']
    #allocation9 [shape = 's32[1]{0}', space=sflag, size = 0x4, scoped, tag = 'scoped memory for generator_forward.1']
    #allocation10 [shape = 'u8[196608]{0}', space=vmem, size = 0x30000, scoped, tag = 'input window, operand 14, single buffered']
    #allocation11 [shape = 'u8[393216]{0}', space=vmem, size = 0x60000, scoped, tag = 'input window, operand 16, single buffered']
    #allocation12 [shape = 's32[1]{0}', space=sflag, size = 0x4, scoped, tag = 'scoped memory for generator_forward.1']
    #allocation13 [shape = 'u8[196608]{0}', space=vmem, size = 0x30000, scoped, tag = 'input window, operand 18, single buffered']
    %27 = vsyncpa [#allocation4], 0
    %28 = vsyncpa [#allocation6], 0
    %29 = vsyncpa [#allocation9], 0
    %30 = vsyncpa [#allocation12], 0
    loop: start=0, step=1, limit=4
    $region2: #{generator_forward.1} parent=1 // loop_pre_header
      _
    $region3: #{generator_forward.1} parent=1 // loop_header
      %s32 = sphi 0, %s36
      %p33 = scmp.ge.s32.totalorder %s32, 4
      %s42 = sphi 0, %s44
      %s45 = sphi 0, %s42
      %s46 = sphi 0, %s45
      %s62 = sphi 0, %s46
      %s68 = sphi 0, %s70
      %s71 = sphi 0, %s68
      %s72 = sphi 0, %s71
      %s88 = sphi 0, %s72
      %s94 = sphi 0, %s96
      %s97 = sphi 0, %s94
      %s98 = sphi 0, %s97
      %s114 = sphi 0, %s98
      %s118 = sphi 0, %s118
      %s120 = sphi 0, %s118
      %s121 = sphi 0, %s120
      %s135 = sphi 0, %s121
      %s139 = sphi 0, %s139
      %s141 = sphi 0, %s139
      %s142 = sphi 0, %s141
      %s156 = sphi 0, %s142
      %s160 = sphi 0, %s160
      %s162 = sphi 0, %s160
      %s163 = sphi 0, %s162
      %s177 = sphi 0, %s163
      %s181 = sphi 0, %s181
      %s183 = sphi 0, %s181
      %s184 = sphi 0, %s183
      %s198 = sphi 0, %s184
      %s202 = sphi 0, %s202
      %s204 = sphi 0, %s202
      %s205 = sphi 0, %s204
      %s219 = sphi 0, %s205
      %s223 = sphi 0, %s223
      %s225 = sphi 0, %s223
      %s226 = sphi 0, %s225
      %s240 = sphi 0, %s226
      %s244 = sphi 0, %s244
      %s246 = sphi 0, %s244
      %s247 = sphi 0, %s246
      %s261 = sphi 0, %s247
      %s265 = sphi 0, %s265
      %s267 = sphi 0, %s265
      %s268 = sphi 0, %s267
      %s282 = sphi 0, %s268
      %s286 = sphi 0, %s286
      %s288 = sphi 0, %s286
      %s289 = sphi 0, %s288
      %s303 = sphi 0, %s289
      %s307 = sphi 0, %s307
      %s309 = sphi 0, %s307
      %s310 = sphi 0, %s309
      %s324 = sphi 0, %s310
      %s328 = sphi 0, %s328
      %s330 = sphi 0, %s328
      %s331 = sphi 0, %s330
      %s345 = sphi 0, %s331
      %s349 = sphi 0, %s349
      %s351 = sphi 0, %s349
      %s352 = sphi 0, %s351
      %s366 = sphi 0, %s352
      %s370 = sphi 0, %s370
      %s372 = sphi 0, %s370
      %s373 = sphi 0, %s372
      %s387 = sphi 0, %s373
      %s391 = sphi 0, %s391
      %s393 = sphi 0, %s391
      %s394 = sphi 0, %s393
      %s408 = sphi 0, %s394
      %s412 = sphi 0, %s412
      %s414 = sphi 0, %s412
      %s415 = sphi 0, %s414
      %s429 = sphi 0, %s415
      %s433 = sphi 0, %s433
      %s435 = sphi 0, %s433
      %s436 = sphi 0, %s435
      %s450 = sphi 0, %s436
      %s454 = sphi 0, %s454
      %s456 = sphi 0, %s454
      %s457 = sphi 0, %s456
      %s471 = sphi 0, %s457
      %s477 = sphi 0, %s479
      %s480 = sphi 0, %s477
      %s481 = sphi 0, %s480
      %s497 = sphi 0, %s481
      %s503 = sphi 0, %s505
      %s506 = sphi 0, %s503
      %s507 = sphi 0, %s506
      %s523 = sphi 0, %s507
    $region4: #{generator_forward.1} parent=1 // loop_header_branch
      %35 = sbr.rel (%p33) target = $region8
    $region5: #{generator_forward.1} parent=1 // loop_body
      %s37 = ssub.s32 %s32, 1
      %s38 = ssub.s32 %s32, 2
      %s39 = sadd.s32 %s32, 1
      %s40 = ssub.s32 %s32, %s39
      %p41 = scmp.eq.s32.totalorder %s40, 0
      %s43 = sadd.s32 %s42, 1
      %s44 = scalar_select %p41, %s42, %s43
      %p47 = pneg %p41
      %p48 = scmp.eq.s32.totalorder %s32, 1
      %p49 = por %p47, %p48
      %p50 = scmp.ne.s32.totalorder %s42, %s45
      %p51 = scmp.eq.s32.totalorder %s32, 0
      %p52 = por %p50, %p51
      %p53 = scmp.ne.s32.totalorder %s42, %s45
      %p54 = scmp.eq.s32.totalorder %s37, 1
      %p55 = por %p53, %p54
      %p56 = scmp.ne.s32.totalorder %s45, %s46
      %p57 = scmp.eq.s32.totalorder %s37, 0
      %p58 = por %p56, %p57
      %p59 = scmp.ne.s32.totalorder %s45, %s46
      %p60 = scmp.eq.s32.totalorder %s38, 1
      %p61 = por %p59, %p60
      %p63 = scmp.ne.s32.totalorder %s46, %s62
      %p64 = scmp.eq.s32.totalorder %s38, 0
      %p65 = por %p63, %p64
      %s66 = ssub.s32 %s32, %s39
      %p67 = scmp.eq.s32.totalorder %s66, 0
      %s69 = sadd.s32 %s68, 1
      %s70 = scalar_select %p67, %s68, %s69
      %p73 = pneg %p67
      %p74 = scmp.eq.s32.totalorder %s32, 1
      %p75 = por %p73, %p74
      %p76 = scmp.ne.s32.totalorder %s68, %s71
      %p77 = scmp.eq.s32.totalorder %s32, 0
      %p78 = por %p76, %p77
      %p79 = scmp.ne.s32.totalorder %s68, %s71
      %p80 = scmp.eq.s32.totalorder %s37, 1
      %p81 = por %p79, %p80
      %p82 = scmp.ne.s32.totalorder %s71, %s72
      %p83 = scmp.eq.s32.totalorder %s37, 0
      %p84 = por %p82, %p83
      %p85 = scmp.ne.s32.totalorder %s71, %s72
      %p86 = scmp.eq.s32.totalorder %s38, 1
      %p87 = por %p85, %p86
      %p89 = scmp.ne.s32.totalorder %s72, %s88
      %p90 = scmp.eq.s32.totalorder %s38, 0
      %p91 = por %p89, %p90
      %s92 = ssub.s32 %s32, %s39
      %p93 = scmp.eq.s32.totalorder %s92, 0
      %s95 = sadd.s32 %s94, 1
      %s96 = scalar_select %p93, %s94, %s95
      %p99 = pneg %p93
      %p100 = scmp.eq.s32.totalorder %s32, 1
      %p101 = por %p99, %p100
      %p102 = scmp.ne.s32.totalorder %s94, %s97
      %p103 = scmp.eq.s32.totalorder %s32, 0
      %p104 = por %p102, %p103
      %p105 = scmp.ne.s32.totalorder %s94, %s97
      %p106 = scmp.eq.s32.totalorder %s37, 1
      %p107 = por %p105, %p106
      %p108 = scmp.ne.s32.totalorder %s97, %s98
      %p109 = scmp.eq.s32.totalorder %s37, 0
      %p110 = por %p108, %p109
      %p111 = scmp.ne.s32.totalorder %s97, %s98
      %p112 = scmp.eq.s32.totalorder %s38, 1
      %p113 = por %p111, %p112
      %p115 = scmp.ne.s32.totalorder %s98, %s114
      %p116 = scmp.eq.s32.totalorder %s38, 0
      %p117 = por %p115, %p116
      %s119 = sadd.s32 %s118, 1
      %p122 = scmp.eq.s32.totalorder %s32, 1
      %p123 = scmp.ne.s32.totalorder %s118, %s120
      %p124 = scmp.eq.s32.totalorder %s32, 0
      %p125 = por %p123, %p124
      %p126 = scmp.ne.s32.totalorder %s118, %s120
      %p127 = scmp.eq.s32.totalorder %s37, 1
      %p128 = por %p126, %p127
      %p129 = scmp.ne.s32.totalorder %s120, %s121
      %p130 = scmp.eq.s32.totalorder %s37, 0
      %p131 = por %p129, %p130
      %p132 = scmp.ne.s32.totalorder %s120, %s121
      %p133 = scmp.eq.s32.totalorder %s38, 1
      %p134 = por %p132, %p133
      %p136 = scmp.ne.s32.totalorder %s121, %s135
      %p137 = scmp.eq.s32.totalorder %s38, 0
      %p138 = por %p136, %p137
      %s140 = sadd.s32 %s139, 1
      %p143 = scmp.eq.s32.totalorder %s32, 1
      %p144 = scmp.ne.s32.totalorder %s139, %s141
      %p145 = scmp.eq.s32.totalorder %s32, 0
      %p146 = por %p144, %p145
      %p147 = scmp.ne.s32.totalorder %s139, %s141
      %p148 = scmp.eq.s32.totalorder %s37, 1
      %p149 = por %p147, %p148
      %p150 = scmp.ne.s32.totalorder %s141, %s142
      %p151 = scmp.eq.s32.totalorder %s37, 0
      %p152 = por %p150, %p151
      %p153 = scmp.ne.s32.totalorder %s141, %s142
      %p154 = scmp.eq.s32.totalorder %s38, 1
      %p155 = por %p153, %p154
      %p157 = scmp.ne.s32.totalorder %s142, %s156
      %p158 = scmp.eq.s32.totalorder %s38, 0
      %p159 = por %p157, %p158
      %s161 = sadd.s32 %s160, 1
      %p164 = scmp.eq.s32.totalorder %s32, 1
      %p165 = scmp.ne.s32.totalorder %s160, %s162
      %p166 = scmp.eq.s32.totalorder %s32, 0
      %p167 = por %p165, %p166
      %p168 = scmp.ne.s32.totalorder %s160, %s162
      %p169 = scmp.eq.s32.totalorder %s37, 1
      %p170 = por %p168, %p169
      %p171 = scmp.ne.s32.totalorder %s162, %s163
      %p172 = scmp.eq.s32.totalorder %s37, 0
      %p173 = por %p171, %p172
      %p174 = scmp.ne.s32.totalorder %s162, %s163
      %p175 = scmp.eq.s32.totalorder %s38, 1
      %p176 = por %p174, %p175
      %p178 = scmp.ne.s32.totalorder %s163, %s177
      %p179 = scmp.eq.s32.totalorder %s38, 0
      %p180 = por %p178, %p179
      %s182 = sadd.s32 %s181, 1
      %p185 = scmp.eq.s32.totalorder %s32, 1
      %p186 = scmp.ne.s32.totalorder %s181, %s183
      %p187 = scmp.eq.s32.totalorder %s32, 0
      %p188 = por %p186, %p187
      %p189 = scmp.ne.s32.totalorder %s181, %s183
      %p190 = scmp.eq.s32.totalorder %s37, 1
      %p191 = por %p189, %p190
      %p192 = scmp.ne.s32.totalorder %s183, %s184
      %p193 = scmp.eq.s32.totalorder %s37, 0
      %p194 = por %p192, %p193
      %p195 = scmp.ne.s32.totalorder %s183, %s184
      %p196 = scmp.eq.s32.totalorder %s38, 1
      %p197 = por %p195, %p196
      %p199 = scmp.ne.s32.totalorder %s184, %s198
      %p200 = scmp.eq.s32.totalorder %s38, 0
      %p201 = por %p199, %p200
      %s203 = sadd.s32 %s202, 1
      %p206 = scmp.eq.s32.totalorder %s32, 1
      %p207 = scmp.ne.s32.totalorder %s202, %s204
      %p208 = scmp.eq.s32.totalorder %s32, 0
      %p209 = por %p207, %p208
      %p210 = scmp.ne.s32.totalorder %s202, %s204
      %p211 = scmp.eq.s32.totalorder %s37, 1
      %p212 = por %p210, %p211
      %p213 = scmp.ne.s32.totalorder %s204, %s205
      %p214 = scmp.eq.s32.totalorder %s37, 0
      %p215 = por %p213, %p214
      %p216 = scmp.ne.s32.totalorder %s204, %s205
      %p217 = scmp.eq.s32.totalorder %s38, 1
      %p218 = por %p216, %p217
      %p220 = scmp.ne.s32.totalorder %s205, %s219
      %p221 = scmp.eq.s32.totalorder %s38, 0
      %p222 = por %p220, %p221
      %s224 = sadd.s32 %s223, 1
      %p227 = scmp.eq.s32.totalorder %s32, 1
      %p228 = scmp.ne.s32.totalorder %s223, %s225
      %p229 = scmp.eq.s32.totalorder %s32, 0
      %p230 = por %p228, %p229
      %p231 = scmp.ne.s32.totalorder %s223, %s225
      %p232 = scmp.eq.s32.totalorder %s37, 1
      %p233 = por %p231, %p232
      %p234 = scmp.ne.s32.totalorder %s225, %s226
      %p235 = scmp.eq.s32.totalorder %s37, 0
      %p236 = por %p234, %p235
      %p237 = scmp.ne.s32.totalorder %s225, %s226
      %p238 = scmp.eq.s32.totalorder %s38, 1
      %p239 = por %p237, %p238
      %p241 = scmp.ne.s32.totalorder %s226, %s240
      %p242 = scmp.eq.s32.totalorder %s38, 0
      %p243 = por %p241, %p242
      %s245 = sadd.s32 %s244, 1
      %p248 = scmp.eq.s32.totalorder %s32, 1
      %p249 = scmp.ne.s32.totalorder %s244, %s246
      %p250 = scmp.eq.s32.totalorder %s32, 0
      %p251 = por %p249, %p250
      %p252 = scmp.ne.s32.totalorder %s244, %s246
      %p253 = scmp.eq.s32.totalorder %s37, 1
      %p254 = por %p252, %p253
      %p255 = scmp.ne.s32.totalorder %s246, %s247
      %p256 = scmp.eq.s32.totalorder %s37, 0
      %p257 = por %p255, %p256
      %p258 = scmp.ne.s32.totalorder %s246, %s247
      %p259 = scmp.eq.s32.totalorder %s38, 1
      %p260 = por %p258, %p259
      %p262 = scmp.ne.s32.totalorder %s247, %s261
      %p263 = scmp.eq.s32.totalorder %s38, 0
      %p264 = por %p262, %p263
      %s266 = sadd.s32 %s265, 1
      %p269 = scmp.eq.s32.totalorder %s32, 1
      %p270 = scmp.ne.s32.totalorder %s265, %s267
      %p271 = scmp.eq.s32.totalorder %s32, 0
      %p272 = por %p270, %p271
      %p273 = scmp.ne.s32.totalorder %s265, %s267
      %p274 = scmp.eq.s32.totalorder %s37, 1
      %p275 = por %p273, %p274
      %p276 = scmp.ne.s32.totalorder %s267, %s268
      %p277 = scmp.eq.s32.totalorder %s37, 0
      %p278 = por %p276, %p277
      %p279 = scmp.ne.s32.totalorder %s267, %s268
      %p280 = scmp.eq.s32.totalorder %s38, 1
      %p281 = por %p279, %p280
      %p283 = scmp.ne.s32.totalorder %s268, %s282
      %p284 = scmp.eq.s32.totalorder %s38, 0
      %p285 = por %p283, %p284
      %s287 = sadd.s32 %s286, 1
      %p290 = scmp.eq.s32.totalorder %s32, 1
      %p291 = scmp.ne.s32.totalorder %s286, %s288
      %p292 = scmp.eq.s32.totalorder %s32, 0
      %p293 = por %p291, %p292
      %p294 = scmp.ne.s32.totalorder %s286, %s288
      %p295 = scmp.eq.s32.totalorder %s37, 1
      %p296 = por %p294, %p295
      %p297 = scmp.ne.s32.totalorder %s288, %s289
      %p298 = scmp.eq.s32.totalorder %s37, 0
      %p299 = por %p297, %p298
      %p300 = scmp.ne.s32.totalorder %s288, %s289
      %p301 = scmp.eq.s32.totalorder %s38, 1
      %p302 = por %p300, %p301
      %p304 = scmp.ne.s32.totalorder %s289, %s303
      %p305 = scmp.eq.s32.totalorder %s38, 0
      %p306 = por %p304, %p305
      %s308 = sadd.s32 %s307, 1
      %p311 = scmp.eq.s32.totalorder %s32, 1
      %p312 = scmp.ne.s32.totalorder %s307, %s309
      %p313 = scmp.eq.s32.totalorder %s32, 0
      %p314 = por %p312, %p313
      %p315 = scmp.ne.s32.totalorder %s307, %s309
      %p316 = scmp.eq.s32.totalorder %s37, 1
      %p317 = por %p315, %p316
      %p318 = scmp.ne.s32.totalorder %s309, %s310
      %p319 = scmp.eq.s32.totalorder %s37, 0
      %p320 = por %p318, %p319
      %p321 = scmp.ne.s32.totalorder %s309, %s310
      %p322 = scmp.eq.s32.totalorder %s38, 1
      %p323 = por %p321, %p322
      %p325 = scmp.ne.s32.totalorder %s310, %s324
      %p326 = scmp.eq.s32.totalorder %s38, 0
      %p327 = por %p325, %p326
      %s329 = sadd.s32 %s328, 1
      %p332 = scmp.eq.s32.totalorder %s32, 1
      %p333 = scmp.ne.s32.totalorder %s328, %s330
      %p334 = scmp.eq.s32.totalorder %s32, 0
      %p335 = por %p333, %p334
      %p336 = scmp.ne.s32.totalorder %s328, %s330
      %p337 = scmp.eq.s32.totalorder %s37, 1
      %p338 = por %p336, %p337
      %p339 = scmp.ne.s32.totalorder %s330, %s331
      %p340 = scmp.eq.s32.totalorder %s37, 0
      %p341 = por %p339, %p340
      %p342 = scmp.ne.s32.totalorder %s330, %s331
      %p343 = scmp.eq.s32.totalorder %s38, 1
      %p344 = por %p342, %p343
      %p346 = scmp.ne.s32.totalorder %s331, %s345
      %p347 = scmp.eq.s32.totalorder %s38, 0
      %p348 = por %p346, %p347
      %s350 = sadd.s32 %s349, 1
      %p353 = scmp.eq.s32.totalorder %s32, 1
      %p354 = scmp.ne.s32.totalorder %s349, %s351
      %p355 = scmp.eq.s32.totalorder %s32, 0
      %p356 = por %p354, %p355
      %p357 = scmp.ne.s32.totalorder %s349, %s351
      %p358 = scmp.eq.s32.totalorder %s37, 1
      %p359 = por %p357, %p358
      %p360 = scmp.ne.s32.totalorder %s351, %s352
      %p361 = scmp.eq.s32.totalorder %s37, 0
      %p362 = por %p360, %p361
      %p363 = scmp.ne.s32.totalorder %s351, %s352
      %p364 = scmp.eq.s32.totalorder %s38, 1
      %p365 = por %p363, %p364
      %p367 = scmp.ne.s32.totalorder %s352, %s366
      %p368 = scmp.eq.s32.totalorder %s38, 0
      %p369 = por %p367, %p368
      %s371 = sadd.s32 %s370, 1
      %p374 = scmp.eq.s32.totalorder %s32, 1
      %p375 = scmp.ne.s32.totalorder %s370, %s372
      %p376 = scmp.eq.s32.totalorder %s32, 0
      %p377 = por %p375, %p376
      %p378 = scmp.ne.s32.totalorder %s370, %s372
      %p379 = scmp.eq.s32.totalorder %s37, 1
      %p380 = por %p378, %p379
      %p381 = scmp.ne.s32.totalorder %s372, %s373
      %p382 = scmp.eq.s32.totalorder %s37, 0
      %p383 = por %p381, %p382
      %p384 = scmp.ne.s32.totalorder %s372, %s373
      %p385 = scmp.eq.s32.totalorder %s38, 1
      %p386 = por %p384, %p385
      %p388 = scmp.ne.s32.totalorder %s373, %s387
      %p389 = scmp.eq.s32.totalorder %s38, 0
      %p390 = por %p388, %p389
      %s392 = sadd.s32 %s391, 1
      %p395 = scmp.eq.s32.totalorder %s32, 1
      %p396 = scmp.ne.s32.totalorder %s391, %s393
      %p397 = scmp.eq.s32.totalorder %s32, 0
      %p398 = por %p396, %p397
      %p399 = scmp.ne.s32.totalorder %s391, %s393
      %p400 = scmp.eq.s32.totalorder %s37, 1
      %p401 = por %p399, %p400
      %p402 = scmp.ne.s32.totalorder %s393, %s394
      %p403 = scmp.eq.s32.totalorder %s37, 0
      %p404 = por %p402, %p403
      %p405 = scmp.ne.s32.totalorder %s393, %s394
      %p406 = scmp.eq.s32.totalorder %s38, 1
      %p407 = por %p405, %p406
      %p409 = scmp.ne.s32.totalorder %s394, %s408
      %p410 = scmp.eq.s32.totalorder %s38, 0
      %p411 = por %p409, %p410
      %s413 = sadd.s32 %s412, 1
      %p416 = scmp.eq.s32.totalorder %s32, 1
      %p417 = scmp.ne.s32.totalorder %s412, %s414
      %p418 = scmp.eq.s32.totalorder %s32, 0
      %p419 = por %p417, %p418
      %p420 = scmp.ne.s32.totalorder %s412, %s414
      %p421 = scmp.eq.s32.totalorder %s37, 1
      %p422 = por %p420, %p421
      %p423 = scmp.ne.s32.totalorder %s414, %s415
      %p424 = scmp.eq.s32.totalorder %s37, 0
      %p425 = por %p423, %p424
      %p426 = scmp.ne.s32.totalorder %s414, %s415
      %p427 = scmp.eq.s32.totalorder %s38, 1
      %p428 = por %p426, %p427
      %p430 = scmp.ne.s32.totalorder %s415, %s429
      %p431 = scmp.eq.s32.totalorder %s38, 0
      %p432 = por %p430, %p431
      %s434 = sadd.s32 %s433, 1
      %p437 = scmp.eq.s32.totalorder %s32, 1
      %p438 = scmp.ne.s32.totalorder %s433, %s435
      %p439 = scmp.eq.s32.totalorder %s32, 0
      %p440 = por %p438, %p439
      %p441 = scmp.ne.s32.totalorder %s433, %s435
      %p442 = scmp.eq.s32.totalorder %s37, 1
      %p443 = por %p441, %p442
      %p444 = scmp.ne.s32.totalorder %s435, %s436
      %p445 = scmp.eq.s32.totalorder %s37, 0
      %p446 = por %p444, %p445
      %p447 = scmp.ne.s32.totalorder %s435, %s436
      %p448 = scmp.eq.s32.totalorder %s38, 1
      %p449 = por %p447, %p448
      %p451 = scmp.ne.s32.totalorder %s436, %s450
      %p452 = scmp.eq.s32.totalorder %s38, 0
      %p453 = por %p451, %p452
      %s455 = sadd.s32 %s454, 1
      %p458 = scmp.eq.s32.totalorder %s32, 1
      %p459 = scmp.ne.s32.totalorder %s454, %s456
      %p460 = scmp.eq.s32.totalorder %s32, 0
      %p461 = por %p459, %p460
      %p462 = scmp.ne.s32.totalorder %s454, %s456
      %p463 = scmp.eq.s32.totalorder %s37, 1
      %p464 = por %p462, %p463
      %p465 = scmp.ne.s32.totalorder %s456, %s457
      %p466 = scmp.eq.s32.totalorder %s37, 0
      %p467 = por %p465, %p466
      %p468 = scmp.ne.s32.totalorder %s456, %s457
      %p469 = scmp.eq.s32.totalorder %s38, 1
      %p470 = por %p468, %p469
      %p472 = scmp.ne.s32.totalorder %s457, %s471
      %p473 = scmp.eq.s32.totalorder %s38, 0
      %p474 = por %p472, %p473
      %s475 = ssub.s32 %s32, %s39
      %p476 = scmp.eq.s32.totalorder %s475, 0
      %s478 = sadd.s32 %s477, 1
      %s479 = scalar_select %p476, %s477, %s478
      %p482 = pneg %p476
      %p483 = scmp.eq.s32.totalorder %s32, 1
      %p484 = por %p482, %p483
      %p485 = scmp.ne.s32.totalorder %s477, %s480
      %p486 = scmp.eq.s32.totalorder %s32, 0
      %p487 = por %p485, %p486
      %p488 = scmp.ne.s32.totalorder %s477, %s480
      %p489 = scmp.eq.s32.totalorder %s37, 1
      %p490 = por %p488, %p489
      %p491 = scmp.ne.s32.totalorder %s480, %s481
      %p492 = scmp.eq.s32.totalorder %s37, 0
      %p493 = por %p491, %p492
      %p494 = scmp.ne.s32.totalorder %s480, %s481
      %p495 = scmp.eq.s32.totalorder %s38, 1
      %p496 = por %p494, %p495
      %p498 = scmp.ne.s32.totalorder %s481, %s497
      %p499 = scmp.eq.s32.totalorder %s38, 0
      %p500 = por %p498, %p499
      %s501 = ssub.s32 %s32, %s39
      %p502 = scmp.eq.s32.totalorder %s501, 0
      %s504 = sadd.s32 %s503, 1
      %s505 = scalar_select %p502, %s503, %s504
      %p508 = pneg %p502
      %p509 = scmp.eq.s32.totalorder %s32, 1
      %p510 = por %p508, %p509
      %p511 = scmp.ne.s32.totalorder %s503, %s506
      %p512 = scmp.eq.s32.totalorder %s32, 0
      %p513 = por %p511, %p512
      %p514 = scmp.ne.s32.totalorder %s503, %s506
      %p515 = scmp.eq.s32.totalorder %s37, 1
      %p516 = por %p514, %p515
      %p517 = scmp.ne.s32.totalorder %s506, %s507
      %p518 = scmp.eq.s32.totalorder %s37, 0
      %p519 = por %p517, %p518
      %p520 = scmp.ne.s32.totalorder %s506, %s507
      %p521 = scmp.eq.s32.totalorder %s38, 1
      %p522 = por %p520, %p521
      %p524 = scmp.ne.s32.totalorder %s507, %s523
      %p525 = scmp.eq.s32.totalorder %s38, 0
      %p526 = por %p524, %p525
      %p527 = scmp.le.s32.totalorder 1, %s32
      %p528 = scmp.lt.s32.totalorder %s32, 3
      %p529 = pnand %p527, %p528
      %p530 = pneg %p529
      // Predicated region
      $region9: #{generator_forward.1} parent=5 // pred_check
        _
      $region10: #{generator_forward.1} parent=5 // pred_check_branch
        %532 = sbr.rel (%p529) target = $region12
      $region11: #{generator_forward.1} parent=5 // pred_region
        %s533 = ssub.s32 %s32, 1
        // Predicated region
        $region13: #{generator_forward.1} parent=11 // pred_check
          %p534 = pneg %p131
        $region14: #{generator_forward.1} parent=11 // pred_check_branch
          %536 = sbr.rel (%p534) target = $region16
        $region15: #{generator_forward.1} parent=11 // pred_region
          _
        $region16: #{generator_forward.1} parent=11 // pred_fallthru
          _
        // Predicated region
        $region17: #{generator_forward.1} parent=11 // pred_check
          %p537 = pneg %p152
        $region18: #{generator_forward.1} parent=11 // pred_check_branch
          %539 = sbr.rel (%p537) target = $region20
        $region19: #{generator_forward.1} parent=11 // pred_region
          _
        $region20: #{generator_forward.1} parent=11 // pred_fallthru
          _
        // Predicated region
        $region21: #{generator_forward.1} parent=11 // pred_check
          %p540 = pneg %p173
        $region22: #{generator_forward.1} parent=11 // pred_check_branch
          %542 = sbr.rel (%p540) target = $region24
        $region23: #{generator_forward.1} parent=11 // pred_region
          _
        $region24: #{generator_forward.1} parent=11 // pred_fallthru
          _
        // Predicated region
        $region25: #{generator_forward.1} parent=11 // pred_check
          %p543 = pneg %p194
        $region26: #{generator_forward.1} parent=11 // pred_check_branch
          %545 = sbr.rel (%p543) target = $region28
        $region27: #{generator_forward.1} parent=11 // pred_region
          %547 = vsyncadd [#allocation4], 0
          %s548 = sshll.u32 %s6, 4
          %s549 = int_to_ptr.hbm [resolvable:$true] %s548
          %s550 = sshll.u32 [#allocation3], 4
          %s551 = int_to_ptr.vmem [resolvable:$true] %s550
          %556 = dma.hbm_to_vmem [thread:$0]  %s549, 6144, %s551, [#allocation4], 128, 128, 8
        $region28: #{generator_forward.1} parent=11 // pred_fallthru
          _
        // Predicated region
        $region29: #{generator_forward.1} parent=11 // pred_check
          %p557 = pneg %p215
        $region30: #{generator_forward.1} parent=11 // pred_check_branch
          %559 = sbr.rel (%p557) target = $region32
        $region31: #{generator_forward.1} parent=11 // pred_region
          _
        $region32: #{generator_forward.1} parent=11 // pred_fallthru
          _
        // Predicated region
        $region33: #{generator_forward.1} parent=11 // pred_check
          %p560 = pneg %p236
        $region34: #{generator_forward.1} parent=11 // pred_check_branch
          %562 = sbr.rel (%p560) target = $region36
        $region35: #{generator_forward.1} parent=11 // pred_region
          %564 = vsyncadd [#allocation6], 0
          %s565 = sshll.u32 %s8, 4
          %s566 = int_to_ptr.hbm [resolvable:$true] %s565
          %s567 = sshll.u32 [#allocation5], 4
          %s568 = int_to_ptr.vmem [resolvable:$true] %s567
          %573 = dma.hbm_to_vmem [thread:$0]  %s566, 12288, %s568, [#allocation6], 128, 128, 8
        $region36: #{generator_forward.1} parent=11 // pred_fallthru
          _
        // Predicated region
        $region37: #{generator_forward.1} parent=11 // pred_check
          %p574 = pneg %p257
        $region38: #{generator_forward.1} parent=11 // pred_check_branch
          %576 = sbr.rel (%p574) target = $region40
        $region39: #{generator_forward.1} parent=11 // pred_region
          _
        $region40: #{generator_forward.1} parent=11 // pred_fallthru
          _
        // Predicated region
        $region41: #{generator_forward.1} parent=11 // pred_check
          %p577 = pneg %p278
        $region42: #{generator_forward.1} parent=11 // pred_check_branch
          %579 = sbr.rel (%p577) target = $region44
        $region43: #{generator_forward.1} parent=11 // pred_region
          %581 = vsyncadd [#allocation6], 0
          %s582 = sshll.u32 %s10, 4
          %s583 = int_to_ptr.hbm [resolvable:$true] %s582
          %s584 = sshll.u32 [#allocation7], 4
          %s585 = int_to_ptr.vmem [resolvable:$true] %s584
          %590 = dma.hbm_to_vmem [thread:$0]  %s583, 6144, %s585, [#allocation6], 64, 64, 4
        $region44: #{generator_forward.1} parent=11 // pred_fallthru
          _
        // Predicated region
        $region45: #{generator_forward.1} parent=11 // pred_check
          %p591 = pneg %p299
        $region46: #{generator_forward.1} parent=11 // pred_check_branch
          %593 = sbr.rel (%p591) target = $region48
        $region47: #{generator_forward.1} parent=11 // pred_region
          _
        $region48: #{generator_forward.1} parent=11 // pred_fallthru
          _
        // Predicated region
        $region49: #{generator_forward.1} parent=11 // pred_check
          %p594 = pneg %p320
        $region50: #{generator_forward.1} parent=11 // pred_check_branch
          %596 = sbr.rel (%p594) target = $region52
        $region51: #{generator_forward.1} parent=11 // pred_region
          %598 = vsyncadd [#allocation9], 0
          %s599 = sshll.u32 %s12, 4
          %s600 = int_to_ptr.hbm [resolvable:$true] %s599
          %s601 = sshll.u32 [#allocation8], 4
          %s602 = int_to_ptr.vmem [resolvable:$true] %s601
          %607 = dma.hbm_to_vmem [thread:$0]  %s600, 3072, %s602, [#allocation9], 64, 64, 4
        $region52: #{generator_forward.1} parent=11 // pred_fallthru
          _
        // Predicated region
        $region53: #{generator_forward.1} parent=11 // pred_check
          %p608 = pneg %p341
        $region54: #{generator_forward.1} parent=11 // pred_check_branch
          %610 = sbr.rel (%p608) target = $region56
        $region55: #{generator_forward.1} parent=11 // pred_region
          _
        $region56: #{generator_forward.1} parent=11 // pred_fallthru
          _
        // Predicated region
        $region57: #{generator_forward.1} parent=11 // pred_check
          %p611 = pneg %p362
        $region58: #{generator_forward.1} parent=11 // pred_check_branch
          %613 = sbr.rel (%p611) target = $region60
        $region59: #{generator_forward.1} parent=11 // pred_region
          %615 = vsyncadd [#allocation9], 0
          %s616 = sshll.u32 %s14, 4
          %s617 = int_to_ptr.hbm [resolvable:$true] %s616
          %s618 = sshll.u32 [#allocation10], 4
          %s619 = int_to_ptr.vmem [resolvable:$true] %s618
          %624 = dma.hbm_to_vmem [thread:$0]  %s617, 6144, %s619, [#allocation9], 128, 128, 8
        $region60: #{generator_forward.1} parent=11 // pred_fallthru
          _
        // Predicated region
        $region61: #{generator_forward.1} parent=11 // pred_check
          %p625 = pneg %p383
        $region62: #{generator_forward.1} parent=11 // pred_check_branch
          %627 = sbr.rel (%p625) target = $region64
        $region63: #{generator_forward.1} parent=11 // pred_region
          _
        $region64: #{generator_forward.1} parent=11 // pred_fallthru
          _
        // Predicated region
        $region65: #{generator_forward.1} parent=11 // pred_check
          %p628 = pneg %p404
        $region66: #{generator_forward.1} parent=11 // pred_check_branch
          %630 = sbr.rel (%p628) target = $region68
        $region67: #{generator_forward.1} parent=11 // pred_region
          %632 = vsyncadd [#allocation12], 0
          %s633 = sshll.u32 %s16, 4
          %s634 = int_to_ptr.hbm [resolvable:$true] %s633
          %s635 = sshll.u32 [#allocation11], 4
          %s636 = int_to_ptr.vmem [resolvable:$true] %s635
          %641 = dma.hbm_to_vmem [thread:$0]  %s634, 12288, %s636, [#allocation12], 128, 128, 8
        $region68: #{generator_forward.1} parent=11 // pred_fallthru
          _
        // Predicated region
        $region69: #{generator_forward.1} parent=11 // pred_check
          %p642 = pneg %p425
        $region70: #{generator_forward.1} parent=11 // pred_check_branch
          %644 = sbr.rel (%p642) target = $region72
        $region71: #{generator_forward.1} parent=11 // pred_region
          _
        $region72: #{generator_forward.1} parent=11 // pred_fallthru
          _
        // Predicated region
        $region73: #{generator_forward.1} parent=11 // pred_check
          %p645 = pneg %p446
        $region74: #{generator_forward.1} parent=11 // pred_check_branch
          %647 = sbr.rel (%p645) target = $region76
        $region75: #{generator_forward.1} parent=11 // pred_region
          %649 = vsyncadd [#allocation12], 0
          %s650 = sshll.u32 %s18, 4
          %s651 = int_to_ptr.hbm [resolvable:$true] %s650
          %s652 = sshll.u32 [#allocation13], 4
          %s653 = int_to_ptr.vmem [resolvable:$true] %s652
          %658 = dma.hbm_to_vmem [thread:$0]  %s651, 6144, %s653, [#allocation12], 64, 64, 4
        $region76: #{generator_forward.1} parent=11 // pred_fallthru
          _
        // Predicated region
        $region77: #{generator_forward.1} parent=11 // pred_check
          %p659 = pneg %p467
        $region78: #{generator_forward.1} parent=11 // pred_check_branch
          %661 = sbr.rel (%p659) target = $region80
        $region79: #{generator_forward.1} parent=11 // pred_region
          _
        $region80: #{generator_forward.1} parent=11 // pred_fallthru
          _
      $region12: #{generator_forward.1} parent=5 // pred_fallthru
        _
      %p662 = scmp.lt.s32.totalorder %s32, 2
      // Predicated region
      $region81: #{generator_forward.1} parent=5 // pred_check
        %p663 = pneg %p662
      $region82: #{generator_forward.1} parent=5 // pred_check_branch
        %665 = sbr.rel (%p663) target = $region84
      $region83: #{generator_forward.1} parent=5 // pred_region
        // Predicated region
        $region85: #{generator_forward.1} parent=83 // pred_check
          %p666 = pneg %p52
        $region86: #{generator_forward.1} parent=83 // pred_check_branch
          %668 = sbr.rel (%p666) target = $region88
        $region87: #{generator_forward.1} parent=83 // pred_region
          %p669 = scmp.lt.s32.totalorder %s32, 1
          %s670 = scalar_select %p669, %s32, 1
          %s671 = smul.addr %s670, 8
          %s672 = scalar_lea.vmem %s0, %s671
        $region88: #{generator_forward.1} parent=83 // pred_fallthru
          _
        // Predicated region
        $region89: #{generator_forward.1} parent=83 // pred_check
          %p673 = pneg %p78
        $region90: #{generator_forward.1} parent=83 // pred_check_branch
          %675 = sbr.rel (%p673) target = $region92
        $region91: #{generator_forward.1} parent=83 // pred_region
          %p676 = scmp.lt.s32.totalorder %s32, 1
          %s677 = scalar_select %p676, %s32, 1
          %s678 = smul.addr %s677, 8
          %s679 = scalar_lea.vmem %s1, %s678
        $region92: #{generator_forward.1} parent=83 // pred_fallthru
          _
        // Predicated region
        $region93: #{generator_forward.1} parent=83 // pred_check
          %p680 = pneg %p104
        $region94: #{generator_forward.1} parent=83 // pred_check_branch
          %682 = sbr.rel (%p680) target = $region96
        $region95: #{generator_forward.1} parent=83 // pred_region
          %p683 = scmp.lt.s32.totalorder %s32, 1
          %s684 = scalar_select %p683, %s32, 1
          %s685 = smul.addr %s684, 2
          %s686 = smul.addr %s685, 8
          %s687 = scalar_lea.vmem %s2, %s686
        $region96: #{generator_forward.1} parent=83 // pred_fallthru
          _
      $region84: #{generator_forward.1} parent=5 // pred_fallthru
        _
      %p688 = scmp.le.s32.totalorder 1, %s32
      %p689 = scmp.lt.s32.totalorder %s32, 3
      %p690 = pnand %p688, %p689
      %p691 = pneg %p690
      // Predicated region
      $region97: #{generator_forward.1} parent=5 // pred_check
        _
      $region98: #{generator_forward.1} parent=5 // pred_check_branch
        %693 = sbr.rel (%p690) target = $region100
      $region99: #{generator_forward.1} parent=5 // pred_region
        %s694 = ssub.s32 %s32, 1
        // Predicated region
        $region101: #{generator_forward.1} parent=99 // pred_check
          %p695 = pneg %p194
        $region102: #{generator_forward.1} parent=99 // pred_check_branch
          %697 = sbr.rel (%p695) target = $region104
        $region103: #{generator_forward.1} parent=99 // pred_region
          %699 = dma.done [#allocation4], 6144
        $region104: #{generator_forward.1} parent=99 // pred_fallthru
          _
        // Predicated region
        $region105: #{generator_forward.1} parent=99 // pred_check
          %p700 = pneg %p236
        $region106: #{generator_forward.1} parent=99 // pred_check_branch
          %702 = sbr.rel (%p700) target = $region108
        $region107: #{generator_forward.1} parent=99 // pred_region
          %704 = dma.done [#allocation6], 12288
        $region108: #{generator_forward.1} parent=99 // pred_fallthru
          _
        // Predicated region
        $region109: #{generator_forward.1} parent=99 // pred_check
          %p705 = pneg %p278
        $region110: #{generator_forward.1} parent=99 // pred_check_branch
          %707 = sbr.rel (%p705) target = $region112
        $region111: #{generator_forward.1} parent=99 // pred_region
          %709 = dma.done [#allocation6], 6144
        $region112: #{generator_forward.1} parent=99 // pred_fallthru
          _
        // Predicated region
        $region113: #{generator_forward.1} parent=99 // pred_check
          %p710 = pneg %p320
        $region114: #{generator_forward.1} parent=99 // pred_check_branch
          %712 = sbr.rel (%p710) target = $region116
        $region115: #{generator_forward.1} parent=99 // pred_region
          %714 = dma.done [#allocation9], 3072
        $region116: #{generator_forward.1} parent=99 // pred_fallthru
          _
        // Predicated region
        $region117: #{generator_forward.1} parent=99 // pred_check
          %p715 = pneg %p362
        $region118: #{generator_forward.1} parent=99 // pred_check_branch
          %717 = sbr.rel (%p715) target = $region120
        $region119: #{generator_forward.1} parent=99 // pred_region
          %719 = dma.done [#allocation9], 6144
        $region120: #{generator_forward.1} parent=99 // pred_fallthru
          _
        // Predicated region
        $region121: #{generator_forward.1} parent=99 // pred_check
          %p720 = pneg %p404
        $region122: #{generator_forward.1} parent=99 // pred_check_branch
          %722 = sbr.rel (%p720) target = $region124
        $region123: #{generator_forward.1} parent=99 // pred_region
          %724 = dma.done [#allocation12], 12288
        $region124: #{generator_forward.1} parent=99 // pred_fallthru
          _
        // Predicated region
        $region125: #{generator_forward.1} parent=99 // pred_check
          %p725 = pneg %p446
        $region126: #{generator_forward.1} parent=99 // pred_check_branch
          %727 = sbr.rel (%p725) target = $region128
        $region127: #{generator_forward.1} parent=99 // pred_region
          %729 = dma.done [#allocation12], 6144
        $region128: #{generator_forward.1} parent=99 // pred_fallthru
          _
        %p730 = scmp.lt.s32.totalorder %s37, 1
        %s731 = scalar_select %p730, %s37, 1
        %s732 = smul.addr %s731, 8
        %s733 = scalar_lea.vmem %s0, %s732
        %p734 = pneg %p58
        %p735 = pneg %p55
        %p736 = scmp.lt.s32.totalorder %s37, 1
        %s737 = scalar_select %p736, %s37, 1
        %s738 = smul.addr %s737, 8
        %s739 = scalar_lea.vmem %s1, %s738
        %p740 = pneg %p84
        %p741 = pneg %p81
        %p742 = scmp.lt.s32.totalorder %s37, 1
        %s743 = scalar_select %p742, %s37, 1
        %s744 = smul.addr %s743, 2
        %s745 = smul.addr %s744, 8
        %s746 = scalar_lea.vmem %s2, %s745
        %p747 = pneg %p110
        %p748 = pneg %p107
        %p749 = pneg %p131
        %p750 = pneg %p128
        %p751 = pneg %p152
        %p752 = pneg %p149
        %p753 = pneg %p173
        %p754 = pneg %p170
        %p755 = pneg %p194
        %p756 = pneg %p191
        %p757 = pneg %p215
        %p758 = pneg %p212
        %p759 = pneg %p236
        %p760 = pneg %p233
        %p761 = pneg %p257
        %p762 = pneg %p254
        %p763 = pneg %p278
        %p764 = pneg %p275
        %p765 = pneg %p299
        %p766 = pneg %p296
        %p767 = pneg %p320
        %p768 = pneg %p317
        %p769 = pneg %p341
        %p770 = pneg %p338
        %p771 = pneg %p362
        %p772 = pneg %p359
        %p773 = pneg %p383
        %p774 = pneg %p380
        %p775 = pneg %p404
        %p776 = pneg %p401
        %p777 = pneg %p425
        %p778 = pneg %p422
        %p779 = pneg %p446
        %p780 = pneg %p443
        %p781 = pneg %p467
        %p782 = pneg %p464
        %p783 = pneg %p493
        %p784 = pneg %p490
        %p785 = scmp.lt.s32.totalorder %s37, 1
        %s786 = scalar_select %p785, %s37, 1
        %s787 = smul.addr %s786, 8
        %s788 = scalar_lea.vmem %s20, %s787
        %p789 = pneg %p519
        %p790 = pneg %p516
        %p791 = scmp.lt.s32.totalorder %s37, 1
        %s792 = scalar_select %p791, %s37, 1
        %s793 = smul.addr %s792, 2
        %s794 = smul.addr %s793, 8
        %s795 = scalar_lea.vmem %s21, %s794
        %p796 = scmp.lt.s32.totalorder %s37, 1
        %s797 = scalar_select %p796, %s37, 1
        %s798 = smul.addr %s797, 8
        %s799 = scalar_lea.vmem %s0, %s798
        %p800 = scmp.lt.s32.totalorder %s37, 1
        %s801 = scalar_select %p800, %s37, 1
        %s802 = smul.addr %s801, 8
        %s803 = scalar_lea.vmem %s1, %s802
        %p804 = scmp.lt.s32.totalorder %s37, 1
        %s805 = scalar_select %p804, %s37, 1
        %s806 = smul.addr %s805, 2
        %s807 = smul.addr %s806, 8
        %s808 = scalar_lea.vmem %s2, %s807
        %p809 = scmp.lt.s32.totalorder %s37, 1
        %s810 = scalar_select %p809, %s37, 1
        %s811 = smul.addr %s810, 8
        %s812 = scalar_lea.vmem %s20, %s811
        %p813 = scmp.lt.s32.totalorder %s37, 1
        %s814 = scalar_select %p813, %s37, 1
        %s815 = smul.addr %s814, 2
        %s816 = smul.addr %s815, 8
        %s817 = scalar_lea.vmem %s21, %s816
        %v818 = vld [vmem:[%s799] sm:$0xff]
        %v819 = vld [vmem:[%s803] sm:$0xff]
        %v820 = vadd.f32 %v818, %v819
        %v822 = vrot.slane %v820, 7
        %824 = vst [vmem:[#allocation2] sm:$0xfe] %v822
        %825 = vst [vmem:[#allocation2 + $0x10] sm:$0x1] %v822
        %v826 = vrot.slane %v820, 1
        %828 = vst [vmem:[#allocation2] sm:$0x1] %v826
        %v829 = vrot.slane %v820, 6
        %831 = vst [vmem:[#allocation2 + $0x11] sm:$0x1] %v829
        %v832 = vld [vmem:[#allocation2] sm:$0xff]
        %v833 = vld [vmem:[#allocation2] sm:$0xfe]
        %v834 = vld [vmem:[#allocation2 + $0x10] sm:$0x1]
        %v835 = vld [vmem:[#allocation2] sm:$0xfc]
        %v836 = vld [vmem:[#allocation2 + $0x10] sm:$0x3]
        %vm839 = vcmask 1046528
        %v840 = vrot.slane %v833, 1
        %v841 = vrot.slane %v834, 1
        %v842 = vsel %vm839, %v840, %v841
        %vm846 = vcmask 1045504
        %v847 = vrot.slane %v835, 2
        %v848 = vrot.slane %v836, 2
        %v849 = vsel %vm846, %v847, %v848
        %v851 = vpack.c.bf16 %v832, %v832
        %v852 = vpack.c.bf16 %v842, %v842
        %v853 = vpack.c.bf16 %v849, %v849
        %v854 = vld [vmem:[%s4] sm:$0xf]
        %v855 = vld [vmem:[%s4 + $0x4] sm:$0xf]
        %v856 = vld [vmem:[%s4 + $0x8] sm:$0xf]
        %v857 = vld [vmem:[%s4 + $0xc] sm:$0xf]
        %v858 = vld [vmem:[%s4 + $0x10] sm:$0xf]
        %v859 = vld [vmem:[%s4 + $0x14] sm:$0xf]
        %v860 = vld [vmem:[%s4 + $0x18] sm:$0xf]
        %v861 = vld [vmem:[%s4 + $0x1c] sm:$0xf]
        %v862 = vld [vmem:[%s4 + $0x20] sm:$0xf]
        %v863 = vld [vmem:[%s4 + $0x24] sm:$0xf]
        %v864 = vld [vmem:[%s4 + $0x28] sm:$0xf]
        %v865 = vld [vmem:[%s4 + $0x2c] sm:$0xf]
        %v866 = vld [vmem:[%s4 + $0x30] sm:$0xf]
        %v867 = vld [vmem:[%s4 + $0x34] sm:$0xf]
        %v868 = vld [vmem:[%s4 + $0x38] sm:$0xf]
        %v869 = vld [vmem:[%s4 + $0x3c] sm:$0xf]
        %v870 = vld [vmem:[%s4 + $0x40] sm:$0xf]
        %v871 = vld [vmem:[%s4 + $0x44] sm:$0xf]
        %v872 = vld [vmem:[%s4 + $0x48] sm:$0xf]
        %v873 = vld [vmem:[%s4 + $0x4c] sm:$0xf]
        %v874 = vld [vmem:[%s4 + $0x50] sm:$0xf]
        %v875 = vld [vmem:[%s4 + $0x54] sm:$0xf]
        %v876 = vld [vmem:[%s4 + $0x58] sm:$0xf]
        %v877 = vld [vmem:[%s4 + $0x5c] sm:$0xf]
        %v878 = vld [vmem:[%s4 + $0x60] sm:$0xf]
        %v879 = vld [vmem:[%s4 + $0x64] sm:$0xf]
        %v880 = vld [vmem:[%s4 + $0x68] sm:$0xf]
        %v881 = vld [vmem:[%s4 + $0x6c] sm:$0xf]
        %v882 = vld [vmem:[%s4 + $0x70] sm:$0xf]
        %v883 = vld [vmem:[%s4 + $0x74] sm:$0xf]
        %v884 = vld [vmem:[%s4 + $0x78] sm:$0xf]
        %v885 = vld [vmem:[%s4 + $0x7c] sm:$0xf]
        %v886 = vld [vmem:[%s4 + $0x80] sm:$0xf]
        %v887 = vld [vmem:[%s4 + $0x84] sm:$0xf]
        %v888 = vld [vmem:[%s4 + $0x88] sm:$0xf]
        %v889 = vld [vmem:[%s4 + $0x8c] sm:$0xf]
        %v890 = vld [vmem:[%s4 + $0x90] sm:$0xf]
        %v891 = vld [vmem:[%s4 + $0x94] sm:$0xf]
        %v892 = vld [vmem:[%s4 + $0x98] sm:$0xf]
        %v893 = vld [vmem:[%s4 + $0x9c] sm:$0xf]
        %v894 = vld [vmem:[%s4 + $0xa0] sm:$0xf]
        %v895 = vld [vmem:[%s4 + $0xa4] sm:$0xf]
        %v896 = vld [vmem:[%s4 + $0xa8] sm:$0xf]
        %v897 = vld [vmem:[%s4 + $0xac] sm:$0xf]
        %v898 = vld [vmem:[%s4 + $0xb0] sm:$0xf]
        %v899 = vld [vmem:[%s4 + $0xb4] sm:$0xf]
        %v900 = vld [vmem:[%s4 + $0xb8] sm:$0xf]
        %v901 = vld [vmem:[%s4 + $0xbc] sm:$0xf]
        %v902 = vld [vmem:[%s5] sm:$0x1]
        %v904 = vperm.slane %v902, 0
        %v954 = vunpack.c.l.b16 %v854
        %v955 = vunpack.c.l.b16 %v855
        %v956 = vunpack.c.l.b16 %v856
        %v957 = vunpack.c.l.b16 %v857
        %v958 = vunpack.c.l.b16 %v858
        %v959 = vunpack.c.l.b16 %v859
        %v960 = vunpack.c.l.b16 %v860
        %v961 = vunpack.c.l.b16 %v861
        %v962 = vunpack.c.l.b16 %v862
        %v963 = vunpack.c.l.b16 %v863
        %v964 = vunpack.c.l.b16 %v864
        %v965 = vunpack.c.l.b16 %v865
        %v966 = vunpack.c.l.b16 %v866
        %v967 = vunpack.c.l.b16 %v867
        %v968 = vunpack.c.l.b16 %v868
        %v969 = vunpack.c.l.b16 %v869
        %v970 = vunpack.c.l.b16 %v870
        %v971 = vunpack.c.l.b16 %v871
        %v972 = vunpack.c.l.b16 %v872
        %v973 = vunpack.c.l.b16 %v873
        %v974 = vunpack.c.l.b16 %v874
        %v975 = vunpack.c.l.b16 %v875
        %v976 = vunpack.c.l.b16 %v876
        %v977 = vunpack.c.l.b16 %v877
        %v978 = vunpack.c.l.b16 %v878
        %v979 = vunpack.c.l.b16 %v879
        %v980 = vunpack.c.l.b16 %v880
        %v981 = vunpack.c.l.b16 %v881
        %v982 = vunpack.c.l.b16 %v882
        %v983 = vunpack.c.l.b16 %v883
        %v984 = vunpack.c.l.b16 %v884
        %v985 = vunpack.c.l.b16 %v885
        %v986 = vunpack.c.l.b16 %v886
        %v987 = vunpack.c.l.b16 %v887
        %v988 = vunpack.c.l.b16 %v888
        %v989 = vunpack.c.l.b16 %v889
        %v990 = vunpack.c.l.b16 %v890
        %v991 = vunpack.c.l.b16 %v891
        %v992 = vunpack.c.l.b16 %v892
        %v993 = vunpack.c.l.b16 %v893
        %v994 = vunpack.c.l.b16 %v894
        %v995 = vunpack.c.l.b16 %v895
        %v996 = vunpack.c.l.b16 %v896
        %v997 = vunpack.c.l.b16 %v897
        %v998 = vunpack.c.l.b16 %v898
        %v999 = vunpack.c.l.b16 %v899
        %v1000 = vunpack.c.l.b16 %v900
        %v1001 = vunpack.c.l.b16 %v901
        %v1002 = vpack.c.b16 %v955, %v954
        %v1003 = vpack.c.b16 %v957, %v956
        %v1004 = vpack.c.b16 %v959, %v958
        %v1005 = vpack.c.b16 %v961, %v960
        %v1006 = vpack.c.b16 %v963, %v962
        %v1007 = vpack.c.b16 %v965, %v964
        %v1008 = vpack.c.b16 %v967, %v966
        %v1009 = vpack.c.b16 %v969, %v968
        %v1010 = vpack.c.b16 %v971, %v970
        %v1011 = vpack.c.b16 %v973, %v972
        %v1012 = vpack.c.b16 %v975, %v974
        %v1013 = vpack.c.b16 %v977, %v976
        %v1014 = vpack.c.b16 %v979, %v978
        %v1015 = vpack.c.b16 %v981, %v980
        %v1016 = vpack.c.b16 %v983, %v982
        %v1017 = vpack.c.b16 %v985, %v984
        %v1018 = vpack.c.b16 %v987, %v986
        %v1019 = vpack.c.b16 %v989, %v988
        %v1020 = vpack.c.b16 %v991, %v990
        %v1021 = vpack.c.b16 %v993, %v992
        %v1022 = vpack.c.b16 %v995, %v994
        %v1023 = vpack.c.b16 %v997, %v996
        %v1024 = vpack.c.b16 %v999, %v998
        %v1025 = vpack.c.b16 %v1001, %v1000
        %1050 = vmatpush.bf16.msra.mxu0 %v1009
        %1051 = vmatpush.bf16.msra.mxu0 %v1008
        %1052 = vmatpush.bf16.msra.mxu0 %v1007
        %1053 = vmatpush.bf16.msra.mxu0 %v1006
        %1054 = vmatpush.bf16.msra.mxu0 %v1005
        %1055 = vmatpush.bf16.msra.mxu0 %v1004
        %1056 = vmatpush.bf16.msra.mxu0 %v1003
        %1057 = vmatpush.bf16.msra.mxu0 %v1002
        %1058 = vmatmul.bf16.gmra.mxu0 %v851
        %v1059 = vpop.f32.mrf.mxu0
        %v1060 = vadd.f32 %v904, %v1059
        %v1061 = vpop.f32.mrf.mxu0
        %1062 = vdwg.mxu0
        %1063 = vmatpush.bf16.msra.mxu0 %v1017
        %1064 = vmatpush.bf16.msra.mxu0 %v1016
        %1065 = vmatpush.bf16.msra.mxu0 %v1015
        %1066 = vmatpush.bf16.msra.mxu0 %v1014
        %1067 = vmatpush.bf16.msra.mxu0 %v1013
        %1068 = vmatpush.bf16.msra.mxu0 %v1012
        %1069 = vmatpush.bf16.msra.mxu0 %v1011
        %1070 = vmatpush.bf16.msra.mxu0 %v1010
        %1071 = vmatmul.bf16.gmra.mxu0 %v852
        %v1072 = vpop.f32.mrf.mxu0
        %v1073 = vadd.f32 %v1060, %v1072
        %v1074 = vpop.f32.mrf.mxu0
        %1075 = vdwg.mxu0
        %1076 = vmatpush.bf16.msra.mxu0 %v1025
        %1077 = vmatpush.bf16.msra.mxu0 %v1024
        %1078 = vmatpush.bf16.msra.mxu0 %v1023
        %1079 = vmatpush.bf16.msra.mxu0 %v1022
        %1080 = vmatpush.bf16.msra.mxu0 %v1021
        %1081 = vmatpush.bf16.msra.mxu0 %v1020
        %1082 = vmatpush.bf16.msra.mxu0 %v1019
        %1083 = vmatpush.bf16.msra.mxu0 %v1018
        %1084 = vmatmul.bf16.gmra.mxu0 %v853
        %v1085 = vpop.f32.mrf.mxu0
        %v1086 = vadd.f32 %v1073, %v1085
        %v1087 = vpop.f32.mrf.mxu0
        %1088 = vdwg.mxu0
        %vm1089 = vcmp.ge.f32.partialorder %v1086, 0.0
        %v1090 = vmul.f32 %v1086, 0.2
        %v1091 = vsel %vm1089, %v1086, %v1090
        %v1093 = vrot.slane %v1091, 7
        %1095 = vst [vmem:[#allocation2] sm:$0xfe] %v1093
        %1096 = vst [vmem:[#allocation2 + $0x10] sm:$0x1] %v1093
        %v1097 = vrot.slane %v1091, 1
        %1099 = vst [vmem:[#allocation2] sm:$0x1] %v1097
        %v1100 = vrot.slane %v1091, 6
        %1102 = vst [vmem:[#allocation2 + $0x11] sm:$0x1] %v1100
        %v1103 = vld [vmem:[#allocation2] sm:$0xff]
        %v1104 = vld [vmem:[#allocation2] sm:$0xfe]
        %v1105 = vld [vmem:[#allocation2 + $0x10] sm:$0x1]
        %v1106 = vld [vmem:[#allocation2] sm:$0xfc]
        %v1107 = vld [vmem:[#allocation2 + $0x10] sm:$0x3]
        %v1110 = vrot.slane %v1104, 1
        %v1111 = vrot.slane %v1105, 1
        %v1112 = vsel %vm839, %v1110, %v1111
        %v1116 = vrot.slane %v1106, 2
        %v1117 = vrot.slane %v1107, 2
        %v1118 = vsel %vm846, %v1116, %v1117
        %v1120 = vpack.c.bf16 %v1103, %v1103
        %v1121 = vpack.c.bf16 %v1112, %v1112
        %v1122 = vpack.c.bf16 %v1118, %v1118
        %v1123 = vld [vmem:[#allocation3] sm:$0xff]
        %v1124 = vld [vmem:[#allocation3 + $0x8] sm:$0xff]
        %v1125 = vld [vmem:[#allocation3 + $0x10] sm:$0xff]
        %v1126 = vld [vmem:[#allocation3 + $0x18] sm:$0xff]
        %v1127 = vld [vmem:[#allocation3 + $0x20] sm:$0xff]
        %v1128 = vld [vmem:[#allocation3 + $0x28] sm:$0xff]
        %v1129 = vld [vmem:[#allocation3 + $0x30] sm:$0xff]
        %v1130 = vld [vmem:[#allocation3 + $0x38] sm:$0xff]
        %v1131 = vld [vmem:[#allocation3 + $0x40] sm:$0xff]
        %v1132 = vld [vmem:[#allocation3 + $0x48] sm:$0xff]
        %v1133 = vld [vmem:[#allocation3 + $0x50] sm:$0xff]
        %v1134 = vld [vmem:[#allocation3 + $0x58] sm:$0xff]
        %v1135 = vld [vmem:[#allocation3 + $0x60] sm:$0xff]
        %v1136 = vld [vmem:[#allocation3 + $0x68] sm:$0xff]
        %v1137 = vld [vmem:[#allocation3 + $0x70] sm:$0xff]
        %v1138 = vld [vmem:[#allocation3 + $0x78] sm:$0xff]
        %v1139 = vld [vmem:[#allocation3 + $0x80] sm:$0xff]
        %v1140 = vld [vmem:[#allocation3 + $0x88] sm:$0xff]
        %v1141 = vld [vmem:[#allocation3 + $0x90] sm:$0xff]
        %v1142 = vld [vmem:[#allocation3 + $0x98] sm:$0xff]
        %v1143 = vld [vmem:[#allocation3 + $0xa0] sm:$0xff]
        %v1144 = vld [vmem:[#allocation3 + $0xa8] sm:$0xff]
        %v1145 = vld [vmem:[#allocation3 + $0xb0] sm:$0xff]
        %v1146 = vld [vmem:[#allocation3 + $0xb8] sm:$0xff]
        %v1147 = vld [vmem:[#allocation3 + $0xc0] sm:$0xff]
        %v1148 = vld [vmem:[#allocation3 + $0xc8] sm:$0xff]
        %v1149 = vld [vmem:[#allocation3 + $0xd0] sm:$0xff]
        %v1150 = vld [vmem:[#allocation3 + $0xd8] sm:$0xff]
        %v1151 = vld [vmem:[#allocation3 + $0xe0] sm:$0xff]
        %v1152 = vld [vmem:[#allocation3 + $0xe8] sm:$0xff]
        %v1153 = vld [vmem:[#allocation3 + $0xf0] sm:$0xff]
        %v1154 = vld [vmem:[#allocation3 + $0xf8] sm:$0xff]
        %v1155 = vld [vmem:[#allocation3 + $0x100] sm:$0xff]
        %v1156 = vld [vmem:[#allocation3 + $0x108] sm:$0xff]
        %v1157 = vld [vmem:[#allocation3 + $0x110] sm:$0xff]
        %v1158 = vld [vmem:[#allocation3 + $0x118] sm:$0xff]
        %v1159 = vld [vmem:[#allocation3 + $0x120] sm:$0xff]
        %v1160 = vld [vmem:[#allocation3 + $0x128] sm:$0xff]
        %v1161 = vld [vmem:[#allocation3 + $0x130] sm:$0xff]
        %v1162 = vld [vmem:[#allocation3 + $0x138] sm:$0xff]
        %v1163 = vld [vmem:[#allocation3 + $0x140] sm:$0xff]
        %v1164 = vld [vmem:[#allocation3 + $0x148] sm:$0xff]
        %v1165 = vld [vmem:[#allocation3 + $0x150] sm:$0xff]
        %v1166 = vld [vmem:[#allocation3 + $0x158] sm:$0xff]
        %v1167 = vld [vmem:[#allocation3 + $0x160] sm:$0xff]
        %v1168 = vld [vmem:[#allocation3 + $0x168] sm:$0xff]
        %v1169 = vld [vmem:[#allocation3 + $0x170] sm:$0xff]
        %v1170 = vld [vmem:[#allocation3 + $0x178] sm:$0xff]
        %v1171 = vld [vmem:[%s7] sm:$0x3]
        %v1173 = vperm.slane %v1171, 0
        %v1174 = vperm.slane %v1171, 1
        %v1225 = vunpack.c.l.b16 %v1123
        %v1226 = vunpack.c.h.b16 %v1123
        %v1227 = vunpack.c.l.b16 %v1124
        %v1228 = vunpack.c.h.b16 %v1124
        %v1229 = vunpack.c.l.b16 %v1125
        %v1230 = vunpack.c.h.b16 %v1125
        %v1231 = vunpack.c.l.b16 %v1126
        %v1232 = vunpack.c.h.b16 %v1126
        %v1233 = vunpack.c.l.b16 %v1127
        %v1234 = vunpack.c.h.b16 %v1127
        %v1235 = vunpack.c.l.b16 %v1128
        %v1236 = vunpack.c.h.b16 %v1128
        %v1237 = vunpack.c.l.b16 %v1129
        %v1238 = vunpack.c.h.b16 %v1129
        %v1239 = vunpack.c.l.b16 %v1130
        %v1240 = vunpack.c.h.b16 %v1130
        %v1241 = vunpack.c.l.b16 %v1131
        %v1242 = vunpack.c.h.b16 %v1131
        %v1243 = vunpack.c.l.b16 %v1132
        %v1244 = vunpack.c.h.b16 %v1132
        %v1245 = vunpack.c.l.b16 %v1133
        %v1246 = vunpack.c.h.b16 %v1133
        %v1247 = vunpack.c.l.b16 %v1134
        %v1248 = vunpack.c.h.b16 %v1134
        %v1249 = vunpack.c.l.b16 %v1135
        %v1250 = vunpack.c.h.b16 %v1135
        %v1251 = vunpack.c.l.b16 %v1136
        %v1252 = vunpack.c.h.b16 %v1136
        %v1253 = vunpack.c.l.b16 %v1137
        %v1254 = vunpack.c.h.b16 %v1137
        %v1255 = vunpack.c.l.b16 %v1138
        %v1256 = vunpack.c.h.b16 %v1138
        %v1257 = vunpack.c.l.b16 %v1139
        %v1258 = vunpack.c.h.b16 %v1139
        %v1259 = vunpack.c.l.b16 %v1140
        %v1260 = vunpack.c.h.b16 %v1140
        %v1261 = vunpack.c.l.b16 %v1141
        %v1262 = vunpack.c.h.b16 %v1141
        %v1263 = vunpack.c.l.b16 %v1142
        %v1264 = vunpack.c.h.b16 %v1142
        %v1265 = vunpack.c.l.b16 %v1143
        %v1266 = vunpack.c.h.b16 %v1143
        %v1267 = vunpack.c.l.b16 %v1144
        %v1268 = vunpack.c.h.b16 %v1144
        %v1269 = vunpack.c.l.b16 %v1145
        %v1270 = vunpack.c.h.b16 %v1145
        %v1271 = vunpack.c.l.b16 %v1146
        %v1272 = vunpack.c.h.b16 %v1146
        %v1273 = vunpack.c.l.b16 %v1147
        %v1274 = vunpack.c.h.b16 %v1147
        %v1275 = vunpack.c.l.b16 %v1148
        %v1276 = vunpack.c.h.b16 %v1148
        %v1277 = vunpack.c.l.b16 %v1149
        %v1278 = vunpack.c.h.b16 %v1149
        %v1279 = vunpack.c.l.b16 %v1150
        %v1280 = vunpack.c.h.b16 %v1150
        %v1281 = vunpack.c.l.b16 %v1151
        %v1282 = vunpack.c.h.b16 %v1151
        %v1283 = vunpack.c.l.b16 %v1152
        %v1284 = vunpack.c.h.b16 %v1152
        %v1285 = vunpack.c.l.b16 %v1153
        %v1286 = vunpack.c.h.b16 %v1153
        %v1287 = vunpack.c.l.b16 %v1154
        %v1288 = vunpack.c.h.b16 %v1154
        %v1289 = vunpack.c.l.b16 %v1155
        %v1290 = vunpack.c.h.b16 %v1155
        %v1291 = vunpack.c.l.b16 %v1156
        %v1292 = vunpack.c.h.b16 %v1156
        %v1293 = vunpack.c.l.b16 %v1157
        %v1294 = vunpack.c.h.b16 %v1157
        %v1295 = vunpack.c.l.b16 %v1158
        %v1296 = vunpack.c.h.b16 %v1158
        %v1297 = vunpack.c.l.b16 %v1159
        %v1298 = vunpack.c.h.b16 %v1159
        %v1299 = vunpack.c.l.b16 %v1160
        %v1300 = vunpack.c.h.b16 %v1160
        %v1301 = vunpack.c.l.b16 %v1161
        %v1302 = vunpack.c.h.b16 %v1161
        %v1303 = vunpack.c.l.b16 %v1162
        %v1304 = vunpack.c.h.b16 %v1162
        %v1305 = vunpack.c.l.b16 %v1163
        %v1306 = vunpack.c.h.b16 %v1163
        %v1307 = vunpack.c.l.b16 %v1164
        %v1308 = vunpack.c.h.b16 %v1164
        %v1309 = vunpack.c.l.b16 %v1165
        %v1310 = vunpack.c.h.b16 %v1165
        %v1311 = vunpack.c.l.b16 %v1166
        %v1312 = vunpack.c.h.b16 %v1166
        %v1313 = vunpack.c.l.b16 %v1167
        %v1314 = vunpack.c.h.b16 %v1167
        %v1315 = vunpack.c.l.b16 %v1168
        %v1316 = vunpack.c.h.b16 %v1168
        %v1317 = vunpack.c.l.b16 %v1169
        %v1318 = vunpack.c.h.b16 %v1169
        %v1319 = vunpack.c.l.b16 %v1170
        %v1320 = vunpack.c.h.b16 %v1170
        %v1321 = vpack.c.b16 %v1227, %v1225
        %v1322 = vpack.c.b16 %v1228, %v1226
        %v1323 = vpack.c.b16 %v1231, %v1229
        %v1324 = vpack.c.b16 %v1232, %v1230
        %v1325 = vpack.c.b16 %v1235, %v1233
        %v1326 = vpack.c.b16 %v1236, %v1234
        %v1327 = vpack.c.b16 %v1239, %v1237
        %v1328 = vpack.c.b16 %v1240, %v1238
        %v1329 = vpack.c.b16 %v1243, %v1241
        %v1330 = vpack.c.b16 %v1244, %v1242
        %v1331 = vpack.c.b16 %v1247, %v1245
        %v1332 = vpack.c.b16 %v1248, %v1246
        %v1333 = vpack.c.b16 %v1251, %v1249
        %v1334 = vpack.c.b16 %v1252, %v1250
        %v1335 = vpack.c.b16 %v1255, %v1253
        %v1336 = vpack.c.b16 %v1256, %v1254
        %v1337 = vpack.c.b16 %v1259, %v1257
        %v1338 = vpack.c.b16 %v1260, %v1258
        %v1339 = vpack.c.b16 %v1263, %v1261
        %v1340 = vpack.c.b16 %v1264, %v1262
        %v1341 = vpack.c.b16 %v1267, %v1265
        %v1342 = vpack.c.b16 %v1268, %v1266
        %v1343 = vpack.c.b16 %v1271, %v1269
        %v1344 = vpack.c.b16 %v1272, %v1270
        %v1345 = vpack.c.b16 %v1275, %v1273
        %v1346 = vpack.c.b16 %v1276, %v1274
        %v1347 = vpack.c.b16 %v1279, %v1277
        %v1348 = vpack.c.b16 %v1280, %v1278
        %v1349 = vpack.c.b16 %v1283, %v1281
        %v1350 = vpack.c.b16 %v1284, %v1282
        %v1351 = vpack.c.b16 %v1287, %v1285
        %v1352 = vpack.c.b16 %v1288, %v1286
        %v1353 = vpack.c.b16 %v1291, %v1289
        %v1354 = vpack.c.b16 %v1292, %v1290
        %v1355 = vpack.c.b16 %v1295, %v1293
        %v1356 = vpack.c.b16 %v1296, %v1294
        %v1357 = vpack.c.b16 %v1299, %v1297
        %v1358 = vpack.c.b16 %v1300, %v1298
        %v1359 = vpack.c.b16 %v1303, %v1301
        %v1360 = vpack.c.b16 %v1304, %v1302
        %v1361 = vpack.c.b16 %v1307, %v1305
        %v1362 = vpack.c.b16 %v1308, %v1306
        %v1363 = vpack.c.b16 %v1311, %v1309
        %v1364 = vpack.c.b16 %v1312, %v1310
        %v1365 = vpack.c.b16 %v1315, %v1313
        %v1366 = vpack.c.b16 %v1316, %v1314
        %v1367 = vpack.c.b16 %v1319, %v1317
        %v1368 = vpack.c.b16 %v1320, %v1318
        %1417 = vmatpush.bf16.msra.mxu0 %v1335
        %1418 = vmatpush.bf16.msra.mxu0 %v1333
        %1419 = vmatpush.bf16.msra.mxu0 %v1331
        %1420 = vmatpush.bf16.msra.mxu0 %v1329
        %1421 = vmatpush.bf16.msra.mxu0 %v1327
        %1422 = vmatpush.bf16.msra.mxu0 %v1325
        %1423 = vmatpush.bf16.msra.mxu0 %v1323
        %1424 = vmatpush.bf16.msra.mxu0 %v1321
        %1425 = vmatmul.bf16.gmra.mxu0 %v1120
        %v1426 = vpop.f32.mrf.mxu0
        %v1427 = vadd.f32 %v1173, %v1426
        %v1428 = vpop.f32.mrf.mxu0
        %1429 = vdwg.mxu0
        %1430 = vmatpush.bf16.msra.mxu0 %v1351
        %1431 = vmatpush.bf16.msra.mxu0 %v1349
        %1432 = vmatpush.bf16.msra.mxu0 %v1347
        %1433 = vmatpush.bf16.msra.mxu0 %v1345
        %1434 = vmatpush.bf16.msra.mxu0 %v1343
        %1435 = vmatpush.bf16.msra.mxu0 %v1341
        %1436 = vmatpush.bf16.msra.mxu0 %v1339
        %1437 = vmatpush.bf16.msra.mxu0 %v1337
        %1438 = vmatmul.bf16.gmra.mxu0 %v1121
        %v1439 = vpop.f32.mrf.mxu0
        %v1440 = vadd.f32 %v1427, %v1439
        %v1441 = vpop.f32.mrf.mxu0
        %1442 = vdwg.mxu0
        %1443 = vmatpush.bf16.msra.mxu0 %v1367
        %1444 = vmatpush.bf16.msra.mxu0 %v1365
        %1445 = vmatpush.bf16.msra.mxu0 %v1363
        %1446 = vmatpush.bf16.msra.mxu0 %v1361
        %1447 = vmatpush.bf16.msra.mxu0 %v1359
        %1448 = vmatpush.bf16.msra.mxu0 %v1357
        %1449 = vmatpush.bf16.msra.mxu0 %v1355
        %1450 = vmatpush.bf16.msra.mxu0 %v1353
        %1451 = vmatmul.bf16.gmra.mxu0 %v1122
        %v1452 = vpop.f32.mrf.mxu0
        %v1453 = vadd.f32 %v1440, %v1452
        %v1454 = vpop.f32.mrf.mxu0
        %1455 = vdwg.mxu0
        %1456 = vmatpush.bf16.msra.mxu0 %v1336
        %1457 = vmatpush.bf16.msra.mxu0 %v1334
        %1458 = vmatpush.bf16.msra.mxu0 %v1332
        %1459 = vmatpush.bf16.msra.mxu0 %v1330
        %1460 = vmatpush.bf16.msra.mxu0 %v1328
        %1461 = vmatpush.bf16.msra.mxu0 %v1326
        %1462 = vmatpush.bf16.msra.mxu0 %v1324
        %1463 = vmatpush.bf16.msra.mxu0 %v1322
        %1464 = vmatmul.bf16.gmra.mxu0 %v1120
        %v1465 = vpop.f32.mrf.mxu0
        %v1466 = vadd.f32 %v1174, %v1465
        %v1467 = vpop.f32.mrf.mxu0
        %1468 = vdwg.mxu0
        %1469 = vmatpush.bf16.msra.mxu0 %v1352
        %1470 = vmatpush.bf16.msra.mxu0 %v1350
        %1471 = vmatpush.bf16.msra.mxu0 %v1348
        %1472 = vmatpush.bf16.msra.mxu0 %v1346
        %1473 = vmatpush.bf16.msra.mxu0 %v1344
        %1474 = vmatpush.bf16.msra.mxu0 %v1342
        %1475 = vmatpush.bf16.msra.mxu0 %v1340
        %1476 = vmatpush.bf16.msra.mxu0 %v1338
        %1477 = vmatmul.bf16.gmra.mxu0 %v1121
        %v1478 = vpop.f32.mrf.mxu0
        %v1479 = vadd.f32 %v1466, %v1478
        %v1480 = vpop.f32.mrf.mxu0
        %1481 = vdwg.mxu0
        %1482 = vmatpush.bf16.msra.mxu0 %v1368
        %1483 = vmatpush.bf16.msra.mxu0 %v1366
        %1484 = vmatpush.bf16.msra.mxu0 %v1364
        %1485 = vmatpush.bf16.msra.mxu0 %v1362
        %1486 = vmatpush.bf16.msra.mxu0 %v1360
        %1487 = vmatpush.bf16.msra.mxu0 %v1358
        %1488 = vmatpush.bf16.msra.mxu0 %v1356
        %1489 = vmatpush.bf16.msra.mxu0 %v1354
        %1490 = vmatmul.bf16.gmra.mxu0 %v1122
        %v1491 = vpop.f32.mrf.mxu0
        %v1492 = vadd.f32 %v1479, %v1491
        %v1493 = vpop.f32.mrf.mxu0
        %1494 = vdwg.mxu0
        %vm1495 = vcmp.ge.f32.partialorder %v1453, 0.0
        %vm1496 = vcmp.ge.f32.partialorder %v1492, 0.0
        %v1497 = vmul.f32 %v1453, 0.2
        %v1498 = vmul.f32 %v1492, 0.2
        %v1499 = vsel %vm1495, %v1453, %v1497
        %v1500 = vsel %vm1496, %v1492, %v1498
        %v1503 = vrot.slane %v1499, 7
        %v1504 = vrot.slane %v1500, 7
        %1507 = vst [vmem:[#allocation2] sm:$0xfe] %v1503
        %1508 = vst [vmem:[#allocation2 + $0x8] sm:$0xfe] %v1504
        %1509 = vst [vmem:[#allocation2 + $0x10] sm:$0x1] %v1503
        %1510 = vst [vmem:[#allocation2 + $0x18] sm:$0x1] %v1504
        %1511 = vst [vmem:[#allocation1] sm:$0xff] %v1499
        %1512 = vst [vmem:[#allocation1 + $0x9] sm:$0xff] %v1500
        %s1513 = scalar_lea.vmem [#allocation1], 1
        %v1514 = vld [vmem:[%s1513] ss:$9 sm:$0xff]
        %v1516 = vlaneseq
        %vm1517 = vcmp.ge.s32.totalorder %v1516, 0
        %vm1518 = vcmp.lt.s32.totalorder %v1516, 256
        %vm1519 = vmand %vm1517, %vm1518
        %1520 = vst.msk [vmem:[#allocation2] ss:$8 sm:$0x3] %vm1519, %v1514
        %1521 = vst.msk [vmem:[#allocation2] ss:$8 sm:$0x0] %vm1519, %v1514
        %1522 = vst [vmem:[#allocation1] sm:$0xff] %v1499
        %1523 = vst [vmem:[#allocation1 + $0x9] sm:$0xff] %v1500
        %s1524 = scalar_lea.vmem [#allocation1], 6
        %v1525 = vld [vmem:[%s1524] ss:$9 sm:$0xff]
        %s1527 = scalar_lea.vmem [#allocation2], 17
        %1528 = vst.msk [vmem:[%s1527] ss:$8 sm:$0x3] %vm1519, %v1525
        %1529 = vst.msk [vmem:[%s1527] ss:$8 sm:$0x0] %vm1519, %v1525
        %v1530 = vld [vmem:[#allocation2] sm:$0xff]
        %v1531 = vld [vmem:[#allocation2 + $0x8] sm:$0xff]
        %v1532 = vld [vmem:[#allocation2] sm:$0xfe]
        %v1533 = vld [vmem:[#allocation2 + $0x8] sm:$0xfe]
        %v1534 = vld [vmem:[#allocation2 + $0x10] sm:$0x1]
        %v1535 = vld [vmem:[#allocation2 + $0x18] sm:$0x1]
        %v1536 = vld [vmem:[#allocation2] sm:$0xfc]
        %v1537 = vld [vmem:[#allocation2 + $0x8] sm:$0xfc]
        %v1538 = vld [vmem:[#allocation2 + $0x10] sm:$0x3]
        %v1539 = vld [vmem:[#allocation2 + $0x18] sm:$0x3]
        %v1544 = vrot.slane %v1532, 1
        %v1545 = vrot.slane %v1534, 1
        %v1546 = vsel %vm839, %v1544, %v1545
        %v1547 = vrot.slane %v1533, 1
        %v1548 = vrot.slane %v1535, 1
        %v1549 = vsel %vm839, %v1547, %v1548
        %v1556 = vrot.slane %v1536, 2
        %v1557 = vrot.slane %v1538, 2
        %v1558 = vsel %vm846, %v1556, %v1557
        %v1559 = vrot.slane %v1537, 2
        %v1560 = vrot.slane %v1539, 2
        %v1561 = vsel %vm846, %v1559, %v1560
        %v1564 = vpack.c.bf16 %v1530, %v1530
        %v1565 = vpack.c.bf16 %v1531, %v1531
        %v1566 = vpack.c.bf16 %v1546, %v1546
        %v1567 = vpack.c.bf16 %v1549, %v1549
        %v1568 = vpack.c.bf16 %v1558, %v1558
        %v1569 = vpack.c.bf16 %v1561, %v1561
        %v1570 = vld [vmem:[#allocation5] sm:$0xff]
        %v1571 = vld [vmem:[#allocation5 + $0x8] sm:$0xff]
        %v1572 = vld [vmem:[#allocation5 + $0x10] sm:$0xff]
        %v1573 = vld [vmem:[#allocation5 + $0x18] sm:$0xff]
        %v1574 = vld [vmem:[#allocation5 + $0x20] sm:$0xff]
        %v1575 = vld [vmem:[#allocation5 + $0x28] sm:$0xff]
        %v1576 = vld [vmem:[#allocation5 + $0x30] sm:$0xff]
        %v1577 = vld [vmem:[#allocation5 + $0x38] sm:$0xff]
        %v1578 = vld [vmem:[#allocation5 + $0x40] sm:$0xff]
        %v1579 = vld [vmem:[#allocation5 + $0x48] sm:$0xff]
        %v1580 = vld [vmem:[#allocation5 + $0x50] sm:$0xff]
        %v1581 = vld [vmem:[#allocation5 + $0x58] sm:$0xff]
        %v1582 = vld [vmem:[#allocation5 + $0x60] sm:$0xff]
        %v1583 = vld [vmem:[#allocation5 + $0x68] sm:$0xff]
        %v1584 = vld [vmem:[#allocation5 + $0x70] sm:$0xff]
        %v1585 = vld [vmem:[#allocation5 + $0x78] sm:$0xff]
        %v1586 = vld [vmem:[#allocation5 + $0x80] sm:$0xff]
        %v1587 = vld [vmem:[#allocation5 + $0x88] sm:$0xff]
        %v1588 = vld [vmem:[#allocation5 + $0x90] sm:$0xff]
        %v1589 = vld [vmem:[#allocation5 + $0x98] sm:$0xff]
        %v1590 = vld [vmem:[#allocation5 + $0xa0] sm:$0xff]
        %v1591 = vld [vmem:[#allocation5 + $0xa8] sm:$0xff]
        %v1592 = vld [vmem:[#allocation5 + $0xb0] sm:$0xff]
        %v1593 = vld [vmem:[#allocation5 + $0xb8] sm:$0xff]
        %v1594 = vld [vmem:[#allocation5 + $0xc0] sm:$0xff]
        %v1595 = vld [vmem:[#allocation5 + $0xc8] sm:$0xff]
        %v1596 = vld [vmem:[#allocation5 + $0xd0] sm:$0xff]
        %v1597 = vld [vmem:[#allocation5 + $0xd8] sm:$0xff]
        %v1598 = vld [vmem:[#allocation5 + $0xe0] sm:$0xff]
        %v1599 = vld [vmem:[#allocation5 + $0xe8] sm:$0xff]
        %v1600 = vld [vmem:[#allocation5 + $0xf0] sm:$0xff]
        %v1601 = vld [vmem:[#allocation5 + $0xf8] sm:$0xff]
        %v1602 = vld [vmem:[#allocation5 + $0x100] sm:$0xff]
        %v1603 = vld [vmem:[#allocation5 + $0x108] sm:$0xff]
        %v1604 = vld [vmem:[#allocation5 + $0x110] sm:$0xff]
        %v1605 = vld [vmem:[#allocation5 + $0x118] sm:$0xff]
        %v1606 = vld [vmem:[#allocation5 + $0x120] sm:$0xff]
        %v1607 = vld [vmem:[#allocation5 + $0x128] sm:$0xff]
        %v1608 = vld [vmem:[#allocation5 + $0x130] sm:$0xff]
        %v1609 = vld [vmem:[#allocation5 + $0x138] sm:$0xff]
        %v1610 = vld [vmem:[#allocation5 + $0x140] sm:$0xff]
        %v1611 = vld [vmem:[#allocation5 + $0x148] sm:$0xff]
        %v1612 = vld [vmem:[#allocation5 + $0x150] sm:$0xff]
        %v1613 = vld [vmem:[#allocation5 + $0x158] sm:$0xff]
        %v1614 = vld [vmem:[#allocation5 + $0x160] sm:$0xff]
        %v1615 = vld [vmem:[#allocation5 + $0x168] sm:$0xff]
        %v1616 = vld [vmem:[#allocation5 + $0x170] sm:$0xff]
        %v1617 = vld [vmem:[#allocation5 + $0x178] sm:$0xff]
        %v1618 = vld [vmem:[#allocation5 + $0x180] sm:$0xff]
        %v1619 = vld [vmem:[#allocation5 + $0x188] sm:$0xff]
        %v1620 = vld [vmem:[#allocation5 + $0x190] sm:$0xff]
        %v1621 = vld [vmem:[#allocation5 + $0x198] sm:$0xff]
        %v1622 = vld [vmem:[#allocation5 + $0x1a0] sm:$0xff]
        %v1623 = vld [vmem:[#allocation5 + $0x1a8] sm:$0xff]
        %v1624 = vld [vmem:[#allocation5 + $0x1b0] sm:$0xff]
        %v1625 = vld [vmem:[#allocation5 + $0x1b8] sm:$0xff]
        %v1626 = vld [vmem:[#allocation5 + $0x1c0] sm:$0xff]
        %v1627 = vld [vmem:[#allocation5 + $0x1c8] sm:$0xff]
        %v1628 = vld [vmem:[#allocation5 + $0x1d0] sm:$0xff]
        %v1629 = vld [vmem:[#allocation5 + $0x1d8] sm:$0xff]
        %v1630 = vld [vmem:[#allocation5 + $0x1e0] sm:$0xff]
        %v1631 = vld [vmem:[#allocation5 + $0x1e8] sm:$0xff]
        %v1632 = vld [vmem:[#allocation5 + $0x1f0] sm:$0xff]
        %v1633 = vld [vmem:[#allocation5 + $0x1f8] sm:$0xff]
        %v1634 = vld [vmem:[#allocation5 + $0x200] sm:$0xff]
        %v1635 = vld [vmem:[#allocation5 + $0x208] sm:$0xff]
        %v1636 = vld [vmem:[#allocation5 + $0x210] sm:$0xff]
        %v1637 = vld [vmem:[#allocation5 + $0x218] sm:$0xff]
        %v1638 = vld [vmem:[#allocation5 + $0x220] sm:$0xff]
        %v1639 = vld [vmem:[#allocation5 + $0x228] sm:$0xff]
        %v1640 = vld [vmem:[#allocation5 + $0x230] sm:$0xff]
        %v1641 = vld [vmem:[#allocation5 + $0x238] sm:$0xff]
        %v1642 = vld [vmem:[#allocation5 + $0x240] sm:$0xff]
        %v1643 = vld [vmem:[#allocation5 + $0x248] sm:$0xff]
        %v1644 = vld [vmem:[#allocation5 + $0x250] sm:$0xff]
        %v1645 = vld [vmem:[#allocation5 + $0x258] sm:$0xff]
        %v1646 = vld [vmem:[#allocation5 + $0x260] sm:$0xff]
        %v1647 = vld [vmem:[#allocation5 + $0x268] sm:$0xff]
        %v1648 = vld [vmem:[#allocation5 + $0x270] sm:$0xff]
        %v1649 = vld [vmem:[#allocation5 + $0x278] sm:$0xff]
        %v1650 = vld [vmem:[#allocation5 + $0x280] sm:$0xff]
        %v1651 = vld [vmem:[#allocation5 + $0x288] sm:$0xff]
        %v1652 = vld [vmem:[#allocation5 + $0x290] sm:$0xff]
        %v1653 = vld [vmem:[#allocation5 + $0x298] sm:$0xff]
        %v1654 = vld [vmem:[#allocation5 + $0x2a0] sm:$0xff]
        %v1655 = vld [vmem:[#allocation5 + $0x2a8] sm:$0xff]
        %v1656 = vld [vmem:[#allocation5 + $0x2b0] sm:$0xff]
        %v1657 = vld [vmem:[#allocation5 + $0x2b8] sm:$0xff]
        %v1658 = vld [vmem:[#allocation5 + $0x2c0] sm:$0xff]
        %v1659 = vld [vmem:[#allocation5 + $0x2c8] sm:$0xff]
        %v1660 = vld [vmem:[#allocation5 + $0x2d0] sm:$0xff]
        %v1661 = vld [vmem:[#allocation5 + $0x2d8] sm:$0xff]
        %v1662 = vld [vmem:[#allocation5 + $0x2e0] sm:$0xff]
        %v1663 = vld [vmem:[#allocation5 + $0x2e8] sm:$0xff]
        %v1664 = vld [vmem:[#allocation5 + $0x2f0] sm:$0xff]
        %v1665 = vld [vmem:[#allocation5 + $0x2f8] sm:$0xff]
        %v1666 = vld [vmem:[%s9] sm:$0x3]
        %v1668 = vperm.slane %v1666, 0
        %v1669 = vperm.slane %v1666, 1
        %v1768 = vunpack.c.l.b16 %v1570
        %v1769 = vunpack.c.h.b16 %v1570
        %v1770 = vunpack.c.l.b16 %v1571
        %v1771 = vunpack.c.h.b16 %v1571
        %v1772 = vunpack.c.l.b16 %v1572
        %v1773 = vunpack.c.h.b16 %v1572
        %v1774 = vunpack.c.l.b16 %v1573
        %v1775 = vunpack.c.h.b16 %v1573
        %v1776 = vunpack.c.l.b16 %v1574
        %v1777 = vunpack.c.h.b16 %v1574
        %v1778 = vunpack.c.l.b16 %v1575
        %v1779 = vunpack.c.h.b16 %v1575
        %v1780 = vunpack.c.l.b16 %v1576
        %v1781 = vunpack.c.h.b16 %v1576
        %v1782 = vunpack.c.l.b16 %v1577
        %v1783 = vunpack.c.h.b16 %v1577
        %v1784 = vunpack.c.l.b16 %v1578
        %v1785 = vunpack.c.h.b16 %v1578
        %v1786 = vunpack.c.l.b16 %v1579
        %v1787 = vunpack.c.h.b16 %v1579
        %v1788 = vunpack.c.l.b16 %v1580
        %v1789 = vunpack.c.h.b16 %v1580
        %v1790 = vunpack.c.l.b16 %v1581
        %v1791 = vunpack.c.h.b16 %v1581
        %v1792 = vunpack.c.l.b16 %v1582
        %v1793 = vunpack.c.h.b16 %v1582
        %v1794 = vunpack.c.l.b16 %v1583
        %v1795 = vunpack.c.h.b16 %v1583
        %v1796 = vunpack.c.l.b16 %v1584
        %v1797 = vunpack.c.h.b16 %v1584
        %v1798 = vunpack.c.l.b16 %v1585
        %v1799 = vunpack.c.h.b16 %v1585
        %v1800 = vunpack.c.l.b16 %v1586
        %v1801 = vunpack.c.h.b16 %v1586
        %v1802 = vunpack.c.l.b16 %v1587
        %v1803 = vunpack.c.h.b16 %v1587
        %v1804 = vunpack.c.l.b16 %v1588
        %v1805 = vunpack.c.h.b16 %v1588
        %v1806 = vunpack.c.l.b16 %v1589
        %v1807 = vunpack.c.h.b16 %v1589
        %v1808 = vunpack.c.l.b16 %v1590
        %v1809 = vunpack.c.h.b16 %v1590
        %v1810 = vunpack.c.l.b16 %v1591
        %v1811 = vunpack.c.h.b16 %v1591
        %v1812 = vunpack.c.l.b16 %v1592
        %v1813 = vunpack.c.h.b16 %v1592
        %v1814 = vunpack.c.l.b16 %v1593
        %v1815 = vunpack.c.h.b16 %v1593
        %v1816 = vunpack.c.l.b16 %v1594
        %v1817 = vunpack.c.h.b16 %v1594
        %v1818 = vunpack.c.l.b16 %v1595
        %v1819 = vunpack.c.h.b16 %v1595
        %v1820 = vunpack.c.l.b16 %v1596
        %v1821 = vunpack.c.h.b16 %v1596
        %v1822 = vunpack.c.l.b16 %v1597
        %v1823 = vunpack.c.h.b16 %v1597
        %v1824 = vunpack.c.l.b16 %v1598
        %v1825 = vunpack.c.h.b16 %v1598
        %v1826 = vunpack.c.l.b16 %v1599
        %v1827 = vunpack.c.h.b16 %v1599
        %v1828 = vunpack.c.l.b16 %v1600
        %v1829 = vunpack.c.h.b16 %v1600
        %v1830 = vunpack.c.l.b16 %v1601
        %v1831 = vunpack.c.h.b16 %v1601
        %v1832 = vunpack.c.l.b16 %v1602
        %v1833 = vunpack.c.h.b16 %v1602
        %v1834 = vunpack.c.l.b16 %v1603
        %v1835 = vunpack.c.h.b16 %v1603
        %v1836 = vunpack.c.l.b16 %v1604
        %v1837 = vunpack.c.h.b16 %v1604
        %v1838 = vunpack.c.l.b16 %v1605
        %v1839 = vunpack.c.h.b16 %v1605
        %v1840 = vunpack.c.l.b16 %v1606
        %v1841 = vunpack.c.h.b16 %v1606
        %v1842 = vunpack.c.l.b16 %v1607
        %v1843 = vunpack.c.h.b16 %v1607
        %v1844 = vunpack.c.l.b16 %v1608
        %v1845 = vunpack.c.h.b16 %v1608
        %v1846 = vunpack.c.l.b16 %v1609
        %v1847 = vunpack.c.h.b16 %v1609
        %v1848 = vunpack.c.l.b16 %v1610
        %v1849 = vunpack.c.h.b16 %v1610
        %v1850 = vunpack.c.l.b16 %v1611
        %v1851 = vunpack.c.h.b16 %v1611
        %v1852 = vunpack.c.l.b16 %v1612
        %v1853 = vunpack.c.h.b16 %v1612
        %v1854 = vunpack.c.l.b16 %v1613
        %v1855 = vunpack.c.h.b16 %v1613
        %v1856 = vunpack.c.l.b16 %v1614
        %v1857 = vunpack.c.h.b16 %v1614
        %v1858 = vunpack.c.l.b16 %v1615
        %v1859 = vunpack.c.h.b16 %v1615
        %v1860 = vunpack.c.l.b16 %v1616
        %v1861 = vunpack.c.h.b16 %v1616
        %v1862 = vunpack.c.l.b16 %v1617
        %v1863 = vunpack.c.h.b16 %v1617
        %v1864 = vunpack.c.l.b16 %v1618
        %v1865 = vunpack.c.h.b16 %v1618
        %v1866 = vunpack.c.l.b16 %v1619
        %v1867 = vunpack.c.h.b16 %v1619
        %v1868 = vunpack.c.l.b16 %v1620
        %v1869 = vunpack.c.h.b16 %v1620
        %v1870 = vunpack.c.l.b16 %v1621
        %v1871 = vunpack.c.h.b16 %v1621
        %v1872 = vunpack.c.l.b16 %v1622
        %v1873 = vunpack.c.h.b16 %v1622
        %v1874 = vunpack.c.l.b16 %v1623
        %v1875 = vunpack.c.h.b16 %v1623
        %v1876 = vunpack.c.l.b16 %v1624
        %v1877 = vunpack.c.h.b16 %v1624
        %v1878 = vunpack.c.l.b16 %v1625
        %v1879 = vunpack.c.h.b16 %v1625
        %v1880 = vunpack.c.l.b16 %v1626
        %v1881 = vunpack.c.h.b16 %v1626
        %v1882 = vunpack.c.l.b16 %v1627
        %v1883 = vunpack.c.h.b16 %v1627
        %v1884 = vunpack.c.l.b16 %v1628
        %v1885 = vunpack.c.h.b16 %v1628
        %v1886 = vunpack.c.l.b16 %v1629
        %v1887 = vunpack.c.h.b16 %v1629
        %v1888 = vunpack.c.l.b16 %v1630
        %v1889 = vunpack.c.h.b16 %v1630
        %v1890 = vunpack.c.l.b16 %v1631
        %v1891 = vunpack.c.h.b16 %v1631
        %v1892 = vunpack.c.l.b16 %v1632
        %v1893 = vunpack.c.h.b16 %v1632
        %v1894 = vunpack.c.l.b16 %v1633
        %v1895 = vunpack.c.h.b16 %v1633
        %v1896 = vunpack.c.l.b16 %v1634
        %v1897 = vunpack.c.h.b16 %v1634
        %v1898 = vunpack.c.l.b16 %v1635
        %v1899 = vunpack.c.h.b16 %v1635
        %v1900 = vunpack.c.l.b16 %v1636
        %v1901 = vunpack.c.h.b16 %v1636
        %v1902 = vunpack.c.l.b16 %v1637
        %v1903 = vunpack.c.h.b16 %v1637
        %v1904 = vunpack.c.l.b16 %v1638
        %v1905 = vunpack.c.h.b16 %v1638
        %v1906 = vunpack.c.l.b16 %v1639
        %v1907 = vunpack.c.h.b16 %v1639
        %v1908 = vunpack.c.l.b16 %v1640
        %v1909 = vunpack.c.h.b16 %v1640
        %v1910 = vunpack.c.l.b16 %v1641
        %v1911 = vunpack.c.h.b16 %v1641
        %v1912 = vunpack.c.l.b16 %v1642
        %v1913 = vunpack.c.h.b16 %v1642
        %v1914 = vunpack.c.l.b16 %v1643
        %v1915 = vunpack.c.h.b16 %v1643
        %v1916 = vunpack.c.l.b16 %v1644
        %v1917 = vunpack.c.h.b16 %v1644
        %v1918 = vunpack.c.l.b16 %v1645
        %v1919 = vunpack.c.h.b16 %v1645
        %v1920 = vunpack.c.l.b16 %v1646
        %v1921 = vunpack.c.h.b16 %v1646
        %v1922 = vunpack.c.l.b16 %v1647
        %v1923 = vunpack.c.h.b16 %v1647
        %v1924 = vunpack.c.l.b16 %v1648
        %v1925 = vunpack.c.h.b16 %v1648
        %v1926 = vunpack.c.l.b16 %v1649
        %v1927 = vunpack.c.h.b16 %v1649
        %v1928 = vunpack.c.l.b16 %v1650
        %v1929 = vunpack.c.h.b16 %v1650
        %v1930 = vunpack.c.l.b16 %v1651
        %v1931 = vunpack.c.h.b16 %v1651
        %v1932 = vunpack.c.l.b16 %v1652
        %v1933 = vunpack.c.h.b16 %v1652
        %v1934 = vunpack.c.l.b16 %v1653
        %v1935 = vunpack.c.h.b16 %v1653
        %v1936 = vunpack.c.l.b16 %v1654
        %v1937 = vunpack.c.h.b16 %v1654
        %v1938 = vunpack.c.l.b16 %v1655
        %v1939 = vunpack.c.h.b16 %v1655
        %v1940 = vunpack.c.l.b16 %v1656
        %v1941 = vunpack.c.h.b16 %v1656
        %v1942 = vunpack.c.l.b16 %v1657
        %v1943 = vunpack.c.h.b16 %v1657
        %v1944 = vunpack.c.l.b16 %v1658
        %v1945 = vunpack.c.h.b16 %v1658
        %v1946 = vunpack.c.l.b16 %v1659
        %v1947 = vunpack.c.h.b16 %v1659
        %v1948 = vunpack.c.l.b16 %v1660
        %v1949 = vunpack.c.h.b16 %v1660
        %v1950 = vunpack.c.l.b16 %v1661
        %v1951 = vunpack.c.h.b16 %v1661
        %v1952 = vunpack.c.l.b16 %v1662
        %v1953 = vunpack.c.h.b16 %v1662
        %v1954 = vunpack.c.l.b16 %v1663
        %v1955 = vunpack.c.h.b16 %v1663
        %v1956 = vunpack.c.l.b16 %v1664
        %v1957 = vunpack.c.h.b16 %v1664
        %v1958 = vunpack.c.l.b16 %v1665
        %v1959 = vunpack.c.h.b16 %v1665
        %v1960 = vpack.c.b16 %v1770, %v1768
        %v1961 = vpack.c.b16 %v1771, %v1769
        %v1962 = vpack.c.b16 %v1774, %v1772
        %v1963 = vpack.c.b16 %v1775, %v1773
        %v1964 = vpack.c.b16 %v1778, %v1776
        %v1965 = vpack.c.b16 %v1779, %v1777
        %v1966 = vpack.c.b16 %v1782, %v1780
        %v1967 = vpack.c.b16 %v1783, %v1781
        %v1968 = vpack.c.b16 %v1786, %v1784
        %v1969 = vpack.c.b16 %v1787, %v1785
        %v1970 = vpack.c.b16 %v1790, %v1788
        %v1971 = vpack.c.b16 %v1791, %v1789
        %v1972 = vpack.c.b16 %v1794, %v1792
        %v1973 = vpack.c.b16 %v1795, %v1793
        %v1974 = vpack.c.b16 %v1798, %v1796
        %v1975 = vpack.c.b16 %v1799, %v1797
        %v1976 = vpack.c.b16 %v1802, %v1800
        %v1977 = vpack.c.b16 %v1803, %v1801
        %v1978 = vpack.c.b16 %v1806, %v1804
        %v1979 = vpack.c.b16 %v1807, %v1805
        %v1980 = vpack.c.b16 %v1810, %v1808
        %v1981 = vpack.c.b16 %v1811, %v1809
        %v1982 = vpack.c.b16 %v1814, %v1812
        %v1983 = vpack.c.b16 %v1815, %v1813
        %v1984 = vpack.c.b16 %v1818, %v1816
        %v1985 = vpack.c.b16 %v1819, %v1817
        %v1986 = vpack.c.b16 %v1822, %v1820
        %v1987 = vpack.c.b16 %v1823, %v1821
        %v1988 = vpack.c.b16 %v1826, %v1824
        %v1989 = vpack.c.b16 %v1827, %v1825
        %v1990 = vpack.c.b16 %v1830, %v1828
        %v1991 = vpack.c.b16 %v1831, %v1829
        %v1992 = vpack.c.b16 %v1834, %v1832
        %v1993 = vpack.c.b16 %v1835, %v1833
        %v1994 = vpack.c.b16 %v1838, %v1836
        %v1995 = vpack.c.b16 %v1839, %v1837
        %v1996 = vpack.c.b16 %v1842, %v1840
        %v1997 = vpack.c.b16 %v1843, %v1841
        %v1998 = vpack.c.b16 %v1846, %v1844
        %v1999 = vpack.c.b16 %v1847, %v1845
        %v2000 = vpack.c.b16 %v1850, %v1848
        %v2001 = vpack.c.b16 %v1851, %v1849
        %v2002 = vpack.c.b16 %v1854, %v1852
        %v2003 = vpack.c.b16 %v1855, %v1853
        %v2004 = vpack.c.b16 %v1858, %v1856
        %v2005 = vpack.c.b16 %v1859, %v1857
        %v2006 = vpack.c.b16 %v1862, %v1860
        %v2007 = vpack.c.b16 %v1863, %v1861
        %v2008 = vpack.c.b16 %v1866, %v1864
        %v2009 = vpack.c.b16 %v1867, %v1865
        %v2010 = vpack.c.b16 %v1870, %v1868
        %v2011 = vpack.c.b16 %v1871, %v1869
        %v2012 = vpack.c.b16 %v1874, %v1872
        %v2013 = vpack.c.b16 %v1875, %v1873
        %v2014 = vpack.c.b16 %v1878, %v1876
        %v2015 = vpack.c.b16 %v1879, %v1877
        %v2016 = vpack.c.b16 %v1882, %v1880
        %v2017 = vpack.c.b16 %v1883, %v1881
        %v2018 = vpack.c.b16 %v1886, %v1884
        %v2019 = vpack.c.b16 %v1887, %v1885
        %v2020 = vpack.c.b16 %v1890, %v1888
        %v2021 = vpack.c.b16 %v1891, %v1889
        %v2022 = vpack.c.b16 %v1894, %v1892
        %v2023 = vpack.c.b16 %v1895, %v1893
        %v2024 = vpack.c.b16 %v1898, %v1896
        %v2025 = vpack.c.b16 %v1899, %v1897
        %v2026 = vpack.c.b16 %v1902, %v1900
        %v2027 = vpack.c.b16 %v1903, %v1901
        %v2028 = vpack.c.b16 %v1906, %v1904
        %v2029 = vpack.c.b16 %v1907, %v1905
        %v2030 = vpack.c.b16 %v1910, %v1908
        %v2031 = vpack.c.b16 %v1911, %v1909
        %v2032 = vpack.c.b16 %v1914, %v1912
        %v2033 = vpack.c.b16 %v1915, %v1913
        %v2034 = vpack.c.b16 %v1918, %v1916
        %v2035 = vpack.c.b16 %v1919, %v1917
        %v2036 = vpack.c.b16 %v1922, %v1920
        %v2037 = vpack.c.b16 %v1923, %v1921
        %v2038 = vpack.c.b16 %v1926, %v1924
        %v2039 = vpack.c.b16 %v1927, %v1925
        %v2040 = vpack.c.b16 %v1930, %v1928
        %v2041 = vpack.c.b16 %v1931, %v1929
        %v2042 = vpack.c.b16 %v1934, %v1932
        %v2043 = vpack.c.b16 %v1935, %v1933
        %v2044 = vpack.c.b16 %v1938, %v1936
        %v2045 = vpack.c.b16 %v1939, %v1937
        %v2046 = vpack.c.b16 %v1942, %v1940
        %v2047 = vpack.c.b16 %v1943, %v1941
        %v2048 = vpack.c.b16 %v1946, %v1944
        %v2049 = vpack.c.b16 %v1947, %v1945
        %v2050 = vpack.c.b16 %v1950, %v1948
        %v2051 = vpack.c.b16 %v1951, %v1949
        %v2052 = vpack.c.b16 %v1954, %v1952
        %v2053 = vpack.c.b16 %v1955, %v1953
        %v2054 = vpack.c.b16 %v1958, %v1956
        %v2055 = vpack.c.b16 %v1959, %v1957
        %2152 = vmatpush.bf16.msra.mxu0 %v1974
        %2153 = vmatpush.bf16.msra.mxu0 %v1972
        %2154 = vmatpush.bf16.msra.mxu0 %v1970
        %2155 = vmatpush.bf16.msra.mxu0 %v1968
        %2156 = vmatpush.bf16.msra.mxu0 %v1966
        %2157 = vmatpush.bf16.msra.mxu0 %v1964
        %2158 = vmatpush.bf16.msra.mxu0 %v1962
        %2159 = vmatpush.bf16.msra.mxu0 %v1960
        %2160 = vmatmul.bf16.gmra.mxu0 %v1564
        %v2161 = vpop.f32.mrf.mxu0
        %v2162 = vadd.f32 %v1668, %v2161
        %v2163 = vpop.f32.mrf.mxu0
        %2164 = vdwg.mxu0
        %2165 = vmatpush.bf16.msra.mxu0 %v1990
        %2166 = vmatpush.bf16.msra.mxu0 %v1988
        %2167 = vmatpush.bf16.msra.mxu0 %v1986
        %2168 = vmatpush.bf16.msra.mxu0 %v1984
        %2169 = vmatpush.bf16.msra.mxu0 %v1982
        %2170 = vmatpush.bf16.msra.mxu0 %v1980
        %2171 = vmatpush.bf16.msra.mxu0 %v1978
        %2172 = vmatpush.bf16.msra.mxu0 %v1976
        %2173 = vmatmul.bf16.gmra.mxu0 %v1565
        %v2174 = vpop.f32.mrf.mxu0
        %v2175 = vadd.f32 %v2162, %v2174
        %v2176 = vpop.f32.mrf.mxu0
        %2177 = vdwg.mxu0
        %2178 = vmatpush.bf16.msra.mxu0 %v2006
        %2179 = vmatpush.bf16.msra.mxu0 %v2004
        %2180 = vmatpush.bf16.msra.mxu0 %v2002
        %2181 = vmatpush.bf16.msra.mxu0 %v2000
        %2182 = vmatpush.bf16.msra.mxu0 %v1998
        %2183 = vmatpush.bf16.msra.mxu0 %v1996
        %2184 = vmatpush.bf16.msra.mxu0 %v1994
        %2185 = vmatpush.bf16.msra.mxu0 %v1992
        %2186 = vmatmul.bf16.gmra.mxu0 %v1566
        %v2187 = vpop.f32.mrf.mxu0
        %v2188 = vadd.f32 %v2175, %v2187
        %v2189 = vpop.f32.mrf.mxu0
        %2190 = vdwg.mxu0
        %2191 = vmatpush.bf16.msra.mxu0 %v2022
        %2192 = vmatpush.bf16.msra.mxu0 %v2020
        %2193 = vmatpush.bf16.msra.mxu0 %v2018
        %2194 = vmatpush.bf16.msra.mxu0 %v2016
        %2195 = vmatpush.bf16.msra.mxu0 %v2014
        %2196 = vmatpush.bf16.msra.mxu0 %v2012
        %2197 = vmatpush.bf16.msra.mxu0 %v2010
        %2198 = vmatpush.bf16.msra.mxu0 %v2008
        %2199 = vmatmul.bf16.gmra.mxu0 %v1567
        %v2200 = vpop.f32.mrf.mxu0
        %v2201 = vadd.f32 %v2188, %v2200
        %v2202 = vpop.f32.mrf.mxu0
        %2203 = vdwg.mxu0
        %2204 = vmatpush.bf16.msra.mxu0 %v2038
        %2205 = vmatpush.bf16.msra.mxu0 %v2036
        %2206 = vmatpush.bf16.msra.mxu0 %v2034
        %2207 = vmatpush.bf16.msra.mxu0 %v2032
        %2208 = vmatpush.bf16.msra.mxu0 %v2030
        %2209 = vmatpush.bf16.msra.mxu0 %v2028
        %2210 = vmatpush.bf16.msra.mxu0 %v2026
        %2211 = vmatpush.bf16.msra.mxu0 %v2024
        %2212 = vmatmul.bf16.gmra.mxu0 %v1568
        %v2213 = vpop.f32.mrf.mxu0
        %v2214 = vadd.f32 %v2201, %v2213
        %v2215 = vpop.f32.mrf.mxu0
        %2216 = vdwg.mxu0
        %2217 = vmatpush.bf16.msra.mxu0 %v2054
        %2218 = vmatpush.bf16.msra.mxu0 %v2052
        %2219 = vmatpush.bf16.msra.mxu0 %v2050
        %2220 = vmatpush.bf16.msra.mxu0 %v2048
        %2221 = vmatpush.bf16.msra.mxu0 %v2046
        %2222 = vmatpush.bf16.msra.mxu0 %v2044
        %2223 = vmatpush.bf16.msra.mxu0 %v2042
        %2224 = vmatpush.bf16.msra.mxu0 %v2040
        %2225 = vmatmul.bf16.gmra.mxu0 %v1569
        %v2226 = vpop.f32.mrf.mxu0
        %v2227 = vadd.f32 %v2214, %v2226
        %v2228 = vpop.f32.mrf.mxu0
        %2229 = vdwg.mxu0
        %2230 = vmatpush.bf16.msra.mxu0 %v1975
        %2231 = vmatpush.bf16.msra.mxu0 %v1973
        %2232 = vmatpush.bf16.msra.mxu0 %v1971
        %2233 = vmatpush.bf16.msra.mxu0 %v1969
        %2234 = vmatpush.bf16.msra.mxu0 %v1967
        %2235 = vmatpush.bf16.msra.mxu0 %v1965
        %2236 = vmatpush.bf16.msra.mxu0 %v1963
        %2237 = vmatpush.bf16.msra.mxu0 %v1961
        %2238 = vmatmul.bf16.gmra.mxu0 %v1564
        %v2239 = vpop.f32.mrf.mxu0
        %v2240 = vadd.f32 %v1669, %v2239
        %v2241 = vpop.f32.mrf.mxu0
        %2242 = vdwg.mxu0
        %2243 = vmatpush.bf16.msra.mxu0 %v1991
        %2244 = vmatpush.bf16.msra.mxu0 %v1989
        %2245 = vmatpush.bf16.msra.mxu0 %v1987
        %2246 = vmatpush.bf16.msra.mxu0 %v1985
        %2247 = vmatpush.bf16.msra.mxu0 %v1983
        %2248 = vmatpush.bf16.msra.mxu0 %v1981
        %2249 = vmatpush.bf16.msra.mxu0 %v1979
        %2250 = vmatpush.bf16.msra.mxu0 %v1977
        %2251 = vmatmul.bf16.gmra.mxu0 %v1565
        %v2252 = vpop.f32.mrf.mxu0
        %v2253 = vadd.f32 %v2240, %v2252
        %v2254 = vpop.f32.mrf.mxu0
        %2255 = vdwg.mxu0
        %2256 = vmatpush.bf16.msra.mxu0 %v2007
        %2257 = vmatpush.bf16.msra.mxu0 %v2005
        %2258 = vmatpush.bf16.msra.mxu0 %v2003
        %2259 = vmatpush.bf16.msra.mxu0 %v2001
        %2260 = vmatpush.bf16.msra.mxu0 %v1999
        %2261 = vmatpush.bf16.msra.mxu0 %v1997
        %2262 = vmatpush.bf16.msra.mxu0 %v1995
        %2263 = vmatpush.bf16.msra.mxu0 %v1993
        %2264 = vmatmul.bf16.gmra.mxu0 %v1566
        %v2265 = vpop.f32.mrf.mxu0
        %v2266 = vadd.f32 %v2253, %v2265
        %v2267 = vpop.f32.mrf.mxu0
        %2268 = vdwg.mxu0
        %2269 = vmatpush.bf16.msra.mxu0 %v2023
        %2270 = vmatpush.bf16.msra.mxu0 %v2021
        %2271 = vmatpush.bf16.msra.mxu0 %v2019
        %2272 = vmatpush.bf16.msra.mxu0 %v2017
        %2273 = vmatpush.bf16.msra.mxu0 %v2015
        %2274 = vmatpush.bf16.msra.mxu0 %v2013
        %2275 = vmatpush.bf16.msra.mxu0 %v2011
        %2276 = vmatpush.bf16.msra.mxu0 %v2009
        %2277 = vmatmul.bf16.gmra.mxu0 %v1567
        %v2278 = vpop.f32.mrf.mxu0
        %v2279 = vadd.f32 %v2266, %v2278
        %v2280 = vpop.f32.mrf.mxu0
        %2281 = vdwg.mxu0
        %2282 = vmatpush.bf16.msra.mxu0 %v2039
        %2283 = vmatpush.bf16.msra.mxu0 %v2037
        %2284 = vmatpush.bf16.msra.mxu0 %v2035
        %2285 = vmatpush.bf16.msra.mxu0 %v2033
        %2286 = vmatpush.bf16.msra.mxu0 %v2031
        %2287 = vmatpush.bf16.msra.mxu0 %v2029
        %2288 = vmatpush.bf16.msra.mxu0 %v2027
        %2289 = vmatpush.bf16.msra.mxu0 %v2025
        %2290 = vmatmul.bf16.gmra.mxu0 %v1568
        %v2291 = vpop.f32.mrf.mxu0
        %v2292 = vadd.f32 %v2279, %v2291
        %v2293 = vpop.f32.mrf.mxu0
        %2294 = vdwg.mxu0
        %2295 = vmatpush.bf16.msra.mxu0 %v2055
        %2296 = vmatpush.bf16.msra.mxu0 %v2053
        %2297 = vmatpush.bf16.msra.mxu0 %v2051
        %2298 = vmatpush.bf16.msra.mxu0 %v2049
        %2299 = vmatpush.bf16.msra.mxu0 %v2047
        %2300 = vmatpush.bf16.msra.mxu0 %v2045
        %2301 = vmatpush.bf16.msra.mxu0 %v2043
        %2302 = vmatpush.bf16.msra.mxu0 %v2041
        %2303 = vmatmul.bf16.gmra.mxu0 %v1569
        %v2304 = vpop.f32.mrf.mxu0
        %v2305 = vadd.f32 %v2292, %v2304
        %v2306 = vpop.f32.mrf.mxu0
        %2307 = vdwg.mxu0
        %vm2308 = vcmp.ge.f32.partialorder %v2227, 0.0
        %vm2309 = vcmp.ge.f32.partialorder %v2305, 0.0
        %v2310 = vmul.f32 %v2227, 0.2
        %v2311 = vmul.f32 %v2305, 0.2
        %v2312 = vsel %vm2308, %v2227, %v2310
        %v2313 = vsel %vm2309, %v2305, %v2311
        %v2316 = vrot.slane %v2312, 7
        %v2317 = vrot.slane %v2313, 7
        %2320 = vst [vmem:[#allocation2] sm:$0xfe] %v2316
        %2321 = vst [vmem:[#allocation2 + $0x8] sm:$0xfe] %v2317
        %2322 = vst [vmem:[#allocation2 + $0x10] sm:$0x1] %v2316
        %2323 = vst [vmem:[#allocation2 + $0x18] sm:$0x1] %v2317
        %2324 = vst [vmem:[#allocation1] sm:$0xff] %v2312
        %2325 = vst [vmem:[#allocation1 + $0x9] sm:$0xff] %v2313
        %s2326 = scalar_lea.vmem [#allocation1], 1
        %v2327 = vld [vmem:[%s2326] ss:$9 sm:$0xff]
        %2329 = vst.msk [vmem:[#allocation2] ss:$8 sm:$0x3] %vm1519, %v2327
        %2330 = vst.msk [vmem:[#allocation2] ss:$8 sm:$0x0] %vm1519, %v2327
        %2331 = vst [vmem:[#allocation1] sm:$0xff] %v2312
        %2332 = vst [vmem:[#allocation1 + $0x9] sm:$0xff] %v2313
        %s2333 = scalar_lea.vmem [#allocation1], 6
        %v2334 = vld [vmem:[%s2333] ss:$9 sm:$0xff]
        %2336 = vst.msk [vmem:[%s1527] ss:$8 sm:$0x3] %vm1519, %v2334
        %2337 = vst.msk [vmem:[%s1527] ss:$8 sm:$0x0] %vm1519, %v2334
        %v2338 = vld [vmem:[#allocation2] sm:$0xff]
        %v2339 = vld [vmem:[#allocation2 + $0x8] sm:$0xff]
        %v2340 = vld [vmem:[#allocation2] sm:$0xfe]
        %v2341 = vld [vmem:[#allocation2 + $0x8] sm:$0xfe]
        %v2342 = vld [vmem:[#allocation2 + $0x10] sm:$0x1]
        %v2343 = vld [vmem:[#allocation2 + $0x18] sm:$0x1]
        %v2344 = vld [vmem:[#allocation2] sm:$0xfc]
        %v2345 = vld [vmem:[#allocation2 + $0x8] sm:$0xfc]
        %v2346 = vld [vmem:[#allocation2 + $0x10] sm:$0x3]
        %v2347 = vld [vmem:[#allocation2 + $0x18] sm:$0x3]
        %v2352 = vrot.slane %v2340, 1
        %v2353 = vrot.slane %v2342, 1
        %v2354 = vsel %vm839, %v2352, %v2353
        %v2355 = vrot.slane %v2341, 1
        %v2356 = vrot.slane %v2343, 1
        %v2357 = vsel %vm839, %v2355, %v2356
        %v2364 = vrot.slane %v2344, 2
        %v2365 = vrot.slane %v2346, 2
        %v2366 = vsel %vm846, %v2364, %v2365
        %v2367 = vrot.slane %v2345, 2
        %v2368 = vrot.slane %v2347, 2
        %v2369 = vsel %vm846, %v2367, %v2368
        %v2372 = vpack.c.bf16 %v2338, %v2338
        %v2373 = vpack.c.bf16 %v2339, %v2339
        %v2374 = vpack.c.bf16 %v2354, %v2354
        %v2375 = vpack.c.bf16 %v2357, %v2357
        %v2376 = vpack.c.bf16 %v2366, %v2366
        %v2377 = vpack.c.bf16 %v2369, %v2369
        %v2378 = vld [vmem:[#allocation7] sm:$0xf]
        %v2379 = vld [vmem:[#allocation7 + $0x4] sm:$0xf]
        %v2380 = vld [vmem:[#allocation7 + $0x8] sm:$0xf]
        %v2381 = vld [vmem:[#allocation7 + $0xc] sm:$0xf]
        %v2382 = vld [vmem:[#allocation7 + $0x10] sm:$0xf]
        %v2383 = vld [vmem:[#allocation7 + $0x14] sm:$0xf]
        %v2384 = vld [vmem:[#allocation7 + $0x18] sm:$0xf]
        %v2385 = vld [vmem:[#allocation7 + $0x1c] sm:$0xf]
        %v2386 = vld [vmem:[#allocation7 + $0x20] sm:$0xf]
        %v2387 = vld [vmem:[#allocation7 + $0x24] sm:$0xf]
        %v2388 = vld [vmem:[#allocation7 + $0x28] sm:$0xf]
        %v2389 = vld [vmem:[#allocation7 + $0x2c] sm:$0xf]
        %v2390 = vld [vmem:[#allocation7 + $0x30] sm:$0xf]
        %v2391 = vld [vmem:[#allocation7 + $0x34] sm:$0xf]
        %v2392 = vld [vmem:[#allocation7 + $0x38] sm:$0xf]
        %v2393 = vld [vmem:[#allocation7 + $0x3c] sm:$0xf]
        %v2394 = vld [vmem:[#allocation7 + $0x40] sm:$0xf]
        %v2395 = vld [vmem:[#allocation7 + $0x44] sm:$0xf]
        %v2396 = vld [vmem:[#allocation7 + $0x48] sm:$0xf]
        %v2397 = vld [vmem:[#allocation7 + $0x4c] sm:$0xf]
        %v2398 = vld [vmem:[#allocation7 + $0x50] sm:$0xf]
        %v2399 = vld [vmem:[#allocation7 + $0x54] sm:$0xf]
        %v2400 = vld [vmem:[#allocation7 + $0x58] sm:$0xf]
        %v2401 = vld [vmem:[#allocation7 + $0x5c] sm:$0xf]
        %v2402 = vld [vmem:[#allocation7 + $0x60] sm:$0xf]
        %v2403 = vld [vmem:[#allocation7 + $0x64] sm:$0xf]
        %v2404 = vld [vmem:[#allocation7 + $0x68] sm:$0xf]
        %v2405 = vld [vmem:[#allocation7 + $0x6c] sm:$0xf]
        %v2406 = vld [vmem:[#allocation7 + $0x70] sm:$0xf]
        %v2407 = vld [vmem:[#allocation7 + $0x74] sm:$0xf]
        %v2408 = vld [vmem:[#allocation7 + $0x78] sm:$0xf]
        %v2409 = vld [vmem:[#allocation7 + $0x7c] sm:$0xf]
        %v2410 = vld [vmem:[#allocation7 + $0x80] sm:$0xf]
        %v2411 = vld [vmem:[#allocation7 + $0x84] sm:$0xf]
        %v2412 = vld [vmem:[#allocation7 + $0x88] sm:$0xf]
        %v2413 = vld [vmem:[#allocation7 + $0x8c] sm:$0xf]
        %v2414 = vld [vmem:[#allocation7 + $0x90] sm:$0xf]
        %v2415 = vld [vmem:[#allocation7 + $0x94] sm:$0xf]
        %v2416 = vld [vmem:[#allocation7 + $0x98] sm:$0xf]
        %v2417 = vld [vmem:[#allocation7 + $0x9c] sm:$0xf]
        %v2418 = vld [vmem:[#allocation7 + $0xa0] sm:$0xf]
        %v2419 = vld [vmem:[#allocation7 + $0xa4] sm:$0xf]
        %v2420 = vld [vmem:[#allocation7 + $0xa8] sm:$0xf]
        %v2421 = vld [vmem:[#allocation7 + $0xac] sm:$0xf]
        %v2422 = vld [vmem:[#allocation7 + $0xb0] sm:$0xf]
        %v2423 = vld [vmem:[#allocation7 + $0xb4] sm:$0xf]
        %v2424 = vld [vmem:[#allocation7 + $0xb8] sm:$0xf]
        %v2425 = vld [vmem:[#allocation7 + $0xbc] sm:$0xf]
        %v2426 = vld [vmem:[#allocation7 + $0xc0] sm:$0xf]
        %v2427 = vld [vmem:[#allocation7 + $0xc4] sm:$0xf]
        %v2428 = vld [vmem:[#allocation7 + $0xc8] sm:$0xf]
        %v2429 = vld [vmem:[#allocation7 + $0xcc] sm:$0xf]
        %v2430 = vld [vmem:[#allocation7 + $0xd0] sm:$0xf]
        %v2431 = vld [vmem:[#allocation7 + $0xd4] sm:$0xf]
        %v2432 = vld [vmem:[#allocation7 + $0xd8] sm:$0xf]
        %v2433 = vld [vmem:[#allocation7 + $0xdc] sm:$0xf]
        %v2434 = vld [vmem:[#allocation7 + $0xe0] sm:$0xf]
        %v2435 = vld [vmem:[#allocation7 + $0xe4] sm:$0xf]
        %v2436 = vld [vmem:[#allocation7 + $0xe8] sm:$0xf]
        %v2437 = vld [vmem:[#allocation7 + $0xec] sm:$0xf]
        %v2438 = vld [vmem:[#allocation7 + $0xf0] sm:$0xf]
        %v2439 = vld [vmem:[#allocation7 + $0xf4] sm:$0xf]
        %v2440 = vld [vmem:[#allocation7 + $0xf8] sm:$0xf]
        %v2441 = vld [vmem:[#allocation7 + $0xfc] sm:$0xf]
        %v2442 = vld [vmem:[#allocation7 + $0x100] sm:$0xf]
        %v2443 = vld [vmem:[#allocation7 + $0x104] sm:$0xf]
        %v2444 = vld [vmem:[#allocation7 + $0x108] sm:$0xf]
        %v2445 = vld [vmem:[#allocation7 + $0x10c] sm:$0xf]
        %v2446 = vld [vmem:[#allocation7 + $0x110] sm:$0xf]
        %v2447 = vld [vmem:[#allocation7 + $0x114] sm:$0xf]
        %v2448 = vld [vmem:[#allocation7 + $0x118] sm:$0xf]
        %v2449 = vld [vmem:[#allocation7 + $0x11c] sm:$0xf]
        %v2450 = vld [vmem:[#allocation7 + $0x120] sm:$0xf]
        %v2451 = vld [vmem:[#allocation7 + $0x124] sm:$0xf]
        %v2452 = vld [vmem:[#allocation7 + $0x128] sm:$0xf]
        %v2453 = vld [vmem:[#allocation7 + $0x12c] sm:$0xf]
        %v2454 = vld [vmem:[#allocation7 + $0x130] sm:$0xf]
        %v2455 = vld [vmem:[#allocation7 + $0x134] sm:$0xf]
        %v2456 = vld [vmem:[#allocation7 + $0x138] sm:$0xf]
        %v2457 = vld [vmem:[#allocation7 + $0x13c] sm:$0xf]
        %v2458 = vld [vmem:[#allocation7 + $0x140] sm:$0xf]
        %v2459 = vld [vmem:[#allocation7 + $0x144] sm:$0xf]
        %v2460 = vld [vmem:[#allocation7 + $0x148] sm:$0xf]
        %v2461 = vld [vmem:[#allocation7 + $0x14c] sm:$0xf]
        %v2462 = vld [vmem:[#allocation7 + $0x150] sm:$0xf]
        %v2463 = vld [vmem:[#allocation7 + $0x154] sm:$0xf]
        %v2464 = vld [vmem:[#allocation7 + $0x158] sm:$0xf]
        %v2465 = vld [vmem:[#allocation7 + $0x15c] sm:$0xf]
        %v2466 = vld [vmem:[#allocation7 + $0x160] sm:$0xf]
        %v2467 = vld [vmem:[#allocation7 + $0x164] sm:$0xf]
        %v2468 = vld [vmem:[#allocation7 + $0x168] sm:$0xf]
        %v2469 = vld [vmem:[#allocation7 + $0x16c] sm:$0xf]
        %v2470 = vld [vmem:[#allocation7 + $0x170] sm:$0xf]
        %v2471 = vld [vmem:[#allocation7 + $0x174] sm:$0xf]
        %v2472 = vld [vmem:[#allocation7 + $0x178] sm:$0xf]
        %v2473 = vld [vmem:[#allocation7 + $0x17c] sm:$0xf]
        %v2474 = vld [vmem:[%s11] sm:$0x1]
        %v2476 = vperm.slane %v2474, 0
        %v2574 = vunpack.c.l.b16 %v2378
        %v2575 = vunpack.c.l.b16 %v2379
        %v2576 = vunpack.c.l.b16 %v2380
        %v2577 = vunpack.c.l.b16 %v2381
        %v2578 = vunpack.c.l.b16 %v2382
        %v2579 = vunpack.c.l.b16 %v2383
        %v2580 = vunpack.c.l.b16 %v2384
        %v2581 = vunpack.c.l.b16 %v2385
        %v2582 = vunpack.c.l.b16 %v2386
        %v2583 = vunpack.c.l.b16 %v2387
        %v2584 = vunpack.c.l.b16 %v2388
        %v2585 = vunpack.c.l.b16 %v2389
        %v2586 = vunpack.c.l.b16 %v2390
        %v2587 = vunpack.c.l.b16 %v2391
        %v2588 = vunpack.c.l.b16 %v2392
        %v2589 = vunpack.c.l.b16 %v2393
        %v2590 = vunpack.c.l.b16 %v2394
        %v2591 = vunpack.c.l.b16 %v2395
        %v2592 = vunpack.c.l.b16 %v2396
        %v2593 = vunpack.c.l.b16 %v2397
        %v2594 = vunpack.c.l.b16 %v2398
        %v2595 = vunpack.c.l.b16 %v2399
        %v2596 = vunpack.c.l.b16 %v2400
        %v2597 = vunpack.c.l.b16 %v2401
        %v2598 = vunpack.c.l.b16 %v2402
        %v2599 = vunpack.c.l.b16 %v2403
        %v2600 = vunpack.c.l.b16 %v2404
        %v2601 = vunpack.c.l.b16 %v2405
        %v2602 = vunpack.c.l.b16 %v2406
        %v2603 = vunpack.c.l.b16 %v2407
        %v2604 = vunpack.c.l.b16 %v2408
        %v2605 = vunpack.c.l.b16 %v2409
        %v2606 = vunpack.c.l.b16 %v2410
        %v2607 = vunpack.c.l.b16 %v2411
        %v2608 = vunpack.c.l.b16 %v2412
        %v2609 = vunpack.c.l.b16 %v2413
        %v2610 = vunpack.c.l.b16 %v2414
        %v2611 = vunpack.c.l.b16 %v2415
        %v2612 = vunpack.c.l.b16 %v2416
        %v2613 = vunpack.c.l.b16 %v2417
        %v2614 = vunpack.c.l.b16 %v2418
        %v2615 = vunpack.c.l.b16 %v2419
        %v2616 = vunpack.c.l.b16 %v2420
        %v2617 = vunpack.c.l.b16 %v2421
        %v2618 = vunpack.c.l.b16 %v2422
        %v2619 = vunpack.c.l.b16 %v2423
        %v2620 = vunpack.c.l.b16 %v2424
        %v2621 = vunpack.c.l.b16 %v2425
        %v2622 = vunpack.c.l.b16 %v2426
        %v2623 = vunpack.c.l.b16 %v2427
        %v2624 = vunpack.c.l.b16 %v2428
        %v2625 = vunpack.c.l.b16 %v2429
        %v2626 = vunpack.c.l.b16 %v2430
        %v2627 = vunpack.c.l.b16 %v2431
        %v2628 = vunpack.c.l.b16 %v2432
        %v2629 = vunpack.c.l.b16 %v2433
        %v2630 = vunpack.c.l.b16 %v2434
        %v2631 = vunpack.c.l.b16 %v2435
        %v2632 = vunpack.c.l.b16 %v2436
        %v2633 = vunpack.c.l.b16 %v2437
        %v2634 = vunpack.c.l.b16 %v2438
        %v2635 = vunpack.c.l.b16 %v2439
        %v2636 = vunpack.c.l.b16 %v2440
        %v2637 = vunpack.c.l.b16 %v2441
        %v2638 = vunpack.c.l.b16 %v2442
        %v2639 = vunpack.c.l.b16 %v2443
        %v2640 = vunpack.c.l.b16 %v2444
        %v2641 = vunpack.c.l.b16 %v2445
        %v2642 = vunpack.c.l.b16 %v2446
        %v2643 = vunpack.c.l.b16 %v2447
        %v2644 = vunpack.c.l.b16 %v2448
        %v2645 = vunpack.c.l.b16 %v2449
        %v2646 = vunpack.c.l.b16 %v2450
        %v2647 = vunpack.c.l.b16 %v2451
        %v2648 = vunpack.c.l.b16 %v2452
        %v2649 = vunpack.c.l.b16 %v2453
        %v2650 = vunpack.c.l.b16 %v2454
        %v2651 = vunpack.c.l.b16 %v2455
        %v2652 = vunpack.c.l.b16 %v2456
        %v2653 = vunpack.c.l.b16 %v2457
        %v2654 = vunpack.c.l.b16 %v2458
        %v2655 = vunpack.c.l.b16 %v2459
        %v2656 = vunpack.c.l.b16 %v2460
        %v2657 = vunpack.c.l.b16 %v2461
        %v2658 = vunpack.c.l.b16 %v2462
        %v2659 = vunpack.c.l.b16 %v2463
        %v2660 = vunpack.c.l.b16 %v2464
        %v2661 = vunpack.c.l.b16 %v2465
        %v2662 = vunpack.c.l.b16 %v2466
        %v2663 = vunpack.c.l.b16 %v2467
        %v2664 = vunpack.c.l.b16 %v2468
        %v2665 = vunpack.c.l.b16 %v2469
        %v2666 = vunpack.c.l.b16 %v2470
        %v2667 = vunpack.c.l.b16 %v2471
        %v2668 = vunpack.c.l.b16 %v2472
        %v2669 = vunpack.c.l.b16 %v2473
        %v2670 = vpack.c.b16 %v2575, %v2574
        %v2671 = vpack.c.b16 %v2577, %v2576
        %v2672 = vpack.c.b16 %v2579, %v2578
        %v2673 = vpack.c.b16 %v2581, %v2580
        %v2674 = vpack.c.b16 %v2583, %v2582
        %v2675 = vpack.c.b16 %v2585, %v2584
        %v2676 = vpack.c.b16 %v2587, %v2586
        %v2677 = vpack.c.b16 %v2589, %v2588
        %v2678 = vpack.c.b16 %v2591, %v2590
        %v2679 = vpack.c.b16 %v2593, %v2592
        %v2680 = vpack.c.b16 %v2595, %v2594
        %v2681 = vpack.c.b16 %v2597, %v2596
        %v2682 = vpack.c.b16 %v2599, %v2598
        %v2683 = vpack.c.b16 %v2601, %v2600
        %v2684 = vpack.c.b16 %v2603, %v2602
        %v2685 = vpack.c.b16 %v2605, %v2604
        %v2686 = vpack.c.b16 %v2607, %v2606
        %v2687 = vpack.c.b16 %v2609, %v2608
        %v2688 = vpack.c.b16 %v2611, %v2610
        %v2689 = vpack.c.b16 %v2613, %v2612
        %v2690 = vpack.c.b16 %v2615, %v2614
        %v2691 = vpack.c.b16 %v2617, %v2616
        %v2692 = vpack.c.b16 %v2619, %v2618
        %v2693 = vpack.c.b16 %v2621, %v2620
        %v2694 = vpack.c.b16 %v2623, %v2622
        %v2695 = vpack.c.b16 %v2625, %v2624
        %v2696 = vpack.c.b16 %v2627, %v2626
        %v2697 = vpack.c.b16 %v2629, %v2628
        %v2698 = vpack.c.b16 %v2631, %v2630
        %v2699 = vpack.c.b16 %v2633, %v2632
        %v2700 = vpack.c.b16 %v2635, %v2634
        %v2701 = vpack.c.b16 %v2637, %v2636
        %v2702 = vpack.c.b16 %v2639, %v2638
        %v2703 = vpack.c.b16 %v2641, %v2640
        %v2704 = vpack.c.b16 %v2643, %v2642
        %v2705 = vpack.c.b16 %v2645, %v2644
        %v2706 = vpack.c.b16 %v2647, %v2646
        %v2707 = vpack.c.b16 %v2649, %v2648
        %v2708 = vpack.c.b16 %v2651, %v2650
        %v2709 = vpack.c.b16 %v2653, %v2652
        %v2710 = vpack.c.b16 %v2655, %v2654
        %v2711 = vpack.c.b16 %v2657, %v2656
        %v2712 = vpack.c.b16 %v2659, %v2658
        %v2713 = vpack.c.b16 %v2661, %v2660
        %v2714 = vpack.c.b16 %v2663, %v2662
        %v2715 = vpack.c.b16 %v2665, %v2664
        %v2716 = vpack.c.b16 %v2667, %v2666
        %v2717 = vpack.c.b16 %v2669, %v2668
        %2766 = vmatpush.bf16.msra.mxu0 %v2677
        %2767 = vmatpush.bf16.msra.mxu0 %v2676
        %2768 = vmatpush.bf16.msra.mxu0 %v2675
        %2769 = vmatpush.bf16.msra.mxu0 %v2674
        %2770 = vmatpush.bf16.msra.mxu0 %v2673
        %2771 = vmatpush.bf16.msra.mxu0 %v2672
        %2772 = vmatpush.bf16.msra.mxu0 %v2671
        %2773 = vmatpush.bf16.msra.mxu0 %v2670
        %2774 = vmatmul.bf16.gmra.mxu0 %v2372
        %v2775 = vpop.f32.mrf.mxu0
        %v2776 = vadd.f32 %v2476, %v2775
        %v2777 = vpop.f32.mrf.mxu0
        %2778 = vdwg.mxu0
        %2779 = vmatpush.bf16.msra.mxu0 %v2685
        %2780 = vmatpush.bf16.msra.mxu0 %v2684
        %2781 = vmatpush.bf16.msra.mxu0 %v2683
        %2782 = vmatpush.bf16.msra.mxu0 %v2682
        %2783 = vmatpush.bf16.msra.mxu0 %v2681
        %2784 = vmatpush.bf16.msra.mxu0 %v2680
        %2785 = vmatpush.bf16.msra.mxu0 %v2679
        %2786 = vmatpush.bf16.msra.mxu0 %v2678
        %2787 = vmatmul.bf16.gmra.mxu0 %v2373
        %v2788 = vpop.f32.mrf.mxu0
        %v2789 = vadd.f32 %v2776, %v2788
        %v2790 = vpop.f32.mrf.mxu0
        %2791 = vdwg.mxu0
        %2792 = vmatpush.bf16.msra.mxu0 %v2693
        %2793 = vmatpush.bf16.msra.mxu0 %v2692
        %2794 = vmatpush.bf16.msra.mxu0 %v2691
        %2795 = vmatpush.bf16.msra.mxu0 %v2690
        %2796 = vmatpush.bf16.msra.mxu0 %v2689
        %2797 = vmatpush.bf16.msra.mxu0 %v2688
        %2798 = vmatpush.bf16.msra.mxu0 %v2687
        %2799 = vmatpush.bf16.msra.mxu0 %v2686
        %2800 = vmatmul.bf16.gmra.mxu0 %v2374
        %v2801 = vpop.f32.mrf.mxu0
        %v2802 = vadd.f32 %v2789, %v2801
        %v2803 = vpop.f32.mrf.mxu0
        %2804 = vdwg.mxu0
        %2805 = vmatpush.bf16.msra.mxu0 %v2701
        %2806 = vmatpush.bf16.msra.mxu0 %v2700
        %2807 = vmatpush.bf16.msra.mxu0 %v2699
        %2808 = vmatpush.bf16.msra.mxu0 %v2698
        %2809 = vmatpush.bf16.msra.mxu0 %v2697
        %2810 = vmatpush.bf16.msra.mxu0 %v2696
        %2811 = vmatpush.bf16.msra.mxu0 %v2695
        %2812 = vmatpush.bf16.msra.mxu0 %v2694
        %2813 = vmatmul.bf16.gmra.mxu0 %v2375
        %v2814 = vpop.f32.mrf.mxu0
        %v2815 = vadd.f32 %v2802, %v2814
        %v2816 = vpop.f32.mrf.mxu0
        %2817 = vdwg.mxu0
        %2818 = vmatpush.bf16.msra.mxu0 %v2709
        %2819 = vmatpush.bf16.msra.mxu0 %v2708
        %2820 = vmatpush.bf16.msra.mxu0 %v2707
        %2821 = vmatpush.bf16.msra.mxu0 %v2706
        %2822 = vmatpush.bf16.msra.mxu0 %v2705
        %2823 = vmatpush.bf16.msra.mxu0 %v2704
        %2824 = vmatpush.bf16.msra.mxu0 %v2703
        %2825 = vmatpush.bf16.msra.mxu0 %v2702
        %2826 = vmatmul.bf16.gmra.mxu0 %v2376
        %v2827 = vpop.f32.mrf.mxu0
        %v2828 = vadd.f32 %v2815, %v2827
        %v2829 = vpop.f32.mrf.mxu0
        %2830 = vdwg.mxu0
        %2831 = vmatpush.bf16.msra.mxu0 %v2717
        %2832 = vmatpush.bf16.msra.mxu0 %v2716
        %2833 = vmatpush.bf16.msra.mxu0 %v2715
        %2834 = vmatpush.bf16.msra.mxu0 %v2714
        %2835 = vmatpush.bf16.msra.mxu0 %v2713
        %2836 = vmatpush.bf16.msra.mxu0 %v2712
        %2837 = vmatpush.bf16.msra.mxu0 %v2711
        %2838 = vmatpush.bf16.msra.mxu0 %v2710
        %2839 = vmatmul.bf16.gmra.mxu0 %v2377
        %v2840 = vpop.f32.mrf.mxu0
        %v2841 = vadd.f32 %v2828, %v2840
        %v2842 = vpop.f32.mrf.mxu0
        %2843 = vdwg.mxu0
        %v2844 = vadd.f32 %v2841, %v818
        %2845 = vst [vmem:[%s812] sm:$0xff] %v2844
        %v2846 = vld [vmem:[%s3] sm:$0xff]
        %v2847 = vld [vmem:[%s3 + $0x8] sm:$0xff]
        %2849 = vset.pattern.permute.xlu0 0
        %2850 = vperm.xlu0 %2849, %v2846
        %v2851 = vpop.permute.xlu0 %2850
        %2854 = vset.pattern.permute.xlu0 0
        %2855 = vperm.xlu0 %2854, %v2847
        %v2856 = vpop.permute.xlu0 %2855
        %v2858 = vperm.slane %v2844, 0
        %v2859 = vmul.f32 %v2851, %v2858
        %v2860 = vmul.f32 %v2856, %v2858
        %v2861 = vadd.f32 %v2859, 0.0
        %v2862 = vadd.f32 %v2860, 0.0
        %s2863 = scalar_lea.vmem %s3, 16
        %v2864 = vld [vmem:[%s2863] sm:$0xff]
        %v2865 = vld [vmem:[%s2863 + $0x8] sm:$0xff]
        %2867 = vset.pattern.permute.xlu0 0
        %2868 = vperm.xlu0 %2867, %v2864
        %v2869 = vpop.permute.xlu0 %2868
        %2872 = vset.pattern.permute.xlu0 0
        %2873 = vperm.xlu0 %2872, %v2865
        %v2874 = vpop.permute.xlu0 %2873
        %v2876 = vperm.slane %v2844, 1
        %v2877 = vmul.f32 %v2869, %v2876
        %v2878 = vmul.f32 %v2874, %v2876
        %v2879 = vadd.f32 %v2861, %v2877
        %v2880 = vadd.f32 %v2862, %v2878
        %s2881 = scalar_lea.vmem %s3, 32
        %v2882 = vld [vmem:[%s2881] sm:$0xff]
        %v2883 = vld [vmem:[%s2881 + $0x8] sm:$0xff]
        %2885 = vset.pattern.permute.xlu0 0
        %2886 = vperm.xlu0 %2885, %v2882
        %v2887 = vpop.permute.xlu0 %2886
        %2890 = vset.pattern.permute.xlu0 0
        %2891 = vperm.xlu0 %2890, %v2883
        %v2892 = vpop.permute.xlu0 %2891
        %v2894 = vperm.slane %v2844, 2
        %v2895 = vmul.f32 %v2887, %v2894
        %v2896 = vmul.f32 %v2892, %v2894
        %v2897 = vadd.f32 %v2879, %v2895
        %v2898 = vadd.f32 %v2880, %v2896
        %s2899 = scalar_lea.vmem %s3, 48
        %v2900 = vld [vmem:[%s2899] sm:$0xff]
        %v2901 = vld [vmem:[%s2899 + $0x8] sm:$0xff]
        %2903 = vset.pattern.permute.xlu0 0
        %2904 = vperm.xlu0 %2903, %v2900
        %v2905 = vpop.permute.xlu0 %2904
        %2908 = vset.pattern.permute.xlu0 0
        %2909 = vperm.xlu0 %2908, %v2901
        %v2910 = vpop.permute.xlu0 %2909
        %v2912 = vperm.slane %v2844, 3
        %v2913 = vmul.f32 %v2905, %v2912
        %v2914 = vmul.f32 %v2910, %v2912
        %v2915 = vadd.f32 %v2897, %v2913
        %v2916 = vadd.f32 %v2898, %v2914
        %s2917 = scalar_lea.vmem %s3, 64
        %v2918 = vld [vmem:[%s2917] sm:$0xff]
        %v2919 = vld [vmem:[%s2917 + $0x8] sm:$0xff]
        %2921 = vset.pattern.permute.xlu0 0
        %2922 = vperm.xlu0 %2921, %v2918
        %v2923 = vpop.permute.xlu0 %2922
        %2926 = vset.pattern.permute.xlu0 0
        %2927 = vperm.xlu0 %2926, %v2919
        %v2928 = vpop.permute.xlu0 %2927
        %v2930 = vperm.slane %v2844, 4
        %v2931 = vmul.f32 %v2923, %v2930
        %v2932 = vmul.f32 %v2928, %v2930
        %v2933 = vadd.f32 %v2915, %v2931
        %v2934 = vadd.f32 %v2916, %v2932
        %s2935 = scalar_lea.vmem %s3, 80
        %v2936 = vld [vmem:[%s2935] sm:$0xff]
        %v2937 = vld [vmem:[%s2935 + $0x8] sm:$0xff]
        %2939 = vset.pattern.permute.xlu0 0
        %2940 = vperm.xlu0 %2939, %v2936
        %v2941 = vpop.permute.xlu0 %2940
        %2944 = vset.pattern.permute.xlu0 0
        %2945 = vperm.xlu0 %2944, %v2937
        %v2946 = vpop.permute.xlu0 %2945
        %v2948 = vperm.slane %v2844, 5
        %v2949 = vmul.f32 %v2941, %v2948
        %v2950 = vmul.f32 %v2946, %v2948
        %v2951 = vadd.f32 %v2933, %v2949
        %v2952 = vadd.f32 %v2934, %v2950
        %s2953 = scalar_lea.vmem %s3, 96
        %v2954 = vld [vmem:[%s2953] sm:$0xff]
        %v2955 = vld [vmem:[%s2953 + $0x8] sm:$0xff]
        %2957 = vset.pattern.permute.xlu0 0
        %2958 = vperm.xlu0 %2957, %v2954
        %v2959 = vpop.permute.xlu0 %2958
        %2962 = vset.pattern.permute.xlu0 0
        %2963 = vperm.xlu0 %2962, %v2955
        %v2964 = vpop.permute.xlu0 %2963
        %v2966 = vperm.slane %v2844, 6
        %v2967 = vmul.f32 %v2959, %v2966
        %v2968 = vmul.f32 %v2964, %v2966
        %v2969 = vadd.f32 %v2951, %v2967
        %v2970 = vadd.f32 %v2952, %v2968
        %s2971 = scalar_lea.vmem %s3, 112
        %v2972 = vld [vmem:[%s2971] sm:$0xff]
        %v2973 = vld [vmem:[%s2971 + $0x8] sm:$0xff]
        %2975 = vset.pattern.permute.xlu0 0
        %2976 = vperm.xlu0 %2975, %v2972
        %v2977 = vpop.permute.xlu0 %2976
        %2980 = vset.pattern.permute.xlu0 0
        %2981 = vperm.xlu0 %2980, %v2973
        %v2982 = vpop.permute.xlu0 %2981
        %v2984 = vperm.slane %v2844, 7
        %v2985 = vmul.f32 %v2977, %v2984
        %v2986 = vmul.f32 %v2982, %v2984
        %v2987 = vadd.f32 %v2969, %v2985
        %v2988 = vadd.f32 %v2970, %v2986
        %v2989 = vld [vmem:[%s808] sm:$0xff]
        %v2990 = vld [vmem:[%s808 + $0x8] sm:$0xff]
        %v2991 = vadd.f32 %v2987, %v2989
        %v2992 = vadd.f32 %v2988, %v2990
        %vm2995 = vcmask 1040384
        %v2996 = vrot.slane %v2991, 7
        %v2997 = vrot.slane %v2992, 7
        %v2998 = vsel %vm2995, %v2996, %v2997
        %3002 = vst [vmem:[#allocation2] sm:$0xfe] %v2996
        %3003 = vst [vmem:[#allocation2 + $0x10] sm:$0xff] %v2998
        %3004 = vst [vmem:[#allocation2 + $0x20] sm:$0x1] %v2997
        %v3005 = vrot.slane %v2991, 1
        %3007 = vst [vmem:[#allocation2] sm:$0x1] %v3005
        %v3008 = vrot.slane %v2992, 6
        %3010 = vst [vmem:[#allocation2 + $0x21] sm:$0x1] %v3008
        %v3011 = vld [vmem:[#allocation2] sm:$0xff]
        %v3012 = vld [vmem:[#allocation2 + $0x10] sm:$0xff]
        %v3013 = vld [vmem:[#allocation2] sm:$0xfe]
        %v3014 = vld [vmem:[#allocation2 + $0x20] sm:$0x1]
        %v3015 = vld [vmem:[#allocation2] sm:$0xfc]
        %v3016 = vld [vmem:[#allocation2 + $0x20] sm:$0x3]
        %v3020 = vrot.slane %v3013, 1
        %v3021 = vrot.slane %v3012, 1
        %v3022 = vsel %vm839, %v3020, %v3021
        %v3023 = vrot.slane %v3014, 1
        %v3024 = vsel %vm839, %v3021, %v3023
        %v3029 = vrot.slane %v3015, 2
        %v3030 = vrot.slane %v3012, 2
        %v3031 = vsel %vm846, %v3029, %v3030
        %v3032 = vrot.slane %v3016, 2
        %v3033 = vsel %vm846, %v3030, %v3032
        %v3036 = vpack.c.bf16 %v3012, %v3011
        %v3037 = vpack.c.bf16 %v3024, %v3022
        %v3038 = vpack.c.bf16 %v3033, %v3031
        %v3039 = vld [vmem:[#allocation8] sm:$0xf]
        %v3040 = vld [vmem:[#allocation8 + $0x4] sm:$0xf]
        %v3041 = vld [vmem:[#allocation8 + $0x8] sm:$0xf]
        %v3042 = vld [vmem:[#allocation8 + $0xc] sm:$0xf]
        %v3043 = vld [vmem:[#allocation8 + $0x10] sm:$0xf]
        %v3044 = vld [vmem:[#allocation8 + $0x14] sm:$0xf]
        %v3045 = vld [vmem:[#allocation8 + $0x18] sm:$0xf]
        %v3046 = vld [vmem:[#allocation8 + $0x1c] sm:$0xf]
        %v3047 = vld [vmem:[#allocation8 + $0x20] sm:$0xf]
        %v3048 = vld [vmem:[#allocation8 + $0x24] sm:$0xf]
        %v3049 = vld [vmem:[#allocation8 + $0x28] sm:$0xf]
        %v3050 = vld [vmem:[#allocation8 + $0x2c] sm:$0xf]
        %v3051 = vld [vmem:[#allocation8 + $0x30] sm:$0xf]
        %v3052 = vld [vmem:[#allocation8 + $0x34] sm:$0xf]
        %v3053 = vld [vmem:[#allocation8 + $0x38] sm:$0xf]
        %v3054 = vld [vmem:[#allocation8 + $0x3c] sm:$0xf]
        %v3055 = vld [vmem:[#allocation8 + $0x40] sm:$0xf]
        %v3056 = vld [vmem:[#allocation8 + $0x44] sm:$0xf]
        %v3057 = vld [vmem:[#allocation8 + $0x48] sm:$0xf]
        %v3058 = vld [vmem:[#allocation8 + $0x4c] sm:$0xf]
        %v3059 = vld [vmem:[#allocation8 + $0x50] sm:$0xf]
        %v3060 = vld [vmem:[#allocation8 + $0x54] sm:$0xf]
        %v3061 = vld [vmem:[#allocation8 + $0x58] sm:$0xf]
        %v3062 = vld [vmem:[#allocation8 + $0x5c] sm:$0xf]
        %v3063 = vld [vmem:[#allocation8 + $0x60] sm:$0xf]
        %v3064 = vld [vmem:[#allocation8 + $0x64] sm:$0xf]
        %v3065 = vld [vmem:[#allocation8 + $0x68] sm:$0xf]
        %v3066 = vld [vmem:[#allocation8 + $0x6c] sm:$0xf]
        %v3067 = vld [vmem:[#allocation8 + $0x70] sm:$0xf]
        %v3068 = vld [vmem:[#allocation8 + $0x74] sm:$0xf]
        %v3069 = vld [vmem:[#allocation8 + $0x78] sm:$0xf]
        %v3070 = vld [vmem:[#allocation8 + $0x7c] sm:$0xf]
        %v3071 = vld [vmem:[#allocation8 + $0x80] sm:$0xf]
        %v3072 = vld [vmem:[#allocation8 + $0x84] sm:$0xf]
        %v3073 = vld [vmem:[#allocation8 + $0x88] sm:$0xf]
        %v3074 = vld [vmem:[#allocation8 + $0x8c] sm:$0xf]
        %v3075 = vld [vmem:[#allocation8 + $0x90] sm:$0xf]
        %v3076 = vld [vmem:[#allocation8 + $0x94] sm:$0xf]
        %v3077 = vld [vmem:[#allocation8 + $0x98] sm:$0xf]
        %v3078 = vld [vmem:[#allocation8 + $0x9c] sm:$0xf]
        %v3079 = vld [vmem:[#allocation8 + $0xa0] sm:$0xf]
        %v3080 = vld [vmem:[#allocation8 + $0xa4] sm:$0xf]
        %v3081 = vld [vmem:[#allocation8 + $0xa8] sm:$0xf]
        %v3082 = vld [vmem:[#allocation8 + $0xac] sm:$0xf]
        %v3083 = vld [vmem:[#allocation8 + $0xb0] sm:$0xf]
        %v3084 = vld [vmem:[#allocation8 + $0xb4] sm:$0xf]
        %v3085 = vld [vmem:[#allocation8 + $0xb8] sm:$0xf]
        %v3086 = vld [vmem:[#allocation8 + $0xbc] sm:$0xf]
        %v3087 = vld [vmem:[%s13] sm:$0x1]
        %v3089 = vperm.slane %v3087, 0
        %v3139 = vunpack.c.l.b16 %v3039
        %v3140 = vunpack.c.l.b16 %v3040
        %v3141 = vunpack.c.l.b16 %v3041
        %v3142 = vunpack.c.l.b16 %v3042
        %v3143 = vunpack.c.l.b16 %v3043
        %v3144 = vunpack.c.l.b16 %v3044
        %v3145 = vunpack.c.l.b16 %v3045
        %v3146 = vunpack.c.l.b16 %v3046
        %v3147 = vunpack.c.l.b16 %v3047
        %v3148 = vunpack.c.l.b16 %v3048
        %v3149 = vunpack.c.l.b16 %v3049
        %v3150 = vunpack.c.l.b16 %v3050
        %v3151 = vunpack.c.l.b16 %v3051
        %v3152 = vunpack.c.l.b16 %v3052
        %v3153 = vunpack.c.l.b16 %v3053
        %v3154 = vunpack.c.l.b16 %v3054
        %v3155 = vunpack.c.l.b16 %v3055
        %v3156 = vunpack.c.l.b16 %v3056
        %v3157 = vunpack.c.l.b16 %v3057
        %v3158 = vunpack.c.l.b16 %v3058
        %v3159 = vunpack.c.l.b16 %v3059
        %v3160 = vunpack.c.l.b16 %v3060
        %v3161 = vunpack.c.l.b16 %v3061
        %v3162 = vunpack.c.l.b16 %v3062
        %v3163 = vunpack.c.l.b16 %v3063
        %v3164 = vunpack.c.l.b16 %v3064
        %v3165 = vunpack.c.l.b16 %v3065
        %v3166 = vunpack.c.l.b16 %v3066
        %v3167 = vunpack.c.l.b16 %v3067
        %v3168 = vunpack.c.l.b16 %v3068
        %v3169 = vunpack.c.l.b16 %v3069
        %v3170 = vunpack.c.l.b16 %v3070
        %v3171 = vunpack.c.l.b16 %v3071
        %v3172 = vunpack.c.l.b16 %v3072
        %v3173 = vunpack.c.l.b16 %v3073
        %v3174 = vunpack.c.l.b16 %v3074
        %v3175 = vunpack.c.l.b16 %v3075
        %v3176 = vunpack.c.l.b16 %v3076
        %v3177 = vunpack.c.l.b16 %v3077
        %v3178 = vunpack.c.l.b16 %v3078
        %v3179 = vunpack.c.l.b16 %v3079
        %v3180 = vunpack.c.l.b16 %v3080
        %v3181 = vunpack.c.l.b16 %v3081
        %v3182 = vunpack.c.l.b16 %v3082
        %v3183 = vunpack.c.l.b16 %v3083
        %v3184 = vunpack.c.l.b16 %v3084
        %v3185 = vunpack.c.l.b16 %v3085
        %v3186 = vunpack.c.l.b16 %v3086
        %v3187 = vpack.c.b16 %v3140, %v3139
        %v3188 = vpack.c.b16 %v3142, %v3141
        %v3189 = vpack.c.b16 %v3144, %v3143
        %v3190 = vpack.c.b16 %v3146, %v3145
        %v3191 = vpack.c.b16 %v3148, %v3147
        %v3192 = vpack.c.b16 %v3150, %v3149
        %v3193 = vpack.c.b16 %v3152, %v3151
        %v3194 = vpack.c.b16 %v3154, %v3153
        %v3195 = vpack.c.b16 %v3156, %v3155
        %v3196 = vpack.c.b16 %v3158, %v3157
        %v3197 = vpack.c.b16 %v3160, %v3159
        %v3198 = vpack.c.b16 %v3162, %v3161
        %v3199 = vpack.c.b16 %v3164, %v3163
        %v3200 = vpack.c.b16 %v3166, %v3165
        %v3201 = vpack.c.b16 %v3168, %v3167
        %v3202 = vpack.c.b16 %v3170, %v3169
        %v3203 = vpack.c.b16 %v3172, %v3171
        %v3204 = vpack.c.b16 %v3174, %v3173
        %v3205 = vpack.c.b16 %v3176, %v3175
        %v3206 = vpack.c.b16 %v3178, %v3177
        %v3207 = vpack.c.b16 %v3180, %v3179
        %v3208 = vpack.c.b16 %v3182, %v3181
        %v3209 = vpack.c.b16 %v3184, %v3183
        %v3210 = vpack.c.b16 %v3186, %v3185
        %3235 = vmatpush.bf16.msra.mxu0 %v3194
        %3236 = vmatpush.bf16.msra.mxu0 %v3193
        %3237 = vmatpush.bf16.msra.mxu0 %v3192
        %3238 = vmatpush.bf16.msra.mxu0 %v3191
        %3239 = vmatpush.bf16.msra.mxu0 %v3190
        %3240 = vmatpush.bf16.msra.mxu0 %v3189
        %3241 = vmatpush.bf16.msra.mxu0 %v3188
        %3242 = vmatpush.bf16.msra.mxu0 %v3187
        %3243 = vmatmul.bf16.gmra.mxu0 %v3036
        %v3244 = vpop.f32.mrf.mxu0
        %v3245 = vadd.f32 %v3089, %v3244
        %v3246 = vpop.f32.mrf.mxu0
        %v3247 = vadd.f32 %v3089, %v3246
        %3248 = vdwg.mxu0
        %3249 = vmatpush.bf16.msra.mxu0 %v3202
        %3250 = vmatpush.bf16.msra.mxu0 %v3201
        %3251 = vmatpush.bf16.msra.mxu0 %v3200
        %3252 = vmatpush.bf16.msra.mxu0 %v3199
        %3253 = vmatpush.bf16.msra.mxu0 %v3198
        %3254 = vmatpush.bf16.msra.mxu0 %v3197
        %3255 = vmatpush.bf16.msra.mxu0 %v3196
        %3256 = vmatpush.bf16.msra.mxu0 %v3195
        %3257 = vmatmul.bf16.gmra.mxu0 %v3037
        %v3258 = vpop.f32.mrf.mxu0
        %v3259 = vadd.f32 %v3245, %v3258
        %v3260 = vpop.f32.mrf.mxu0
        %v3261 = vadd.f32 %v3247, %v3260
        %3262 = vdwg.mxu0
        %3263 = vmatpush.bf16.msra.mxu0 %v3210
        %3264 = vmatpush.bf16.msra.mxu0 %v3209
        %3265 = vmatpush.bf16.msra.mxu0 %v3208
        %3266 = vmatpush.bf16.msra.mxu0 %v3207
        %3267 = vmatpush.bf16.msra.mxu0 %v3206
        %3268 = vmatpush.bf16.msra.mxu0 %v3205
        %3269 = vmatpush.bf16.msra.mxu0 %v3204
        %3270 = vmatpush.bf16.msra.mxu0 %v3203
        %3271 = vmatmul.bf16.gmra.mxu0 %v3038
        %v3272 = vpop.f32.mrf.mxu0
        %v3273 = vadd.f32 %v3259, %v3272
        %v3274 = vpop.f32.mrf.mxu0
        %v3275 = vadd.f32 %v3261, %v3274
        %3276 = vdwg.mxu0
        %vm3277 = vcmp.ge.f32.partialorder %v3273, 0.0
        %vm3278 = vcmp.ge.f32.partialorder %v3275, 0.0
        %v3279 = vmul.f32 %v3273, 0.2
        %v3280 = vmul.f32 %v3275, 0.2
        %v3281 = vsel %vm3277, %v3273, %v3279
        %v3282 = vsel %vm3278, %v3275, %v3280
        %v3285 = vrot.slane %v3281, 7
        %v3286 = vrot.slane %v3282, 7
        %v3287 = vsel %vm2995, %v3285, %v3286
        %3291 = vst [vmem:[#allocation2] sm:$0xfe] %v3285
        %3292 = vst [vmem:[#allocation2 + $0x10] sm:$0xff] %v3287
        %3293 = vst [vmem:[#allocation2 + $0x20] sm:$0x1] %v3286
        %v3294 = vrot.slane %v3281, 1
        %3296 = vst [vmem:[#allocation2] sm:$0x1] %v3294
        %v3297 = vrot.slane %v3282, 6
        %3299 = vst [vmem:[#allocation2 + $0x21] sm:$0x1] %v3297
        %v3300 = vld [vmem:[#allocation2] sm:$0xff]
        %v3301 = vld [vmem:[#allocation2 + $0x10] sm:$0xff]
        %v3302 = vld [vmem:[#allocation2] sm:$0xfe]
        %v3303 = vld [vmem:[#allocation2 + $0x20] sm:$0x1]
        %v3304 = vld [vmem:[#allocation2] sm:$0xfc]
        %v3305 = vld [vmem:[#allocation2 + $0x20] sm:$0x3]
        %v3309 = vrot.slane %v3302, 1
        %v3310 = vrot.slane %v3301, 1
        %v3311 = vsel %vm839, %v3309, %v3310
        %v3312 = vrot.slane %v3303, 1
        %v3313 = vsel %vm839, %v3310, %v3312
        %v3318 = vrot.slane %v3304, 2
        %v3319 = vrot.slane %v3301, 2
        %v3320 = vsel %vm846, %v3318, %v3319
        %v3321 = vrot.slane %v3305, 2
        %v3322 = vsel %vm846, %v3319, %v3321
        %v3325 = vpack.c.bf16 %v3301, %v3300
        %v3326 = vpack.c.bf16 %v3313, %v3311
        %v3327 = vpack.c.bf16 %v3322, %v3320
        %v3328 = vld [vmem:[#allocation10] sm:$0xff]
        %v3329 = vld [vmem:[#allocation10 + $0x8] sm:$0xff]
        %v3330 = vld [vmem:[#allocation10 + $0x10] sm:$0xff]
        %v3331 = vld [vmem:[#allocation10 + $0x18] sm:$0xff]
        %v3332 = vld [vmem:[#allocation10 + $0x20] sm:$0xff]
        %v3333 = vld [vmem:[#allocation10 + $0x28] sm:$0xff]
        %v3334 = vld [vmem:[#allocation10 + $0x30] sm:$0xff]
        %v3335 = vld [vmem:[#allocation10 + $0x38] sm:$0xff]
        %v3336 = vld [vmem:[#allocation10 + $0x40] sm:$0xff]
        %v3337 = vld [vmem:[#allocation10 + $0x48] sm:$0xff]
        %v3338 = vld [vmem:[#allocation10 + $0x50] sm:$0xff]
        %v3339 = vld [vmem:[#allocation10 + $0x58] sm:$0xff]
        %v3340 = vld [vmem:[#allocation10 + $0x60] sm:$0xff]
        %v3341 = vld [vmem:[#allocation10 + $0x68] sm:$0xff]
        %v3342 = vld [vmem:[#allocation10 + $0x70] sm:$0xff]
        %v3343 = vld [vmem:[#allocation10 + $0x78] sm:$0xff]
        %v3344 = vld [vmem:[#allocation10 + $0x80] sm:$0xff]
        %v3345 = vld [vmem:[#allocation10 + $0x88] sm:$0xff]
        %v3346 = vld [vmem:[#allocation10 + $0x90] sm:$0xff]
        %v3347 = vld [vmem:[#allocation10 + $0x98] sm:$0xff]
        %v3348 = vld [vmem:[#allocation10 + $0xa0] sm:$0xff]
        %v3349 = vld [vmem:[#allocation10 + $0xa8] sm:$0xff]
        %v3350 = vld [vmem:[#allocation10 + $0xb0] sm:$0xff]
        %v3351 = vld [vmem:[#allocation10 + $0xb8] sm:$0xff]
        %v3352 = vld [vmem:[#allocation10 + $0xc0] sm:$0xff]
        %v3353 = vld [vmem:[#allocation10 + $0xc8] sm:$0xff]
        %v3354 = vld [vmem:[#allocation10 + $0xd0] sm:$0xff]
        %v3355 = vld [vmem:[#allocation10 + $0xd8] sm:$0xff]
        %v3356 = vld [vmem:[#allocation10 + $0xe0] sm:$0xff]
        %v3357 = vld [vmem:[#allocation10 + $0xe8] sm:$0xff]
        %v3358 = vld [vmem:[#allocation10 + $0xf0] sm:$0xff]
        %v3359 = vld [vmem:[#allocation10 + $0xf8] sm:$0xff]
        %v3360 = vld [vmem:[#allocation10 + $0x100] sm:$0xff]
        %v3361 = vld [vmem:[#allocation10 + $0x108] sm:$0xff]
        %v3362 = vld [vmem:[#allocation10 + $0x110] sm:$0xff]
        %v3363 = vld [vmem:[#allocation10 + $0x118] sm:$0xff]
        %v3364 = vld [vmem:[#allocation10 + $0x120] sm:$0xff]
        %v3365 = vld [vmem:[#allocation10 + $0x128] sm:$0xff]
        %v3366 = vld [vmem:[#allocation10 + $0x130] sm:$0xff]
        %v3367 = vld [vmem:[#allocation10 + $0x138] sm:$0xff]
        %v3368 = vld [vmem:[#allocation10 + $0x140] sm:$0xff]
        %v3369 = vld [vmem:[#allocation10 + $0x148] sm:$0xff]
        %v3370 = vld [vmem:[#allocation10 + $0x150] sm:$0xff]
        %v3371 = vld [vmem:[#allocation10 + $0x158] sm:$0xff]
        %v3372 = vld [vmem:[#allocation10 + $0x160] sm:$0xff]
        %v3373 = vld [vmem:[#allocation10 + $0x168] sm:$0xff]
        %v3374 = vld [vmem:[#allocation10 + $0x170] sm:$0xff]
        %v3375 = vld [vmem:[#allocation10 + $0x178] sm:$0xff]
        %v3376 = vld [vmem:[%s15] sm:$0x3]
        %v3378 = vperm.slane %v3376, 0
        %v3379 = vperm.slane %v3376, 1
        %v3430 = vunpack.c.l.b16 %v3328
        %v3431 = vunpack.c.h.b16 %v3328
        %v3432 = vunpack.c.l.b16 %v3329
        %v3433 = vunpack.c.h.b16 %v3329
        %v3434 = vunpack.c.l.b16 %v3330
        %v3435 = vunpack.c.h.b16 %v3330
        %v3436 = vunpack.c.l.b16 %v3331
        %v3437 = vunpack.c.h.b16 %v3331
        %v3438 = vunpack.c.l.b16 %v3332
        %v3439 = vunpack.c.h.b16 %v3332
        %v3440 = vunpack.c.l.b16 %v3333
        %v3441 = vunpack.c.h.b16 %v3333
        %v3442 = vunpack.c.l.b16 %v3334
        %v3443 = vunpack.c.h.b16 %v3334
        %v3444 = vunpack.c.l.b16 %v3335
        %v3445 = vunpack.c.h.b16 %v3335
        %v3446 = vunpack.c.l.b16 %v3336
        %v3447 = vunpack.c.h.b16 %v3336
        %v3448 = vunpack.c.l.b16 %v3337
        %v3449 = vunpack.c.h.b16 %v3337
        %v3450 = vunpack.c.l.b16 %v3338
        %v3451 = vunpack.c.h.b16 %v3338
        %v3452 = vunpack.c.l.b16 %v3339
        %v3453 = vunpack.c.h.b16 %v3339
        %v3454 = vunpack.c.l.b16 %v3340
        %v3455 = vunpack.c.h.b16 %v3340
        %v3456 = vunpack.c.l.b16 %v3341
        %v3457 = vunpack.c.h.b16 %v3341
        %v3458 = vunpack.c.l.b16 %v3342
        %v3459 = vunpack.c.h.b16 %v3342
        %v3460 = vunpack.c.l.b16 %v3343
        %v3461 = vunpack.c.h.b16 %v3343
        %v3462 = vunpack.c.l.b16 %v3344
        %v3463 = vunpack.c.h.b16 %v3344
        %v3464 = vunpack.c.l.b16 %v3345
        %v3465 = vunpack.c.h.b16 %v3345
        %v3466 = vunpack.c.l.b16 %v3346
        %v3467 = vunpack.c.h.b16 %v3346
        %v3468 = vunpack.c.l.b16 %v3347
        %v3469 = vunpack.c.h.b16 %v3347
        %v3470 = vunpack.c.l.b16 %v3348
        %v3471 = vunpack.c.h.b16 %v3348
        %v3472 = vunpack.c.l.b16 %v3349
        %v3473 = vunpack.c.h.b16 %v3349
        %v3474 = vunpack.c.l.b16 %v3350
        %v3475 = vunpack.c.h.b16 %v3350
        %v3476 = vunpack.c.l.b16 %v3351
        %v3477 = vunpack.c.h.b16 %v3351
        %v3478 = vunpack.c.l.b16 %v3352
        %v3479 = vunpack.c.h.b16 %v3352
        %v3480 = vunpack.c.l.b16 %v3353
        %v3481 = vunpack.c.h.b16 %v3353
        %v3482 = vunpack.c.l.b16 %v3354
        %v3483 = vunpack.c.h.b16 %v3354
        %v3484 = vunpack.c.l.b16 %v3355
        %v3485 = vunpack.c.h.b16 %v3355
        %v3486 = vunpack.c.l.b16 %v3356
        %v3487 = vunpack.c.h.b16 %v3356
        %v3488 = vunpack.c.l.b16 %v3357
        %v3489 = vunpack.c.h.b16 %v3357
        %v3490 = vunpack.c.l.b16 %v3358
        %v3491 = vunpack.c.h.b16 %v3358
        %v3492 = vunpack.c.l.b16 %v3359
        %v3493 = vunpack.c.h.b16 %v3359
        %v3494 = vunpack.c.l.b16 %v3360
        %v3495 = vunpack.c.h.b16 %v3360
        %v3496 = vunpack.c.l.b16 %v3361
        %v3497 = vunpack.c.h.b16 %v3361
        %v3498 = vunpack.c.l.b16 %v3362
        %v3499 = vunpack.c.h.b16 %v3362
        %v3500 = vunpack.c.l.b16 %v3363
        %v3501 = vunpack.c.h.b16 %v3363
        %v3502 = vunpack.c.l.b16 %v3364
        %v3503 = vunpack.c.h.b16 %v3364
        %v3504 = vunpack.c.l.b16 %v3365
        %v3505 = vunpack.c.h.b16 %v3365
        %v3506 = vunpack.c.l.b16 %v3366
        %v3507 = vunpack.c.h.b16 %v3366
        %v3508 = vunpack.c.l.b16 %v3367
        %v3509 = vunpack.c.h.b16 %v3367
        %v3510 = vunpack.c.l.b16 %v3368
        %v3511 = vunpack.c.h.b16 %v3368
        %v3512 = vunpack.c.l.b16 %v3369
        %v3513 = vunpack.c.h.b16 %v3369
        %v3514 = vunpack.c.l.b16 %v3370
        %v3515 = vunpack.c.h.b16 %v3370
        %v3516 = vunpack.c.l.b16 %v3371
        %v3517 = vunpack.c.h.b16 %v3371
        %v3518 = vunpack.c.l.b16 %v3372
        %v3519 = vunpack.c.h.b16 %v3372
        %v3520 = vunpack.c.l.b16 %v3373
        %v3521 = vunpack.c.h.b16 %v3373
        %v3522 = vunpack.c.l.b16 %v3374
        %v3523 = vunpack.c.h.b16 %v3374
        %v3524 = vunpack.c.l.b16 %v3375
        %v3525 = vunpack.c.h.b16 %v3375
        %v3526 = vpack.c.b16 %v3432, %v3430
        %v3527 = vpack.c.b16 %v3433, %v3431
        %v3528 = vpack.c.b16 %v3436, %v3434
        %v3529 = vpack.c.b16 %v3437, %v3435
        %v3530 = vpack.c.b16 %v3440, %v3438
        %v3531 = vpack.c.b16 %v3441, %v3439
        %v3532 = vpack.c.b16 %v3444, %v3442
        %v3533 = vpack.c.b16 %v3445, %v3443
        %v3534 = vpack.c.b16 %v3448, %v3446
        %v3535 = vpack.c.b16 %v3449, %v3447
        %v3536 = vpack.c.b16 %v3452, %v3450
        %v3537 = vpack.c.b16 %v3453, %v3451
        %v3538 = vpack.c.b16 %v3456, %v3454
        %v3539 = vpack.c.b16 %v3457, %v3455
        %v3540 = vpack.c.b16 %v3460, %v3458
        %v3541 = vpack.c.b16 %v3461, %v3459
        %v3542 = vpack.c.b16 %v3464, %v3462
        %v3543 = vpack.c.b16 %v3465, %v3463
        %v3544 = vpack.c.b16 %v3468, %v3466
        %v3545 = vpack.c.b16 %v3469, %v3467
        %v3546 = vpack.c.b16 %v3472, %v3470
        %v3547 = vpack.c.b16 %v3473, %v3471
        %v3548 = vpack.c.b16 %v3476, %v3474
        %v3549 = vpack.c.b16 %v3477, %v3475
        %v3550 = vpack.c.b16 %v3480, %v3478
        %v3551 = vpack.c.b16 %v3481, %v3479
        %v3552 = vpack.c.b16 %v3484, %v3482
        %v3553 = vpack.c.b16 %v3485, %v3483
        %v3554 = vpack.c.b16 %v3488, %v3486
        %v3555 = vpack.c.b16 %v3489, %v3487
        %v3556 = vpack.c.b16 %v3492, %v3490
        %v3557 = vpack.c.b16 %v3493, %v3491
        %v3558 = vpack.c.b16 %v3496, %v3494
        %v3559 = vpack.c.b16 %v3497, %v3495
        %v3560 = vpack.c.b16 %v3500, %v3498
        %v3561 = vpack.c.b16 %v3501, %v3499
        %v3562 = vpack.c.b16 %v3504, %v3502
        %v3563 = vpack.c.b16 %v3505, %v3503
        %v3564 = vpack.c.b16 %v3508, %v3506
        %v3565 = vpack.c.b16 %v3509, %v3507
        %v3566 = vpack.c.b16 %v3512, %v3510
        %v3567 = vpack.c.b16 %v3513, %v3511
        %v3568 = vpack.c.b16 %v3516, %v3514
        %v3569 = vpack.c.b16 %v3517, %v3515
        %v3570 = vpack.c.b16 %v3520, %v3518
        %v3571 = vpack.c.b16 %v3521, %v3519
        %v3572 = vpack.c.b16 %v3524, %v3522
        %v3573 = vpack.c.b16 %v3525, %v3523
        %3622 = vmatpush.bf16.msra.mxu0 %v3540
        %3623 = vmatpush.bf16.msra.mxu0 %v3538
        %3624 = vmatpush.bf16.msra.mxu0 %v3536
        %3625 = vmatpush.bf16.msra.mxu0 %v3534
        %3626 = vmatpush.bf16.msra.mxu0 %v3532
        %3627 = vmatpush.bf16.msra.mxu0 %v3530
        %3628 = vmatpush.bf16.msra.mxu0 %v3528
        %3629 = vmatpush.bf16.msra.mxu0 %v3526
        %3630 = vmatmul.bf16.gmra.mxu0 %v3325
        %v3631 = vpop.f32.mrf.mxu0
        %v3632 = vadd.f32 %v3378, %v3631
        %v3633 = vpop.f32.mrf.mxu0
        %v3634 = vadd.f32 %v3378, %v3633
        %3635 = vdwg.mxu0
        %3636 = vmatpush.bf16.msra.mxu0 %v3556
        %3637 = vmatpush.bf16.msra.mxu0 %v3554
        %3638 = vmatpush.bf16.msra.mxu0 %v3552
        %3639 = vmatpush.bf16.msra.mxu0 %v3550
        %3640 = vmatpush.bf16.msra.mxu0 %v3548
        %3641 = vmatpush.bf16.msra.mxu0 %v3546
        %3642 = vmatpush.bf16.msra.mxu0 %v3544
        %3643 = vmatpush.bf16.msra.mxu0 %v3542
        %3644 = vmatmul.bf16.gmra.mxu0 %v3326
        %v3645 = vpop.f32.mrf.mxu0
        %v3646 = vadd.f32 %v3632, %v3645
        %v3647 = vpop.f32.mrf.mxu0
        %v3648 = vadd.f32 %v3634, %v3647
        %3649 = vdwg.mxu0
        %3650 = vmatpush.bf16.msra.mxu0 %v3572
        %3651 = vmatpush.bf16.msra.mxu0 %v3570
        %3652 = vmatpush.bf16.msra.mxu0 %v3568
        %3653 = vmatpush.bf16.msra.mxu0 %v3566
        %3654 = vmatpush.bf16.msra.mxu0 %v3564
        %3655 = vmatpush.bf16.msra.mxu0 %v3562
        %3656 = vmatpush.bf16.msra.mxu0 %v3560
        %3657 = vmatpush.bf16.msra.mxu0 %v3558
        %3658 = vmatmul.bf16.gmra.mxu0 %v3327
        %v3659 = vpop.f32.mrf.mxu0
        %v3660 = vadd.f32 %v3646, %v3659
        %v3661 = vpop.f32.mrf.mxu0
        %v3662 = vadd.f32 %v3648, %v3661
        %3663 = vdwg.mxu0
        %3664 = vmatpush.bf16.msra.mxu0 %v3541
        %3665 = vmatpush.bf16.msra.mxu0 %v3539
        %3666 = vmatpush.bf16.msra.mxu0 %v3537
        %3667 = vmatpush.bf16.msra.mxu0 %v3535
        %3668 = vmatpush.bf16.msra.mxu0 %v3533
        %3669 = vmatpush.bf16.msra.mxu0 %v3531
        %3670 = vmatpush.bf16.msra.mxu0 %v3529
        %3671 = vmatpush.bf16.msra.mxu0 %v3527
        %3672 = vmatmul.bf16.gmra.mxu0 %v3325
        %v3673 = vpop.f32.mrf.mxu0
        %v3674 = vadd.f32 %v3379, %v3673
        %v3675 = vpop.f32.mrf.mxu0
        %v3676 = vadd.f32 %v3379, %v3675
        %3677 = vdwg.mxu0
        %3678 = vmatpush.bf16.msra.mxu0 %v3557
        %3679 = vmatpush.bf16.msra.mxu0 %v3555
        %3680 = vmatpush.bf16.msra.mxu0 %v3553
        %3681 = vmatpush.bf16.msra.mxu0 %v3551
        %3682 = vmatpush.bf16.msra.mxu0 %v3549
        %3683 = vmatpush.bf16.msra.mxu0 %v3547
        %3684 = vmatpush.bf16.msra.mxu0 %v3545
        %3685 = vmatpush.bf16.msra.mxu0 %v3543
        %3686 = vmatmul.bf16.gmra.mxu0 %v3326
        %v3687 = vpop.f32.mrf.mxu0
        %v3688 = vadd.f32 %v3674, %v3687
        %v3689 = vpop.f32.mrf.mxu0
        %v3690 = vadd.f32 %v3676, %v3689
        %3691 = vdwg.mxu0
        %3692 = vmatpush.bf16.msra.mxu0 %v3573
        %3693 = vmatpush.bf16.msra.mxu0 %v3571
        %3694 = vmatpush.bf16.msra.mxu0 %v3569
        %3695 = vmatpush.bf16.msra.mxu0 %v3567
        %3696 = vmatpush.bf16.msra.mxu0 %v3565
        %3697 = vmatpush.bf16.msra.mxu0 %v3563
        %3698 = vmatpush.bf16.msra.mxu0 %v3561
        %3699 = vmatpush.bf16.msra.mxu0 %v3559
        %3700 = vmatmul.bf16.gmra.mxu0 %v3327
        %v3701 = vpop.f32.mrf.mxu0
        %v3702 = vadd.f32 %v3688, %v3701
        %v3703 = vpop.f32.mrf.mxu0
        %v3704 = vadd.f32 %v3690, %v3703
        %3705 = vdwg.mxu0
        %vm3706 = vcmp.ge.f32.partialorder %v3660, 0.0
        %vm3707 = vcmp.ge.f32.partialorder %v3702, 0.0
        %vm3708 = vcmp.ge.f32.partialorder %v3662, 0.0
        %vm3709 = vcmp.ge.f32.partialorder %v3704, 0.0
        %v3710 = vmul.f32 %v3660, 0.2
        %v3711 = vmul.f32 %v3702, 0.2
        %v3712 = vmul.f32 %v3662, 0.2
        %v3713 = vmul.f32 %v3704, 0.2
        %v3714 = vsel %vm3706, %v3660, %v3710
        %v3715 = vsel %vm3707, %v3702, %v3711
        %v3716 = vsel %vm3708, %v3662, %v3712
        %v3717 = vsel %vm3709, %v3704, %v3713
        %v3722 = vrot.slane %v3714, 7
        %v3723 = vrot.slane %v3715, 7
        %v3724 = vrot.slane %v3716, 7
        %v3725 = vsel %vm2995, %v3722, %v3724
        %v3726 = vrot.slane %v3717, 7
        %v3727 = vsel %vm2995, %v3723, %v3726
        %3734 = vst [vmem:[#allocation2] sm:$0xfe] %v3722
        %3735 = vst [vmem:[#allocation2 + $0x8] sm:$0xfe] %v3723
        %3736 = vst [vmem:[#allocation2 + $0x10] sm:$0xff] %v3725
        %3737 = vst [vmem:[#allocation2 + $0x18] sm:$0xff] %v3727
        %3738 = vst [vmem:[#allocation2 + $0x20] sm:$0x1] %v3724
        %3739 = vst [vmem:[#allocation2 + $0x28] sm:$0x1] %v3726
        %3740 = vst [vmem:[#allocation1] sm:$0xff] %v3714
        %3741 = vst [vmem:[#allocation1 + $0x9] sm:$0xff] %v3715
        %s3742 = scalar_lea.vmem [#allocation1], 1
        %v3743 = vld [vmem:[%s3742] ss:$9 sm:$0xff]
        %3745 = vst.msk [vmem:[#allocation2] ss:$8 sm:$0x3] %vm1519, %v3743
        %3746 = vst.msk [vmem:[#allocation2] ss:$8 sm:$0x0] %vm1519, %v3743
        %3747 = vst [vmem:[#allocation1] sm:$0xff] %v3716
        %3748 = vst [vmem:[#allocation1 + $0x9] sm:$0xff] %v3717
        %s3749 = scalar_lea.vmem [#allocation1], 6
        %v3750 = vld [vmem:[%s3749] ss:$9 sm:$0xff]
        %s3752 = scalar_lea.vmem [#allocation2], 33
        %3753 = vst.msk [vmem:[%s3752] ss:$8 sm:$0x3] %vm1519, %v3750
        %3754 = vst.msk [vmem:[%s3752] ss:$8 sm:$0x0] %vm1519, %v3750
        %v3755 = vld [vmem:[#allocation2] sm:$0xff]
        %v3756 = vld [vmem:[#allocation2 + $0x8] sm:$0xff]
        %v3757 = vld [vmem:[#allocation2 + $0x10] sm:$0xff]
        %v3758 = vld [vmem:[#allocation2 + $0x18] sm:$0xff]
        %v3759 = vld [vmem:[#allocation2] sm:$0xfe]
        %v3760 = vld [vmem:[#allocation2 + $0x8] sm:$0xfe]
        %v3761 = vld [vmem:[#allocation2 + $0x20] sm:$0x1]
        %v3762 = vld [vmem:[#allocation2 + $0x28] sm:$0x1]
        %v3763 = vld [vmem:[#allocation2] sm:$0xfc]
        %v3764 = vld [vmem:[#allocation2 + $0x8] sm:$0xfc]
        %v3765 = vld [vmem:[#allocation2 + $0x20] sm:$0x3]
        %v3766 = vld [vmem:[#allocation2 + $0x28] sm:$0x3]
        %v3773 = vrot.slane %v3759, 1
        %v3774 = vrot.slane %v3757, 1
        %v3775 = vsel %vm839, %v3773, %v3774
        %v3776 = vrot.slane %v3760, 1
        %v3777 = vrot.slane %v3758, 1
        %v3778 = vsel %vm839, %v3776, %v3777
        %v3779 = vrot.slane %v3761, 1
        %v3780 = vsel %vm839, %v3774, %v3779
        %v3781 = vrot.slane %v3762, 1
        %v3782 = vsel %vm839, %v3777, %v3781
        %v3791 = vrot.slane %v3763, 2
        %v3792 = vrot.slane %v3757, 2
        %v3793 = vsel %vm846, %v3791, %v3792
        %v3794 = vrot.slane %v3764, 2
        %v3795 = vrot.slane %v3758, 2
        %v3796 = vsel %vm846, %v3794, %v3795
        %v3797 = vrot.slane %v3765, 2
        %v3798 = vsel %vm846, %v3792, %v3797
        %v3799 = vrot.slane %v3766, 2
        %v3800 = vsel %vm846, %v3795, %v3799
        %v3805 = vpack.c.bf16 %v3757, %v3755
        %v3806 = vpack.c.bf16 %v3758, %v3756
        %v3807 = vpack.c.bf16 %v3780, %v3775
        %v3808 = vpack.c.bf16 %v3782, %v3778
        %v3809 = vpack.c.bf16 %v3798, %v3793
        %v3810 = vpack.c.bf16 %v3800, %v3796
        %v3811 = vld [vmem:[#allocation11] sm:$0xff]
        %v3812 = vld [vmem:[#allocation11 + $0x8] sm:$0xff]
        %v3813 = vld [vmem:[#allocation11 + $0x10] sm:$0xff]
        %v3814 = vld [vmem:[#allocation11 + $0x18] sm:$0xff]
        %v3815 = vld [vmem:[#allocation11 + $0x20] sm:$0xff]
        %v3816 = vld [vmem:[#allocation11 + $0x28] sm:$0xff]
        %v3817 = vld [vmem:[#allocation11 + $0x30] sm:$0xff]
        %v3818 = vld [vmem:[#allocation11 + $0x38] sm:$0xff]
        %v3819 = vld [vmem:[#allocation11 + $0x40] sm:$0xff]
        %v3820 = vld [vmem:[#allocation11 + $0x48] sm:$0xff]
        %v3821 = vld [vmem:[#allocation11 + $0x50] sm:$0xff]
        %v3822 = vld [vmem:[#allocation11 + $0x58] sm:$0xff]
        %v3823 = vld [vmem:[#allocation11 + $0x60] sm:$0xff]
        %v3824 = vld [vmem:[#allocation11 + $0x68] sm:$0xff]
        %v3825 = vld [vmem:[#allocation11 + $0x70] sm:$0xff]
        %v3826 = vld [vmem:[#allocation11 + $0x78] sm:$0xff]
        %v3827 = vld [vmem:[#allocation11 + $0x80] sm:$0xff]
        %v3828 = vld [vmem:[#allocation11 + $0x88] sm:$0xff]
        %v3829 = vld [vmem:[#allocation11 + $0x90] sm:$0xff]
        %v3830 = vld [vmem:[#allocation11 + $0x98] sm:$0xff]
        %v3831 = vld [vmem:[#allocation11 + $0xa0] sm:$0xff]
        %v3832 = vld [vmem:[#allocation11 + $0xa8] sm:$0xff]
        %v3833 = vld [vmem:[#allocation11 + $0xb0] sm:$0xff]
        %v3834 = vld [vmem:[#allocation11 + $0xb8] sm:$0xff]
        %v3835 = vld [vmem:[#allocation11 + $0xc0] sm:$0xff]
        %v3836 = vld [vmem:[#allocation11 + $0xc8] sm:$0xff]
        %v3837 = vld [vmem:[#allocation11 + $0xd0] sm:$0xff]
        %v3838 = vld [vmem:[#allocation11 + $0xd8] sm:$0xff]
        %v3839 = vld [vmem:[#allocation11 + $0xe0] sm:$0xff]
        %v3840 = vld [vmem:[#allocation11 + $0xe8] sm:$0xff]
        %v3841 = vld [vmem:[#allocation11 + $0xf0] sm:$0xff]
        %v3842 = vld [vmem:[#allocation11 + $0xf8] sm:$0xff]
        %v3843 = vld [vmem:[#allocation11 + $0x100] sm:$0xff]
        %v3844 = vld [vmem:[#allocation11 + $0x108] sm:$0xff]
        %v3845 = vld [vmem:[#allocation11 + $0x110] sm:$0xff]
        %v3846 = vld [vmem:[#allocation11 + $0x118] sm:$0xff]
        %v3847 = vld [vmem:[#allocation11 + $0x120] sm:$0xff]
        %v3848 = vld [vmem:[#allocation11 + $0x128] sm:$0xff]
        %v3849 = vld [vmem:[#allocation11 + $0x130] sm:$0xff]
        %v3850 = vld [vmem:[#allocation11 + $0x138] sm:$0xff]
        %v3851 = vld [vmem:[#allocation11 + $0x140] sm:$0xff]
        %v3852 = vld [vmem:[#allocation11 + $0x148] sm:$0xff]
        %v3853 = vld [vmem:[#allocation11 + $0x150] sm:$0xff]
        %v3854 = vld [vmem:[#allocation11 + $0x158] sm:$0xff]
        %v3855 = vld [vmem:[#allocation11 + $0x160] sm:$0xff]
        %v3856 = vld [vmem:[#allocation11 + $0x168] sm:$0xff]
        %v3857 = vld [vmem:[#allocation11 + $0x170] sm:$0xff]
        %v3858 = vld [vmem:[#allocation11 + $0x178] sm:$0xff]
        %v3859 = vld [vmem:[#allocation11 + $0x180] sm:$0xff]
        %v3860 = vld [vmem:[#allocation11 + $0x188] sm:$0xff]
        %v3861 = vld [vmem:[#allocation11 + $0x190] sm:$0xff]
        %v3862 = vld [vmem:[#allocation11 + $0x198] sm:$0xff]
        %v3863 = vld [vmem:[#allocation11 + $0x1a0] sm:$0xff]
        %v3864 = vld [vmem:[#allocation11 + $0x1a8] sm:$0xff]
        %v3865 = vld [vmem:[#allocation11 + $0x1b0] sm:$0xff]
        %v3866 = vld [vmem:[#allocation11 + $0x1b8] sm:$0xff]
        %v3867 = vld [vmem:[#allocation11 + $0x1c0] sm:$0xff]
        %v3868 = vld [vmem:[#allocation11 + $0x1c8] sm:$0xff]
        %v3869 = vld [vmem:[#allocation11 + $0x1d0] sm:$0xff]
        %v3870 = vld [vmem:[#allocation11 + $0x1d8] sm:$0xff]
        %v3871 = vld [vmem:[#allocation11 + $0x1e0] sm:$0xff]
        %v3872 = vld [vmem:[#allocation11 + $0x1e8] sm:$0xff]
        %v3873 = vld [vmem:[#allocation11 + $0x1f0] sm:$0xff]
        %v3874 = vld [vmem:[#allocation11 + $0x1f8] sm:$0xff]
        %v3875 = vld [vmem:[#allocation11 + $0x200] sm:$0xff]
        %v3876 = vld [vmem:[#allocation11 + $0x208] sm:$0xff]
        %v3877 = vld [vmem:[#allocation11 + $0x210] sm:$0xff]
        %v3878 = vld [vmem:[#allocation11 + $0x218] sm:$0xff]
        %v3879 = vld [vmem:[#allocation11 + $0x220] sm:$0xff]
        %v3880 = vld [vmem:[#allocation11 + $0x228] sm:$0xff]
        %v3881 = vld [vmem:[#allocation11 + $0x230] sm:$0xff]
        %v3882 = vld [vmem:[#allocation11 + $0x238] sm:$0xff]
        %v3883 = vld [vmem:[#allocation11 + $0x240] sm:$0xff]
        %v3884 = vld [vmem:[#allocation11 + $0x248] sm:$0xff]
        %v3885 = vld [vmem:[#allocation11 + $0x250] sm:$0xff]
        %v3886 = vld [vmem:[#allocation11 + $0x258] sm:$0xff]
        %v3887 = vld [vmem:[#allocation11 + $0x260] sm:$0xff]
        %v3888 = vld [vmem:[#allocation11 + $0x268] sm:$0xff]
        %v3889 = vld [vmem:[#allocation11 + $0x270] sm:$0xff]
        %v3890 = vld [vmem:[#allocation11 + $0x278] sm:$0xff]
        %v3891 = vld [vmem:[#allocation11 + $0x280] sm:$0xff]
        %v3892 = vld [vmem:[#allocation11 + $0x288] sm:$0xff]
        %v3893 = vld [vmem:[#allocation11 + $0x290] sm:$0xff]
        %v3894 = vld [vmem:[#allocation11 + $0x298] sm:$0xff]
        %v3895 = vld [vmem:[#allocation11 + $0x2a0] sm:$0xff]
        %v3896 = vld [vmem:[#allocation11 + $0x2a8] sm:$0xff]
        %v3897 = vld [vmem:[#allocation11 + $0x2b0] sm:$0xff]
        %v3898 = vld [vmem:[#allocation11 + $0x2b8] sm:$0xff]
        %v3899 = vld [vmem:[#allocation11 + $0x2c0] sm:$0xff]
        %v3900 = vld [vmem:[#allocation11 + $0x2c8] sm:$0xff]
        %v3901 = vld [vmem:[#allocation11 + $0x2d0] sm:$0xff]
        %v3902 = vld [vmem:[#allocation11 + $0x2d8] sm:$0xff]
        %v3903 = vld [vmem:[#allocation11 + $0x2e0] sm:$0xff]
        %v3904 = vld [vmem:[#allocation11 + $0x2e8] sm:$0xff]
        %v3905 = vld [vmem:[#allocation11 + $0x2f0] sm:$0xff]
        %v3906 = vld [vmem:[#allocation11 + $0x2f8] sm:$0xff]
        %v3907 = vld [vmem:[%s17] sm:$0x3]
        %v3909 = vperm.slane %v3907, 0
        %v3910 = vperm.slane %v3907, 1
        %v4009 = vunpack.c.l.b16 %v3811
        %v4010 = vunpack.c.h.b16 %v3811
        %v4011 = vunpack.c.l.b16 %v3812
        %v4012 = vunpack.c.h.b16 %v3812
        %v4013 = vunpack.c.l.b16 %v3813
        %v4014 = vunpack.c.h.b16 %v3813
        %v4015 = vunpack.c.l.b16 %v3814
        %v4016 = vunpack.c.h.b16 %v3814
        %v4017 = vunpack.c.l.b16 %v3815
        %v4018 = vunpack.c.h.b16 %v3815
        %v4019 = vunpack.c.l.b16 %v3816
        %v4020 = vunpack.c.h.b16 %v3816
        %v4021 = vunpack.c.l.b16 %v3817
        %v4022 = vunpack.c.h.b16 %v3817
        %v4023 = vunpack.c.l.b16 %v3818
        %v4024 = vunpack.c.h.b16 %v3818
        %v4025 = vunpack.c.l.b16 %v3819
        %v4026 = vunpack.c.h.b16 %v3819
        %v4027 = vunpack.c.l.b16 %v3820
        %v4028 = vunpack.c.h.b16 %v3820
        %v4029 = vunpack.c.l.b16 %v3821
        %v4030 = vunpack.c.h.b16 %v3821
        %v4031 = vunpack.c.l.b16 %v3822
        %v4032 = vunpack.c.h.b16 %v3822
        %v4033 = vunpack.c.l.b16 %v3823
        %v4034 = vunpack.c.h.b16 %v3823
        %v4035 = vunpack.c.l.b16 %v3824
        %v4036 = vunpack.c.h.b16 %v3824
        %v4037 = vunpack.c.l.b16 %v3825
        %v4038 = vunpack.c.h.b16 %v3825
        %v4039 = vunpack.c.l.b16 %v3826
        %v4040 = vunpack.c.h.b16 %v3826
        %v4041 = vunpack.c.l.b16 %v3827
        %v4042 = vunpack.c.h.b16 %v3827
        %v4043 = vunpack.c.l.b16 %v3828
        %v4044 = vunpack.c.h.b16 %v3828
        %v4045 = vunpack.c.l.b16 %v3829
        %v4046 = vunpack.c.h.b16 %v3829
        %v4047 = vunpack.c.l.b16 %v3830
        %v4048 = vunpack.c.h.b16 %v3830
        %v4049 = vunpack.c.l.b16 %v3831
        %v4050 = vunpack.c.h.b16 %v3831
        %v4051 = vunpack.c.l.b16 %v3832
        %v4052 = vunpack.c.h.b16 %v3832
        %v4053 = vunpack.c.l.b16 %v3833
        %v4054 = vunpack.c.h.b16 %v3833
        %v4055 = vunpack.c.l.b16 %v3834
        %v4056 = vunpack.c.h.b16 %v3834
        %v4057 = vunpack.c.l.b16 %v3835
        %v4058 = vunpack.c.h.b16 %v3835
        %v4059 = vunpack.c.l.b16 %v3836
        %v4060 = vunpack.c.h.b16 %v3836
        %v4061 = vunpack.c.l.b16 %v3837
        %v4062 = vunpack.c.h.b16 %v3837
        %v4063 = vunpack.c.l.b16 %v3838
        %v4064 = vunpack.c.h.b16 %v3838
        %v4065 = vunpack.c.l.b16 %v3839
        %v4066 = vunpack.c.h.b16 %v3839
        %v4067 = vunpack.c.l.b16 %v3840
        %v4068 = vunpack.c.h.b16 %v3840
        %v4069 = vunpack.c.l.b16 %v3841
        %v4070 = vunpack.c.h.b16 %v3841
        %v4071 = vunpack.c.l.b16 %v3842
        %v4072 = vunpack.c.h.b16 %v3842
        %v4073 = vunpack.c.l.b16 %v3843
        %v4074 = vunpack.c.h.b16 %v3843
        %v4075 = vunpack.c.l.b16 %v3844
        %v4076 = vunpack.c.h.b16 %v3844
        %v4077 = vunpack.c.l.b16 %v3845
        %v4078 = vunpack.c.h.b16 %v3845
        %v4079 = vunpack.c.l.b16 %v3846
        %v4080 = vunpack.c.h.b16 %v3846
        %v4081 = vunpack.c.l.b16 %v3847
        %v4082 = vunpack.c.h.b16 %v3847
        %v4083 = vunpack.c.l.b16 %v3848
        %v4084 = vunpack.c.h.b16 %v3848
        %v4085 = vunpack.c.l.b16 %v3849
        %v4086 = vunpack.c.h.b16 %v3849
        %v4087 = vunpack.c.l.b16 %v3850
        %v4088 = vunpack.c.h.b16 %v3850
        %v4089 = vunpack.c.l.b16 %v3851
        %v4090 = vunpack.c.h.b16 %v3851
        %v4091 = vunpack.c.l.b16 %v3852
        %v4092 = vunpack.c.h.b16 %v3852
        %v4093 = vunpack.c.l.b16 %v3853
        %v4094 = vunpack.c.h.b16 %v3853
        %v4095 = vunpack.c.l.b16 %v3854
        %v4096 = vunpack.c.h.b16 %v3854
        %v4097 = vunpack.c.l.b16 %v3855
        %v4098 = vunpack.c.h.b16 %v3855
        %v4099 = vunpack.c.l.b16 %v3856
        %v4100 = vunpack.c.h.b16 %v3856
        %v4101 = vunpack.c.l.b16 %v3857
        %v4102 = vunpack.c.h.b16 %v3857
        %v4103 = vunpack.c.l.b16 %v3858
        %v4104 = vunpack.c.h.b16 %v3858
        %v4105 = vunpack.c.l.b16 %v3859
        %v4106 = vunpack.c.h.b16 %v3859
        %v4107 = vunpack.c.l.b16 %v3860
        %v4108 = vunpack.c.h.b16 %v3860
        %v4109 = vunpack.c.l.b16 %v3861
        %v4110 = vunpack.c.h.b16 %v3861
        %v4111 = vunpack.c.l.b16 %v3862
        %v4112 = vunpack.c.h.b16 %v3862
        %v4113 = vunpack.c.l.b16 %v3863
        %v4114 = vunpack.c.h.b16 %v3863
        %v4115 = vunpack.c.l.b16 %v3864
        %v4116 = vunpack.c.h.b16 %v3864
        %v4117 = vunpack.c.l.b16 %v3865
        %v4118 = vunpack.c.h.b16 %v3865
        %v4119 = vunpack.c.l.b16 %v3866
        %v4120 = vunpack.c.h.b16 %v3866
        %v4121 = vunpack.c.l.b16 %v3867
        %v4122 = vunpack.c.h.b16 %v3867
        %v4123 = vunpack.c.l.b16 %v3868
        %v4124 = vunpack.c.h.b16 %v3868
        %v4125 = vunpack.c.l.b16 %v3869
        %v4126 = vunpack.c.h.b16 %v3869
        %v4127 = vunpack.c.l.b16 %v3870
        %v4128 = vunpack.c.h.b16 %v3870
        %v4129 = vunpack.c.l.b16 %v3871
        %v4130 = vunpack.c.h.b16 %v3871
        %v4131 = vunpack.c.l.b16 %v3872
        %v4132 = vunpack.c.h.b16 %v3872
        %v4133 = vunpack.c.l.b16 %v3873
        %v4134 = vunpack.c.h.b16 %v3873
        %v4135 = vunpack.c.l.b16 %v3874
        %v4136 = vunpack.c.h.b16 %v3874
        %v4137 = vunpack.c.l.b16 %v3875
        %v4138 = vunpack.c.h.b16 %v3875
        %v4139 = vunpack.c.l.b16 %v3876
        %v4140 = vunpack.c.h.b16 %v3876
        %v4141 = vunpack.c.l.b16 %v3877
        %v4142 = vunpack.c.h.b16 %v3877
        %v4143 = vunpack.c.l.b16 %v3878
        %v4144 = vunpack.c.h.b16 %v3878
        %v4145 = vunpack.c.l.b16 %v3879
        %v4146 = vunpack.c.h.b16 %v3879
        %v4147 = vunpack.c.l.b16 %v3880
        %v4148 = vunpack.c.h.b16 %v3880
        %v4149 = vunpack.c.l.b16 %v3881
        %v4150 = vunpack.c.h.b16 %v3881
        %v4151 = vunpack.c.l.b16 %v3882
        %v4152 = vunpack.c.h.b16 %v3882
        %v4153 = vunpack.c.l.b16 %v3883
        %v4154 = vunpack.c.h.b16 %v3883
        %v4155 = vunpack.c.l.b16 %v3884
        %v4156 = vunpack.c.h.b16 %v3884
        %v4157 = vunpack.c.l.b16 %v3885
        %v4158 = vunpack.c.h.b16 %v3885
        %v4159 = vunpack.c.l.b16 %v3886
        %v4160 = vunpack.c.h.b16 %v3886
        %v4161 = vunpack.c.l.b16 %v3887
        %v4162 = vunpack.c.h.b16 %v3887
        %v4163 = vunpack.c.l.b16 %v3888
        %v4164 = vunpack.c.h.b16 %v3888
        %v4165 = vunpack.c.l.b16 %v3889
        %v4166 = vunpack.c.h.b16 %v3889
        %v4167 = vunpack.c.l.b16 %v3890
        %v4168 = vunpack.c.h.b16 %v3890
        %v4169 = vunpack.c.l.b16 %v3891
        %v4170 = vunpack.c.h.b16 %v3891
        %v4171 = vunpack.c.l.b16 %v3892
        %v4172 = vunpack.c.h.b16 %v3892
        %v4173 = vunpack.c.l.b16 %v3893
        %v4174 = vunpack.c.h.b16 %v3893
        %v4175 = vunpack.c.l.b16 %v3894
        %v4176 = vunpack.c.h.b16 %v3894
        %v4177 = vunpack.c.l.b16 %v3895
        %v4178 = vunpack.c.h.b16 %v3895
        %v4179 = vunpack.c.l.b16 %v3896
        %v4180 = vunpack.c.h.b16 %v3896
        %v4181 = vunpack.c.l.b16 %v3897
        %v4182 = vunpack.c.h.b16 %v3897
        %v4183 = vunpack.c.l.b16 %v3898
        %v4184 = vunpack.c.h.b16 %v3898
        %v4185 = vunpack.c.l.b16 %v3899
        %v4186 = vunpack.c.h.b16 %v3899
        %v4187 = vunpack.c.l.b16 %v3900
        %v4188 = vunpack.c.h.b16 %v3900
        %v4189 = vunpack.c.l.b16 %v3901
        %v4190 = vunpack.c.h.b16 %v3901
        %v4191 = vunpack.c.l.b16 %v3902
        %v4192 = vunpack.c.h.b16 %v3902
        %v4193 = vunpack.c.l.b16 %v3903
        %v4194 = vunpack.c.h.b16 %v3903
        %v4195 = vunpack.c.l.b16 %v3904
        %v4196 = vunpack.c.h.b16 %v3904
        %v4197 = vunpack.c.l.b16 %v3905
        %v4198 = vunpack.c.h.b16 %v3905
        %v4199 = vunpack.c.l.b16 %v3906
        %v4200 = vunpack.c.h.b16 %v3906
        %v4201 = vpack.c.b16 %v4011, %v4009
        %v4202 = vpack.c.b16 %v4012, %v4010
        %v4203 = vpack.c.b16 %v4015, %v4013
        %v4204 = vpack.c.b16 %v4016, %v4014
        %v4205 = vpack.c.b16 %v4019, %v4017
        %v4206 = vpack.c.b16 %v4020, %v4018
        %v4207 = vpack.c.b16 %v4023, %v4021
        %v4208 = vpack.c.b16 %v4024, %v4022
        %v4209 = vpack.c.b16 %v4027, %v4025
        %v4210 = vpack.c.b16 %v4028, %v4026
        %v4211 = vpack.c.b16 %v4031, %v4029
        %v4212 = vpack.c.b16 %v4032, %v4030
        %v4213 = vpack.c.b16 %v4035, %v4033
        %v4214 = vpack.c.b16 %v4036, %v4034
        %v4215 = vpack.c.b16 %v4039, %v4037
        %v4216 = vpack.c.b16 %v4040, %v4038
        %v4217 = vpack.c.b16 %v4043, %v4041
        %v4218 = vpack.c.b16 %v4044, %v4042
        %v4219 = vpack.c.b16 %v4047, %v4045
        %v4220 = vpack.c.b16 %v4048, %v4046
        %v4221 = vpack.c.b16 %v4051, %v4049
        %v4222 = vpack.c.b16 %v4052, %v4050
        %v4223 = vpack.c.b16 %v4055, %v4053
        %v4224 = vpack.c.b16 %v4056, %v4054
        %v4225 = vpack.c.b16 %v4059, %v4057
        %v4226 = vpack.c.b16 %v4060, %v4058
        %v4227 = vpack.c.b16 %v4063, %v4061
        %v4228 = vpack.c.b16 %v4064, %v4062
        %v4229 = vpack.c.b16 %v4067, %v4065
        %v4230 = vpack.c.b16 %v4068, %v4066
        %v4231 = vpack.c.b16 %v4071, %v4069
        %v4232 = vpack.c.b16 %v4072, %v4070
        %v4233 = vpack.c.b16 %v4075, %v4073
        %v4234 = vpack.c.b16 %v4076, %v4074
        %v4235 = vpack.c.b16 %v4079, %v4077
        %v4236 = vpack.c.b16 %v4080, %v4078
        %v4237 = vpack.c.b16 %v4083, %v4081
        %v4238 = vpack.c.b16 %v4084, %v4082
        %v4239 = vpack.c.b16 %v4087, %v4085
        %v4240 = vpack.c.b16 %v4088, %v4086
        %v4241 = vpack.c.b16 %v4091, %v4089
        %v4242 = vpack.c.b16 %v4092, %v4090
        %v4243 = vpack.c.b16 %v4095, %v4093
        %v4244 = vpack.c.b16 %v4096, %v4094
        %v4245 = vpack.c.b16 %v4099, %v4097
        %v4246 = vpack.c.b16 %v4100, %v4098
        %v4247 = vpack.c.b16 %v4103, %v4101
        %v4248 = vpack.c.b16 %v4104, %v4102
        %v4249 = vpack.c.b16 %v4107, %v4105
        %v4250 = vpack.c.b16 %v4108, %v4106
        %v4251 = vpack.c.b16 %v4111, %v4109
        %v4252 = vpack.c.b16 %v4112, %v4110
        %v4253 = vpack.c.b16 %v4115, %v4113
        %v4254 = vpack.c.b16 %v4116, %v4114
        %v4255 = vpack.c.b16 %v4119, %v4117
        %v4256 = vpack.c.b16 %v4120, %v4118
        %v4257 = vpack.c.b16 %v4123, %v4121
        %v4258 = vpack.c.b16 %v4124, %v4122
        %v4259 = vpack.c.b16 %v4127, %v4125
        %v4260 = vpack.c.b16 %v4128, %v4126
        %v4261 = vpack.c.b16 %v4131, %v4129
        %v4262 = vpack.c.b16 %v4132, %v4130
        %v4263 = vpack.c.b16 %v4135, %v4133
        %v4264 = vpack.c.b16 %v4136, %v4134
        %v4265 = vpack.c.b16 %v4139, %v4137
        %v4266 = vpack.c.b16 %v4140, %v4138
        %v4267 = vpack.c.b16 %v4143, %v4141
        %v4268 = vpack.c.b16 %v4144, %v4142
        %v4269 = vpack.c.b16 %v4147, %v4145
        %v4270 = vpack.c.b16 %v4148, %v4146
        %v4271 = vpack.c.b16 %v4151, %v4149
        %v4272 = vpack.c.b16 %v4152, %v4150
        %v4273 = vpack.c.b16 %v4155, %v4153
        %v4274 = vpack.c.b16 %v4156, %v4154
        %v4275 = vpack.c.b16 %v4159, %v4157
        %v4276 = vpack.c.b16 %v4160, %v4158
        %v4277 = vpack.c.b16 %v4163, %v4161
        %v4278 = vpack.c.b16 %v4164, %v4162
        %v4279 = vpack.c.b16 %v4167, %v4165
        %v4280 = vpack.c.b16 %v4168, %v4166
        %v4281 = vpack.c.b16 %v4171, %v4169
        %v4282 = vpack.c.b16 %v4172, %v4170
        %v4283 = vpack.c.b16 %v4175, %v4173
        %v4284 = vpack.c.b16 %v4176, %v4174
        %v4285 = vpack.c.b16 %v4179, %v4177
        %v4286 = vpack.c.b16 %v4180, %v4178
        %v4287 = vpack.c.b16 %v4183, %v4181
        %v4288 = vpack.c.b16 %v4184, %v4182
        %v4289 = vpack.c.b16 %v4187, %v4185
        %v4290 = vpack.c.b16 %v4188, %v4186
        %v4291 = vpack.c.b16 %v4191, %v4189
        %v4292 = vpack.c.b16 %v4192, %v4190
        %v4293 = vpack.c.b16 %v4195, %v4193
        %v4294 = vpack.c.b16 %v4196, %v4194
        %v4295 = vpack.c.b16 %v4199, %v4197
        %v4296 = vpack.c.b16 %v4200, %v4198
        %4393 = vmatpush.bf16.msra.mxu0 %v4215
        %4394 = vmatpush.bf16.msra.mxu0 %v4213
        %4395 = vmatpush.bf16.msra.mxu0 %v4211
        %4396 = vmatpush.bf16.msra.mxu0 %v4209
        %4397 = vmatpush.bf16.msra.mxu0 %v4207
        %4398 = vmatpush.bf16.msra.mxu0 %v4205
        %4399 = vmatpush.bf16.msra.mxu0 %v4203
        %4400 = vmatpush.bf16.msra.mxu0 %v4201
        %4401 = vmatmul.bf16.gmra.mxu0 %v3805
        %v4402 = vpop.f32.mrf.mxu0
        %v4403 = vadd.f32 %v3909, %v4402
        %v4404 = vpop.f32.mrf.mxu0
        %v4405 = vadd.f32 %v3909, %v4404
        %4406 = vdwg.mxu0
        %4407 = vmatpush.bf16.msra.mxu0 %v4231
        %4408 = vmatpush.bf16.msra.mxu0 %v4229
        %4409 = vmatpush.bf16.msra.mxu0 %v4227
        %4410 = vmatpush.bf16.msra.mxu0 %v4225
        %4411 = vmatpush.bf16.msra.mxu0 %v4223
        %4412 = vmatpush.bf16.msra.mxu0 %v4221
        %4413 = vmatpush.bf16.msra.mxu0 %v4219
        %4414 = vmatpush.bf16.msra.mxu0 %v4217
        %4415 = vmatmul.bf16.gmra.mxu0 %v3806
        %v4416 = vpop.f32.mrf.mxu0
        %v4417 = vadd.f32 %v4403, %v4416
        %v4418 = vpop.f32.mrf.mxu0
        %v4419 = vadd.f32 %v4405, %v4418
        %4420 = vdwg.mxu0
        %4421 = vmatpush.bf16.msra.mxu0 %v4247
        %4422 = vmatpush.bf16.msra.mxu0 %v4245
        %4423 = vmatpush.bf16.msra.mxu0 %v4243
        %4424 = vmatpush.bf16.msra.mxu0 %v4241
        %4425 = vmatpush.bf16.msra.mxu0 %v4239
        %4426 = vmatpush.bf16.msra.mxu0 %v4237
        %4427 = vmatpush.bf16.msra.mxu0 %v4235
        %4428 = vmatpush.bf16.msra.mxu0 %v4233
        %4429 = vmatmul.bf16.gmra.mxu0 %v3807
        %v4430 = vpop.f32.mrf.mxu0
        %v4431 = vadd.f32 %v4417, %v4430
        %v4432 = vpop.f32.mrf.mxu0
        %v4433 = vadd.f32 %v4419, %v4432
        %4434 = vdwg.mxu0
        %4435 = vmatpush.bf16.msra.mxu0 %v4263
        %4436 = vmatpush.bf16.msra.mxu0 %v4261
        %4437 = vmatpush.bf16.msra.mxu0 %v4259
        %4438 = vmatpush.bf16.msra.mxu0 %v4257
        %4439 = vmatpush.bf16.msra.mxu0 %v4255
        %4440 = vmatpush.bf16.msra.mxu0 %v4253
        %4441 = vmatpush.bf16.msra.mxu0 %v4251
        %4442 = vmatpush.bf16.msra.mxu0 %v4249
        %4443 = vmatmul.bf16.gmra.mxu0 %v3808
        %v4444 = vpop.f32.mrf.mxu0
        %v4445 = vadd.f32 %v4431, %v4444
        %v4446 = vpop.f32.mrf.mxu0
        %v4447 = vadd.f32 %v4433, %v4446
        %4448 = vdwg.mxu0
        %4449 = vmatpush.bf16.msra.mxu0 %v4279
        %4450 = vmatpush.bf16.msra.mxu0 %v4277
        %4451 = vmatpush.bf16.msra.mxu0 %v4275
        %4452 = vmatpush.bf16.msra.mxu0 %v4273
        %4453 = vmatpush.bf16.msra.mxu0 %v4271
        %4454 = vmatpush.bf16.msra.mxu0 %v4269
        %4455 = vmatpush.bf16.msra.mxu0 %v4267
        %4456 = vmatpush.bf16.msra.mxu0 %v4265
        %4457 = vmatmul.bf16.gmra.mxu0 %v3809
        %v4458 = vpop.f32.mrf.mxu0
        %v4459 = vadd.f32 %v4445, %v4458
        %v4460 = vpop.f32.mrf.mxu0
        %v4461 = vadd.f32 %v4447, %v4460
        %4462 = vdwg.mxu0
        %4463 = vmatpush.bf16.msra.mxu0 %v4295
        %4464 = vmatpush.bf16.msra.mxu0 %v4293
        %4465 = vmatpush.bf16.msra.mxu0 %v4291
        %4466 = vmatpush.bf16.msra.mxu0 %v4289
        %4467 = vmatpush.bf16.msra.mxu0 %v4287
        %4468 = vmatpush.bf16.msra.mxu0 %v4285
        %4469 = vmatpush.bf16.msra.mxu0 %v4283
        %4470 = vmatpush.bf16.msra.mxu0 %v4281
        %4471 = vmatmul.bf16.gmra.mxu0 %v3810
        %v4472 = vpop.f32.mrf.mxu0
        %v4473 = vadd.f32 %v4459, %v4472
        %v4474 = vpop.f32.mrf.mxu0
        %v4475 = vadd.f32 %v4461, %v4474
        %4476 = vdwg.mxu0
        %4477 = vmatpush.bf16.msra.mxu0 %v4216
        %4478 = vmatpush.bf16.msra.mxu0 %v4214
        %4479 = vmatpush.bf16.msra.mxu0 %v4212
        %4480 = vmatpush.bf16.msra.mxu0 %v4210
        %4481 = vmatpush.bf16.msra.mxu0 %v4208
        %4482 = vmatpush.bf16.msra.mxu0 %v4206
        %4483 = vmatpush.bf16.msra.mxu0 %v4204
        %4484 = vmatpush.bf16.msra.mxu0 %v4202
        %4485 = vmatmul.bf16.gmra.mxu0 %v3805
        %v4486 = vpop.f32.mrf.mxu0
        %v4487 = vadd.f32 %v3910, %v4486
        %v4488 = vpop.f32.mrf.mxu0
        %v4489 = vadd.f32 %v3910, %v4488
        %4490 = vdwg.mxu0
        %4491 = vmatpush.bf16.msra.mxu0 %v4232
        %4492 = vmatpush.bf16.msra.mxu0 %v4230
        %4493 = vmatpush.bf16.msra.mxu0 %v4228
        %4494 = vmatpush.bf16.msra.mxu0 %v4226
        %4495 = vmatpush.bf16.msra.mxu0 %v4224
        %4496 = vmatpush.bf16.msra.mxu0 %v4222
        %4497 = vmatpush.bf16.msra.mxu0 %v4220
        %4498 = vmatpush.bf16.msra.mxu0 %v4218
        %4499 = vmatmul.bf16.gmra.mxu0 %v3806
        %v4500 = vpop.f32.mrf.mxu0
        %v4501 = vadd.f32 %v4487, %v4500
        %v4502 = vpop.f32.mrf.mxu0
        %v4503 = vadd.f32 %v4489, %v4502
        %4504 = vdwg.mxu0
        %4505 = vmatpush.bf16.msra.mxu0 %v4248
        %4506 = vmatpush.bf16.msra.mxu0 %v4246
        %4507 = vmatpush.bf16.msra.mxu0 %v4244
        %4508 = vmatpush.bf16.msra.mxu0 %v4242
        %4509 = vmatpush.bf16.msra.mxu0 %v4240
        %4510 = vmatpush.bf16.msra.mxu0 %v4238
        %4511 = vmatpush.bf16.msra.mxu0 %v4236
        %4512 = vmatpush.bf16.msra.mxu0 %v4234
        %4513 = vmatmul.bf16.gmra.mxu0 %v3807
        %v4514 = vpop.f32.mrf.mxu0
        %v4515 = vadd.f32 %v4501, %v4514
        %v4516 = vpop.f32.mrf.mxu0
        %v4517 = vadd.f32 %v4503, %v4516
        %4518 = vdwg.mxu0
        %4519 = vmatpush.bf16.msra.mxu0 %v4264
        %4520 = vmatpush.bf16.msra.mxu0 %v4262
        %4521 = vmatpush.bf16.msra.mxu0 %v4260
        %4522 = vmatpush.bf16.msra.mxu0 %v4258
        %4523 = vmatpush.bf16.msra.mxu0 %v4256
        %4524 = vmatpush.bf16.msra.mxu0 %v4254
        %4525 = vmatpush.bf16.msra.mxu0 %v4252
        %4526 = vmatpush.bf16.msra.mxu0 %v4250
        %4527 = vmatmul.bf16.gmra.mxu0 %v3808
        %v4528 = vpop.f32.mrf.mxu0
        %v4529 = vadd.f32 %v4515, %v4528
        %v4530 = vpop.f32.mrf.mxu0
        %v4531 = vadd.f32 %v4517, %v4530
        %4532 = vdwg.mxu0
        %4533 = vmatpush.bf16.msra.mxu0 %v4280
        %4534 = vmatpush.bf16.msra.mxu0 %v4278
        %4535 = vmatpush.bf16.msra.mxu0 %v4276
        %4536 = vmatpush.bf16.msra.mxu0 %v4274
        %4537 = vmatpush.bf16.msra.mxu0 %v4272
        %4538 = vmatpush.bf16.msra.mxu0 %v4270
        %4539 = vmatpush.bf16.msra.mxu0 %v4268
        %4540 = vmatpush.bf16.msra.mxu0 %v4266
        %4541 = vmatmul.bf16.gmra.mxu0 %v3809
        %v4542 = vpop.f32.mrf.mxu0
        %v4543 = vadd.f32 %v4529, %v4542
        %v4544 = vpop.f32.mrf.mxu0
        %v4545 = vadd.f32 %v4531, %v4544
        %4546 = vdwg.mxu0
        %4547 = vmatpush.bf16.msra.mxu0 %v4296
        %4548 = vmatpush.bf16.msra.mxu0 %v4294
        %4549 = vmatpush.bf16.msra.mxu0 %v4292
        %4550 = vmatpush.bf16.msra.mxu0 %v4290
        %4551 = vmatpush.bf16.msra.mxu0 %v4288
        %4552 = vmatpush.bf16.msra.mxu0 %v4286
        %4553 = vmatpush.bf16.msra.mxu0 %v4284
        %4554 = vmatpush.bf16.msra.mxu0 %v4282
        %4555 = vmatmul.bf16.gmra.mxu0 %v3810
        %v4556 = vpop.f32.mrf.mxu0
        %v4557 = vadd.f32 %v4543, %v4556
        %v4558 = vpop.f32.mrf.mxu0
        %v4559 = vadd.f32 %v4545, %v4558
        %4560 = vdwg.mxu0
        %vm4561 = vcmp.ge.f32.partialorder %v4473, 0.0
        %vm4562 = vcmp.ge.f32.partialorder %v4557, 0.0
        %vm4563 = vcmp.ge.f32.partialorder %v4475, 0.0
        %vm4564 = vcmp.ge.f32.partialorder %v4559, 0.0
        %v4565 = vmul.f32 %v4473, 0.2
        %v4566 = vmul.f32 %v4557, 0.2
        %v4567 = vmul.f32 %v4475, 0.2
        %v4568 = vmul.f32 %v4559, 0.2
        %v4569 = vsel %vm4561, %v4473, %v4565
        %v4570 = vsel %vm4562, %v4557, %v4566
        %v4571 = vsel %vm4563, %v4475, %v4567
        %v4572 = vsel %vm4564, %v4559, %v4568
        %v4577 = vrot.slane %v4569, 7
        %v4578 = vrot.slane %v4570, 7
        %v4579 = vrot.slane %v4571, 7
        %v4580 = vsel %vm2995, %v4577, %v4579
        %v4581 = vrot.slane %v4572, 7
        %v4582 = vsel %vm2995, %v4578, %v4581
        %4589 = vst [vmem:[#allocation2] sm:$0xfe] %v4577
        %4590 = vst [vmem:[#allocation2 + $0x8] sm:$0xfe] %v4578
        %4591 = vst [vmem:[#allocation2 + $0x10] sm:$0xff] %v4580
        %4592 = vst [vmem:[#allocation2 + $0x18] sm:$0xff] %v4582
        %4593 = vst [vmem:[#allocation2 + $0x20] sm:$0x1] %v4579
        %4594 = vst [vmem:[#allocation2 + $0x28] sm:$0x1] %v4581
        %4595 = vst [vmem:[#allocation1] sm:$0xff] %v4569
        %4596 = vst [vmem:[#allocation1 + $0x9] sm:$0xff] %v4570
        %s4597 = scalar_lea.vmem [#allocation1], 1
        %v4598 = vld [vmem:[%s4597] ss:$9 sm:$0xff]
        %4600 = vst.msk [vmem:[#allocation2] ss:$8 sm:$0x3] %vm1519, %v4598
        %4601 = vst.msk [vmem:[#allocation2] ss:$8 sm:$0x0] %vm1519, %v4598
        %4602 = vst [vmem:[#allocation1] sm:$0xff] %v4571
        %4603 = vst [vmem:[#allocation1 + $0x9] sm:$0xff] %v4572
        %s4604 = scalar_lea.vmem [#allocation1], 6
        %v4605 = vld [vmem:[%s4604] ss:$9 sm:$0xff]
        %4607 = vst.msk [vmem:[%s3752] ss:$8 sm:$0x3] %vm1519, %v4605
        %4608 = vst.msk [vmem:[%s3752] ss:$8 sm:$0x0] %vm1519, %v4605
        %v4609 = vld [vmem:[#allocation2] sm:$0xff]
        %v4610 = vld [vmem:[#allocation2 + $0x8] sm:$0xff]
        %v4611 = vld [vmem:[#allocation2 + $0x10] sm:$0xff]
        %v4612 = vld [vmem:[#allocation2 + $0x18] sm:$0xff]
        %v4613 = vld [vmem:[#allocation2] sm:$0xfe]
        %v4614 = vld [vmem:[#allocation2 + $0x8] sm:$0xfe]
        %v4615 = vld [vmem:[#allocation2 + $0x20] sm:$0x1]
        %v4616 = vld [vmem:[#allocation2 + $0x28] sm:$0x1]
        %v4617 = vld [vmem:[#allocation2] sm:$0xfc]
        %v4618 = vld [vmem:[#allocation2 + $0x8] sm:$0xfc]
        %v4619 = vld [vmem:[#allocation2 + $0x20] sm:$0x3]
        %v4620 = vld [vmem:[#allocation2 + $0x28] sm:$0x3]
        %v4627 = vrot.slane %v4613, 1
        %v4628 = vrot.slane %v4611, 1
        %v4629 = vsel %vm839, %v4627, %v4628
        %v4630 = vrot.slane %v4614, 1
        %v4631 = vrot.slane %v4612, 1
        %v4632 = vsel %vm839, %v4630, %v4631
        %v4633 = vrot.slane %v4615, 1
        %v4634 = vsel %vm839, %v4628, %v4633
        %v4635 = vrot.slane %v4616, 1
        %v4636 = vsel %vm839, %v4631, %v4635
        %v4645 = vrot.slane %v4617, 2
        %v4646 = vrot.slane %v4611, 2
        %v4647 = vsel %vm846, %v4645, %v4646
        %v4648 = vrot.slane %v4618, 2
        %v4649 = vrot.slane %v4612, 2
        %v4650 = vsel %vm846, %v4648, %v4649
        %v4651 = vrot.slane %v4619, 2
        %v4652 = vsel %vm846, %v4646, %v4651
        %v4653 = vrot.slane %v4620, 2
        %v4654 = vsel %vm846, %v4649, %v4653
        %v4659 = vpack.c.bf16 %v4611, %v4609
        %v4660 = vpack.c.bf16 %v4612, %v4610
        %v4661 = vpack.c.bf16 %v4634, %v4629
        %v4662 = vpack.c.bf16 %v4636, %v4632
        %v4663 = vpack.c.bf16 %v4652, %v4647
        %v4664 = vpack.c.bf16 %v4654, %v4650
        %v4665 = vld [vmem:[#allocation13] sm:$0xf]
        %v4666 = vld [vmem:[#allocation13 + $0x4] sm:$0xf]
        %v4667 = vld [vmem:[#allocation13 + $0x8] sm:$0xf]
        %v4668 = vld [vmem:[#allocation13 + $0xc] sm:$0xf]
        %v4669 = vld [vmem:[#allocation13 + $0x10] sm:$0xf]
        %v4670 = vld [vmem:[#allocation13 + $0x14] sm:$0xf]
        %v4671 = vld [vmem:[#allocation13 + $0x18] sm:$0xf]
        %v4672 = vld [vmem:[#allocation13 + $0x1c] sm:$0xf]
        %v4673 = vld [vmem:[#allocation13 + $0x20] sm:$0xf]
        %v4674 = vld [vmem:[#allocation13 + $0x24] sm:$0xf]
        %v4675 = vld [vmem:[#allocation13 + $0x28] sm:$0xf]
        %v4676 = vld [vmem:[#allocation13 + $0x2c] sm:$0xf]
        %v4677 = vld [vmem:[#allocation13 + $0x30] sm:$0xf]
        %v4678 = vld [vmem:[#allocation13 + $0x34] sm:$0xf]
        %v4679 = vld [vmem:[#allocation13 + $0x38] sm:$0xf]
        %v4680 = vld [vmem:[#allocation13 + $0x3c] sm:$0xf]
        %v4681 = vld [vmem:[#allocation13 + $0x40] sm:$0xf]
        %v4682 = vld [vmem:[#allocation13 + $0x44] sm:$0xf]
        %v4683 = vld [vmem:[#allocation13 + $0x48] sm:$0xf]
        %v4684 = vld [vmem:[#allocation13 + $0x4c] sm:$0xf]
        %v4685 = vld [vmem:[#allocation13 + $0x50] sm:$0xf]
        %v4686 = vld [vmem:[#allocation13 + $0x54] sm:$0xf]
        %v4687 = vld [vmem:[#allocation13 + $0x58] sm:$0xf]
        %v4688 = vld [vmem:[#allocation13 + $0x5c] sm:$0xf]
        %v4689 = vld [vmem:[#allocation13 + $0x60] sm:$0xf]
        %v4690 = vld [vmem:[#allocation13 + $0x64] sm:$0xf]
        %v4691 = vld [vmem:[#allocation13 + $0x68] sm:$0xf]
        %v4692 = vld [vmem:[#allocation13 + $0x6c] sm:$0xf]
        %v4693 = vld [vmem:[#allocation13 + $0x70] sm:$0xf]
        %v4694 = vld [vmem:[#allocation13 + $0x74] sm:$0xf]
        %v4695 = vld [vmem:[#allocation13 + $0x78] sm:$0xf]
        %v4696 = vld [vmem:[#allocation13 + $0x7c] sm:$0xf]
        %v4697 = vld [vmem:[#allocation13 + $0x80] sm:$0xf]
        %v4698 = vld [vmem:[#allocation13 + $0x84] sm:$0xf]
        %v4699 = vld [vmem:[#allocation13 + $0x88] sm:$0xf]
        %v4700 = vld [vmem:[#allocation13 + $0x8c] sm:$0xf]
        %v4701 = vld [vmem:[#allocation13 + $0x90] sm:$0xf]
        %v4702 = vld [vmem:[#allocation13 + $0x94] sm:$0xf]
        %v4703 = vld [vmem:[#allocation13 + $0x98] sm:$0xf]
        %v4704 = vld [vmem:[#allocation13 + $0x9c] sm:$0xf]
        %v4705 = vld [vmem:[#allocation13 + $0xa0] sm:$0xf]
        %v4706 = vld [vmem:[#allocation13 + $0xa4] sm:$0xf]
        %v4707 = vld [vmem:[#allocation13 + $0xa8] sm:$0xf]
        %v4708 = vld [vmem:[#allocation13 + $0xac] sm:$0xf]
        %v4709 = vld [vmem:[#allocation13 + $0xb0] sm:$0xf]
        %v4710 = vld [vmem:[#allocation13 + $0xb4] sm:$0xf]
        %v4711 = vld [vmem:[#allocation13 + $0xb8] sm:$0xf]
        %v4712 = vld [vmem:[#allocation13 + $0xbc] sm:$0xf]
        %v4713 = vld [vmem:[#allocation13 + $0xc0] sm:$0xf]
        %v4714 = vld [vmem:[#allocation13 + $0xc4] sm:$0xf]
        %v4715 = vld [vmem:[#allocation13 + $0xc8] sm:$0xf]
        %v4716 = vld [vmem:[#allocation13 + $0xcc] sm:$0xf]
        %v4717 = vld [vmem:[#allocation13 + $0xd0] sm:$0xf]
        %v4718 = vld [vmem:[#allocation13 + $0xd4] sm:$0xf]
        %v4719 = vld [vmem:[#allocation13 + $0xd8] sm:$0xf]
        %v4720 = vld [vmem:[#allocation13 + $0xdc] sm:$0xf]
        %v4721 = vld [vmem:[#allocation13 + $0xe0] sm:$0xf]
        %v4722 = vld [vmem:[#allocation13 + $0xe4] sm:$0xf]
        %v4723 = vld [vmem:[#allocation13 + $0xe8] sm:$0xf]
        %v4724 = vld [vmem:[#allocation13 + $0xec] sm:$0xf]
        %v4725 = vld [vmem:[#allocation13 + $0xf0] sm:$0xf]
        %v4726 = vld [vmem:[#allocation13 + $0xf4] sm:$0xf]
        %v4727 = vld [vmem:[#allocation13 + $0xf8] sm:$0xf]
        %v4728 = vld [vmem:[#allocation13 + $0xfc] sm:$0xf]
        %v4729 = vld [vmem:[#allocation13 + $0x100] sm:$0xf]
        %v4730 = vld [vmem:[#allocation13 + $0x104] sm:$0xf]
        %v4731 = vld [vmem:[#allocation13 + $0x108] sm:$0xf]
        %v4732 = vld [vmem:[#allocation13 + $0x10c] sm:$0xf]
        %v4733 = vld [vmem:[#allocation13 + $0x110] sm:$0xf]
        %v4734 = vld [vmem:[#allocation13 + $0x114] sm:$0xf]
        %v4735 = vld [vmem:[#allocation13 + $0x118] sm:$0xf]
        %v4736 = vld [vmem:[#allocation13 + $0x11c] sm:$0xf]
        %v4737 = vld [vmem:[#allocation13 + $0x120] sm:$0xf]
        %v4738 = vld [vmem:[#allocation13 + $0x124] sm:$0xf]
        %v4739 = vld [vmem:[#allocation13 + $0x128] sm:$0xf]
        %v4740 = vld [vmem:[#allocation13 + $0x12c] sm:$0xf]
        %v4741 = vld [vmem:[#allocation13 + $0x130] sm:$0xf]
        %v4742 = vld [vmem:[#allocation13 + $0x134] sm:$0xf]
        %v4743 = vld [vmem:[#allocation13 + $0x138] sm:$0xf]
        %v4744 = vld [vmem:[#allocation13 + $0x13c] sm:$0xf]
        %v4745 = vld [vmem:[#allocation13 + $0x140] sm:$0xf]
        %v4746 = vld [vmem:[#allocation13 + $0x144] sm:$0xf]
        %v4747 = vld [vmem:[#allocation13 + $0x148] sm:$0xf]
        %v4748 = vld [vmem:[#allocation13 + $0x14c] sm:$0xf]
        %v4749 = vld [vmem:[#allocation13 + $0x150] sm:$0xf]
        %v4750 = vld [vmem:[#allocation13 + $0x154] sm:$0xf]
        %v4751 = vld [vmem:[#allocation13 + $0x158] sm:$0xf]
        %v4752 = vld [vmem:[#allocation13 + $0x15c] sm:$0xf]
        %v4753 = vld [vmem:[#allocation13 + $0x160] sm:$0xf]
        %v4754 = vld [vmem:[#allocation13 + $0x164] sm:$0xf]
        %v4755 = vld [vmem:[#allocation13 + $0x168] sm:$0xf]
        %v4756 = vld [vmem:[#allocation13 + $0x16c] sm:$0xf]
        %v4757 = vld [vmem:[#allocation13 + $0x170] sm:$0xf]
        %v4758 = vld [vmem:[#allocation13 + $0x174] sm:$0xf]
        %v4759 = vld [vmem:[#allocation13 + $0x178] sm:$0xf]
        %v4760 = vld [vmem:[#allocation13 + $0x17c] sm:$0xf]
        %v4761 = vld [vmem:[%s19] sm:$0x1]
        %v4763 = vperm.slane %v4761, 0
        %v4861 = vunpack.c.l.b16 %v4665
        %v4862 = vunpack.c.l.b16 %v4666
        %v4863 = vunpack.c.l.b16 %v4667
        %v4864 = vunpack.c.l.b16 %v4668
        %v4865 = vunpack.c.l.b16 %v4669
        %v4866 = vunpack.c.l.b16 %v4670
        %v4867 = vunpack.c.l.b16 %v4671
        %v4868 = vunpack.c.l.b16 %v4672
        %v4869 = vunpack.c.l.b16 %v4673
        %v4870 = vunpack.c.l.b16 %v4674
        %v4871 = vunpack.c.l.b16 %v4675
        %v4872 = vunpack.c.l.b16 %v4676
        %v4873 = vunpack.c.l.b16 %v4677
        %v4874 = vunpack.c.l.b16 %v4678
        %v4875 = vunpack.c.l.b16 %v4679
        %v4876 = vunpack.c.l.b16 %v4680
        %v4877 = vunpack.c.l.b16 %v4681
        %v4878 = vunpack.c.l.b16 %v4682
        %v4879 = vunpack.c.l.b16 %v4683
        %v4880 = vunpack.c.l.b16 %v4684
        %v4881 = vunpack.c.l.b16 %v4685
        %v4882 = vunpack.c.l.b16 %v4686
        %v4883 = vunpack.c.l.b16 %v4687
        %v4884 = vunpack.c.l.b16 %v4688
        %v4885 = vunpack.c.l.b16 %v4689
        %v4886 = vunpack.c.l.b16 %v4690
        %v4887 = vunpack.c.l.b16 %v4691
        %v4888 = vunpack.c.l.b16 %v4692
        %v4889 = vunpack.c.l.b16 %v4693
        %v4890 = vunpack.c.l.b16 %v4694
        %v4891 = vunpack.c.l.b16 %v4695
        %v4892 = vunpack.c.l.b16 %v4696
        %v4893 = vunpack.c.l.b16 %v4697
        %v4894 = vunpack.c.l.b16 %v4698
        %v4895 = vunpack.c.l.b16 %v4699
        %v4896 = vunpack.c.l.b16 %v4700
        %v4897 = vunpack.c.l.b16 %v4701
        %v4898 = vunpack.c.l.b16 %v4702
        %v4899 = vunpack.c.l.b16 %v4703
        %v4900 = vunpack.c.l.b16 %v4704
        %v4901 = vunpack.c.l.b16 %v4705
        %v4902 = vunpack.c.l.b16 %v4706
        %v4903 = vunpack.c.l.b16 %v4707
        %v4904 = vunpack.c.l.b16 %v4708
        %v4905 = vunpack.c.l.b16 %v4709
        %v4906 = vunpack.c.l.b16 %v4710
        %v4907 = vunpack.c.l.b16 %v4711
        %v4908 = vunpack.c.l.b16 %v4712
        %v4909 = vunpack.c.l.b16 %v4713
        %v4910 = vunpack.c.l.b16 %v4714
        %v4911 = vunpack.c.l.b16 %v4715
        %v4912 = vunpack.c.l.b16 %v4716
        %v4913 = vunpack.c.l.b16 %v4717
        %v4914 = vunpack.c.l.b16 %v4718
        %v4915 = vunpack.c.l.b16 %v4719
        %v4916 = vunpack.c.l.b16 %v4720
        %v4917 = vunpack.c.l.b16 %v4721
        %v4918 = vunpack.c.l.b16 %v4722
        %v4919 = vunpack.c.l.b16 %v4723
        %v4920 = vunpack.c.l.b16 %v4724
        %v4921 = vunpack.c.l.b16 %v4725
        %v4922 = vunpack.c.l.b16 %v4726
        %v4923 = vunpack.c.l.b16 %v4727
        %v4924 = vunpack.c.l.b16 %v4728
        %v4925 = vunpack.c.l.b16 %v4729
        %v4926 = vunpack.c.l.b16 %v4730
        %v4927 = vunpack.c.l.b16 %v4731
        %v4928 = vunpack.c.l.b16 %v4732
        %v4929 = vunpack.c.l.b16 %v4733
        %v4930 = vunpack.c.l.b16 %v4734
        %v4931 = vunpack.c.l.b16 %v4735
        %v4932 = vunpack.c.l.b16 %v4736
        %v4933 = vunpack.c.l.b16 %v4737
        %v4934 = vunpack.c.l.b16 %v4738
        %v4935 = vunpack.c.l.b16 %v4739
        %v4936 = vunpack.c.l.b16 %v4740
        %v4937 = vunpack.c.l.b16 %v4741
        %v4938 = vunpack.c.l.b16 %v4742
        %v4939 = vunpack.c.l.b16 %v4743
        %v4940 = vunpack.c.l.b16 %v4744
        %v4941 = vunpack.c.l.b16 %v4745
        %v4942 = vunpack.c.l.b16 %v4746
        %v4943 = vunpack.c.l.b16 %v4747
        %v4944 = vunpack.c.l.b16 %v4748
        %v4945 = vunpack.c.l.b16 %v4749
        %v4946 = vunpack.c.l.b16 %v4750
        %v4947 = vunpack.c.l.b16 %v4751
        %v4948 = vunpack.c.l.b16 %v4752
        %v4949 = vunpack.c.l.b16 %v4753
        %v4950 = vunpack.c.l.b16 %v4754
        %v4951 = vunpack.c.l.b16 %v4755
        %v4952 = vunpack.c.l.b16 %v4756
        %v4953 = vunpack.c.l.b16 %v4757
        %v4954 = vunpack.c.l.b16 %v4758
        %v4955 = vunpack.c.l.b16 %v4759
        %v4956 = vunpack.c.l.b16 %v4760
        %v4957 = vpack.c.b16 %v4862, %v4861
        %v4958 = vpack.c.b16 %v4864, %v4863
        %v4959 = vpack.c.b16 %v4866, %v4865
        %v4960 = vpack.c.b16 %v4868, %v4867
        %v4961 = vpack.c.b16 %v4870, %v4869
        %v4962 = vpack.c.b16 %v4872, %v4871
        %v4963 = vpack.c.b16 %v4874, %v4873
        %v4964 = vpack.c.b16 %v4876, %v4875
        %v4965 = vpack.c.b16 %v4878, %v4877
        %v4966 = vpack.c.b16 %v4880, %v4879
        %v4967 = vpack.c.b16 %v4882, %v4881
        %v4968 = vpack.c.b16 %v4884, %v4883
        %v4969 = vpack.c.b16 %v4886, %v4885
        %v4970 = vpack.c.b16 %v4888, %v4887
        %v4971 = vpack.c.b16 %v4890, %v4889
        %v4972 = vpack.c.b16 %v4892, %v4891
        %v4973 = vpack.c.b16 %v4894, %v4893
        %v4974 = vpack.c.b16 %v4896, %v4895
        %v4975 = vpack.c.b16 %v4898, %v4897
        %v4976 = vpack.c.b16 %v4900, %v4899
        %v4977 = vpack.c.b16 %v4902, %v4901
        %v4978 = vpack.c.b16 %v4904, %v4903
        %v4979 = vpack.c.b16 %v4906, %v4905
        %v4980 = vpack.c.b16 %v4908, %v4907
        %v4981 = vpack.c.b16 %v4910, %v4909
        %v4982 = vpack.c.b16 %v4912, %v4911
        %v4983 = vpack.c.b16 %v4914, %v4913
        %v4984 = vpack.c.b16 %v4916, %v4915
        %v4985 = vpack.c.b16 %v4918, %v4917
        %v4986 = vpack.c.b16 %v4920, %v4919
        %v4987 = vpack.c.b16 %v4922, %v4921
        %v4988 = vpack.c.b16 %v4924, %v4923
        %v4989 = vpack.c.b16 %v4926, %v4925
        %v4990 = vpack.c.b16 %v4928, %v4927
        %v4991 = vpack.c.b16 %v4930, %v4929
        %v4992 = vpack.c.b16 %v4932, %v4931
        %v4993 = vpack.c.b16 %v4934, %v4933
        %v4994 = vpack.c.b16 %v4936, %v4935
        %v4995 = vpack.c.b16 %v4938, %v4937
        %v4996 = vpack.c.b16 %v4940, %v4939
        %v4997 = vpack.c.b16 %v4942, %v4941
        %v4998 = vpack.c.b16 %v4944, %v4943
        %v4999 = vpack.c.b16 %v4946, %v4945
        %v5000 = vpack.c.b16 %v4948, %v4947
        %v5001 = vpack.c.b16 %v4950, %v4949
        %v5002 = vpack.c.b16 %v4952, %v4951
        %v5003 = vpack.c.b16 %v4954, %v4953
        %v5004 = vpack.c.b16 %v4956, %v4955
        %5053 = vmatpush.bf16.msra.mxu0 %v4964
        %5054 = vmatpush.bf16.msra.mxu0 %v4963
        %5055 = vmatpush.bf16.msra.mxu0 %v4962
        %5056 = vmatpush.bf16.msra.mxu0 %v4961
        %5057 = vmatpush.bf16.msra.mxu0 %v4960
        %5058 = vmatpush.bf16.msra.mxu0 %v4959
        %5059 = vmatpush.bf16.msra.mxu0 %v4958
        %5060 = vmatpush.bf16.msra.mxu0 %v4957
        %5061 = vmatmul.bf16.gmra.mxu0 %v4659
        %v5062 = vpop.f32.mrf.mxu0
        %v5063 = vadd.f32 %v4763, %v5062
        %v5064 = vpop.f32.mrf.mxu0
        %v5065 = vadd.f32 %v4763, %v5064
        %5066 = vdwg.mxu0
        %5067 = vmatpush.bf16.msra.mxu0 %v4972
        %5068 = vmatpush.bf16.msra.mxu0 %v4971
        %5069 = vmatpush.bf16.msra.mxu0 %v4970
        %5070 = vmatpush.bf16.msra.mxu0 %v4969
        %5071 = vmatpush.bf16.msra.mxu0 %v4968
        %5072 = vmatpush.bf16.msra.mxu0 %v4967
        %5073 = vmatpush.bf16.msra.mxu0 %v4966
        %5074 = vmatpush.bf16.msra.mxu0 %v4965
        %5075 = vmatmul.bf16.gmra.mxu0 %v4660
        %v5076 = vpop.f32.mrf.mxu0
        %v5077 = vadd.f32 %v5063, %v5076
        %v5078 = vpop.f32.mrf.mxu0
        %v5079 = vadd.f32 %v5065, %v5078
        %5080 = vdwg.mxu0
        %5081 = vmatpush.bf16.msra.mxu0 %v4980
        %5082 = vmatpush.bf16.msra.mxu0 %v4979
        %5083 = vmatpush.bf16.msra.mxu0 %v4978
        %5084 = vmatpush.bf16.msra.mxu0 %v4977
        %5085 = vmatpush.bf16.msra.mxu0 %v4976
        %5086 = vmatpush.bf16.msra.mxu0 %v4975
        %5087 = vmatpush.bf16.msra.mxu0 %v4974
        %5088 = vmatpush.bf16.msra.mxu0 %v4973
        %5089 = vmatmul.bf16.gmra.mxu0 %v4661
        %v5090 = vpop.f32.mrf.mxu0
        %v5091 = vadd.f32 %v5077, %v5090
        %v5092 = vpop.f32.mrf.mxu0
        %v5093 = vadd.f32 %v5079, %v5092
        %5094 = vdwg.mxu0
        %5095 = vmatpush.bf16.msra.mxu0 %v4988
        %5096 = vmatpush.bf16.msra.mxu0 %v4987
        %5097 = vmatpush.bf16.msra.mxu0 %v4986
        %5098 = vmatpush.bf16.msra.mxu0 %v4985
        %5099 = vmatpush.bf16.msra.mxu0 %v4984
        %5100 = vmatpush.bf16.msra.mxu0 %v4983
        %5101 = vmatpush.bf16.msra.mxu0 %v4982
        %5102 = vmatpush.bf16.msra.mxu0 %v4981
        %5103 = vmatmul.bf16.gmra.mxu0 %v4662
        %v5104 = vpop.f32.mrf.mxu0
        %v5105 = vadd.f32 %v5091, %v5104
        %v5106 = vpop.f32.mrf.mxu0
        %v5107 = vadd.f32 %v5093, %v5106
        %5108 = vdwg.mxu0
        %5109 = vmatpush.bf16.msra.mxu0 %v4996
        %5110 = vmatpush.bf16.msra.mxu0 %v4995
        %5111 = vmatpush.bf16.msra.mxu0 %v4994
        %5112 = vmatpush.bf16.msra.mxu0 %v4993
        %5113 = vmatpush.bf16.msra.mxu0 %v4992
        %5114 = vmatpush.bf16.msra.mxu0 %v4991
        %5115 = vmatpush.bf16.msra.mxu0 %v4990
        %5116 = vmatpush.bf16.msra.mxu0 %v4989
        %5117 = vmatmul.bf16.gmra.mxu0 %v4663
        %v5118 = vpop.f32.mrf.mxu0
        %v5119 = vadd.f32 %v5105, %v5118
        %v5120 = vpop.f32.mrf.mxu0
        %v5121 = vadd.f32 %v5107, %v5120
        %5122 = vdwg.mxu0
        %5123 = vmatpush.bf16.msra.mxu0 %v5004
        %5124 = vmatpush.bf16.msra.mxu0 %v5003
        %5125 = vmatpush.bf16.msra.mxu0 %v5002
        %5126 = vmatpush.bf16.msra.mxu0 %v5001
        %5127 = vmatpush.bf16.msra.mxu0 %v5000
        %5128 = vmatpush.bf16.msra.mxu0 %v4999
        %5129 = vmatpush.bf16.msra.mxu0 %v4998
        %5130 = vmatpush.bf16.msra.mxu0 %v4997
        %5131 = vmatmul.bf16.gmra.mxu0 %v4664
        %v5132 = vpop.f32.mrf.mxu0
        %v5133 = vadd.f32 %v5119, %v5132
        %v5134 = vpop.f32.mrf.mxu0
        %v5135 = vadd.f32 %v5121, %v5134
        %5136 = vdwg.mxu0
        %v5137 = vadd.f32 %v5133, %v2987
        %v5138 = vadd.f32 %v5135, %v2988
        %5139 = vst [vmem:[%s817] sm:$0xff] %v5137
        %5140 = vst [vmem:[%s817 + $0x8] sm:$0xff] %v5138
        %p5141 = scmp.lt.s32.totalorder %s37, 1
        %s5142 = scalar_select %p5141, %s37, 1
        %s5143 = smul.addr %s5142, 8
        %s5144 = scalar_lea.vmem %s20, %s5143
        %p5145 = scmp.lt.s32.totalorder %s37, 1
        %s5146 = scalar_select %p5145, %s37, 1
        %s5147 = smul.addr %s5146, 2
        %s5148 = smul.addr %s5147, 8
        %s5149 = scalar_lea.vmem %s21, %s5148
        // Predicated region
        $region129: #{generator_forward.1} parent=99 // pred_check
          %p5150 = pneg %p490
        $region130: #{generator_forward.1} parent=99 // pred_check_branch
          %5152 = sbr.rel (%p5150) target = $region132
        $region131: #{generator_forward.1} parent=99 // pred_region
          _
        $region132: #{generator_forward.1} parent=99 // pred_fallthru
          _
        // Predicated region
        $region133: #{generator_forward.1} parent=99 // pred_check
          %p5153 = pneg %p516
        $region134: #{generator_forward.1} parent=99 // pred_check_branch
          %5155 = sbr.rel (%p5153) target = $region136
        $region135: #{generator_forward.1} parent=99 // pred_region
          _
        $region136: #{generator_forward.1} parent=99 // pred_fallthru
          _
      $region100: #{generator_forward.1} parent=5 // pred_fallthru
        _
      %p5156 = scmp.le.s32.totalorder 2, %s32
      // Predicated region
      $region137: #{generator_forward.1} parent=5 // pred_check
        %p5157 = pneg %p5156
      $region138: #{generator_forward.1} parent=5 // pred_check_branch
        %5159 = sbr.rel (%p5157) target = $region140
      $region139: #{generator_forward.1} parent=5 // pred_region
        %s5160 = ssub.s32 %s32, 2
        // Predicated region
        $region141: #{generator_forward.1} parent=139 // pred_check
          %p5161 = pneg %p496
        $region142: #{generator_forward.1} parent=139 // pred_check_branch
          %5163 = sbr.rel (%p5161) target = $region144
        $region143: #{generator_forward.1} parent=139 // pred_region
          %p5164 = scmp.lt.s32.totalorder %s38, 1
          %s5165 = scalar_select %p5164, %s38, 1
          %s5166 = smul.addr %s5165, 8
          %s5167 = scalar_lea.vmem %s20, %s5166
        $region144: #{generator_forward.1} parent=139 // pred_fallthru
          _
        // Predicated region
        $region145: #{generator_forward.1} parent=139 // pred_check
          %p5168 = pneg %p522
        $region146: #{generator_forward.1} parent=139 // pred_check_branch
          %5170 = sbr.rel (%p5168) target = $region148
        $region147: #{generator_forward.1} parent=139 // pred_region
          %p5171 = scmp.lt.s32.totalorder %s38, 1
          %s5172 = scalar_select %p5171, %s38, 1
          %s5173 = smul.addr %s5172, 2
          %s5174 = smul.addr %s5173, 8
          %s5175 = scalar_lea.vmem %s21, %s5174
        $region148: #{generator_forward.1} parent=139 // pred_fallthru
          _
      $region140: #{generator_forward.1} parent=5 // pred_fallthru
        _
    $region6: #{generator_forward.1} parent=1 // loop_footer
      %s36 = sadd.s32 1, %s32
    $region7: #{generator_forward.1} parent=1 // loop_footer_branch
      %31 = sbr.rel target = $region3
    $region8: #{generator_forward.1} parent=1 // loop_exit
      _
    %5176 = vsyncpa [#allocation4], 1
    %s5177 = scalar_lea.sflag [#allocation4], 1
    %5178 = vsyncpa %s5177, 1
    %5179 = vsyncpa [#allocation6], 1
    %5180 = vsyncpa [#allocation9], 1
    %5181 = vsyncpa [#allocation12], 1

</llo_original>
